<compile_context>
chip_gen: v7x
topology: tpu7x:2x2x1
jax: 0.10.0
libtpu: 0.0.40
codegen_flags: <defaults>
</compile_context>

<pallas_src>
import jax
import jax.numpy as jnp
import numpy as np
from jax import lax
from jax.experimental import pallas as pl
from jax.experimental.pallas import tpu as pltpu

_BN_EPS = 1e-5
_INV_SQRT2 = 0.7071067811865476


# ----------------------------------------------------------------------------
# In-kernel helpers (all f32 math on the MXU accumulator)
# ----------------------------------------------------------------------------
def _erf_approx(x):
    # Abramowitz & Stegun 7.1.26, |err| <= 1.5e-7 in erf. The divide uses the EUP
    # approximate reciprocal so GELU does not compete for VALU slots.
    a1, a2, a3, a4, a5 = (0.254829592, -0.284496736, 1.421413741,
                          -1.453152027, 1.061405429)
    p = 0.3275911
    ax = jnp.abs(x)
    t = pl.reciprocal(1.0 + p * ax, approx=True)
    poly = ((((a5 * t + a4) * t + a3) * t + a2) * t + a1) * t
    y = 1.0 - poly * jnp.exp(-ax * ax)
    return jnp.where(x >= 0, y, -y)


def _gelu_exact(x):
    # nn.GELU() default (erf-based, not tanh approximation)
    return 0.5 * x * (1.0 + _erf_approx(x * _INV_SQRT2))


# ----------------------------------------------------------------------------
# Pallas kernels
# ----------------------------------------------------------------------------
def _k4_kernel(x_ref, w1_ref, b1_ref, w2_ref, b2_ref, o_ref):
    # x : (tm, C)           bf16
    # w1: (4, C, C)         bf16, BN folded, axis0 = (d1h, d1w)
    # b1: (4, 1, C)         f32
    # w2: (C, 4*cout)       bf16, cols (co, d2h, d2w)      (4*cout == C)
    # b2: (1, 4*cout)       f32
    # o : (4, tm, 4*cout)   axis0 = (d1h, d1w)
    x = x_ref[...]
    w2 = w2_ref[...]
    b2 = b2_ref[...]

    def per_subpixel(d1, carry):
        # Live intermediate is only (tm, C), not (tm, 4C): 4x less VMEM/vreg pressure.
        y = jnp.dot(x, w1_ref[d1], preferred_element_type=jnp.float32) + b1_ref[d1]
        y = _gelu_exact(y)                                   # f32 VPU/EUP math
        z = jnp.dot(y.astype(w2.dtype), w2,
                    preferred_element_type=jnp.float32) + b2
        o_ref[d1] = z.astype(o_ref.dtype)                    # one wide slab store / d1
        return carry

    lax.fori_loop(0, 4, per_subpixel, 0, unroll=True)


def _k2_kernel(x_ref, w_ref, b_ref, o_ref):
    # x: (tm, C) bf16   w: (C, 4*cout) bf16 cols (co, dh, dw)   b: f32
    z = jnp.dot(x_ref[...], w_ref[...],
                preferred_element_type=jnp.float32) + b_ref[...]
    o_ref[...] = z.astype(o_ref.dtype)


def _k05_kernel(x_ref, w_ref, b_ref, o_ref):
    # x: (4, tm, C) bf16 window-major -> every max operand is a contiguous (tm, C) tile.
    xm = jnp.maximum(jnp.maximum(x_ref[0], x_ref[1]),
                     jnp.maximum(x_ref[2], x_ref[3]))
    z = jnp.dot(xm, w_ref[...], preferred_element_type=jnp.float32) + b_ref[...]
    o_ref[...] = z.astype(o_ref.dtype)


# ----------------------------------------------------------------------------
# Tiling / compiler-parameter helpers
# ----------------------------------------------------------------------------
def _round_up(x, m):
    return ((x + m - 1) // m) * m


def _choose_tile(m, max_tile=512, min_steps=8):
    """Sublane-aligned row tile that targets >= min_steps grid steps, so the
    software pipeline has depth on each TensorCore even after the v7x megacore
    split (per-step overhead is only ~0.35 us)."""
    tm = min(max_tile, max(8, _round_up((m + min_steps - 1) // min_steps, 8)))
    m_pad = _round_up(m, tm)
    return tm, m_pad


def _vmem_capacity_bytes():
    try:
        return int(pltpu.get_tpu_info().vmem_capacity_bytes)
    except Exception:
        return 64 << 20          # conservative: v7x per-TensorCore VMEM


def _mosaic_params(resident_bytes):
    cap = _vmem_capacity_bytes()
    hard_cap = (cap * 7) // 8    # headroom below physical per-core VMEM (56 MiB on v7x)
    limit = int(min(max(int(resident_bytes) + (8 << 20), 24 << 20), hard_cap))
    return pltpu.CompilerParams(dimension_semantics=("parallel",),
                                vmem_limit_bytes=limit)


def _wspec(shape, index_map, single_buffer):
    """BlockSpec for a grid-invariant (weight/bias) operand.  single_buffer=True
    requests pipeline_mode=pl.Buffered(1) so it is not double-buffered."""
    if single_buffer:
        return pl.BlockSpec(shape, index_map, pipeline_mode=pl.Buffered(1))
    return pl.BlockSpec(shape, index_map)


def _call_weight_stationary(build, *args):
    """Prefer single-buffered weights; fall back to the default double-buffered
    pipeline if pl.Buffered(1) is not supported by this jax/libtpu combination."""
    try:
        return build(True)(*args)
    except Exception:
        return build(False)(*args)


# ----------------------------------------------------------------------------
# Branch wrappers (JAX glue around the kernels)
# ----------------------------------------------------------------------------
def branch_up4x(x_nchw, p, out_dtype=jnp.float32):
    w1, b1, gamma, beta, mean, var, w2, b2 = p
    n, c, h, w = x_nchw.shape
    cout = c // 4
    out_bpe = jnp.dtype(out_dtype).itemsize

    # Fold eval-mode BatchNorm into deconv1 (f32 algebra in the wrapper, free).
    scale = gamma * jax.lax.rsqrt(var + _BN_EPS)                    # (1, c)
    shift = beta - mean * scale                                     # (1, c)
    w1_fold = (w1 * scale.reshape(1, 1, 1, c)).reshape(4, c, c)     # axis0 = (d1h, d1w)
    b1_fold = jnp.broadcast_to((b1 * scale + shift).reshape(1, 1, c), (4, 1, c))
    # Second deconv: columns (co, d2h, d2w) so sub-pixel interleave + NHWC->NCHW
    # collapse into a single post-kernel transpose.
    w2_perm = jnp.transpose(w2, (2, 3, 0, 1)).reshape(c, 4 * cout)
    b2_perm = jnp.repeat(b2, 4, axis=-1)                            # (1, 4*cout)

    # bf16 MXU operands; cast *before* the relayout so XLA moves half the bytes.
    x_rows = jnp.transpose(x_nchw.astype(jnp.bfloat16),
                           (0, 2, 3, 1)).reshape(n * h * w, c)
    w1_b = w1_fold.astype(jnp.bfloat16)
    w2_b = w2_perm.astype(jnp.bfloat16)
    b1_f = b1_fold.astype(jnp.float32)
    b2_f = b2_perm.astype(jnp.float32)

    m = n * h * w
    tm, m_pad = _choose_tile(m, max_tile=512 if c <= 1024 else 256)
    if m_pad != m:
        x_rows = jnp.pad(x_rows, ((0, m_pad - m), (0, 0)))

    w_bytes = 2 * (4 * c * c) + 4 * (4 * c) + 2 * (c * 4 * cout) + 4 * (4 * cout)
    tile_in = 2 * tm * c
    tile_out = out_bpe * 4 * tm * 4 * cout
    interm = 4 * tm * c + 4 * tm * 4 * cout            # f32 y and z live values
    resident = 2 * tile_in + 2 * tile_out + 2 * w_bytes + interm
    cost = pl.CostEstimate(flops=16 * m_pad * c * c,
                           transcendentals=8 * m_pad * c,
                           bytes_accessed=2 * m_pad * c
                           + out_bpe * m_pad * 16 * cout + w_bytes)

    def build(single_buffer):
        return pl.pallas_call(
            _k4_kernel,
            out_shape=jax.ShapeDtypeStruct((4, m_pad, 4 * cout), out_dtype),
            grid_spec=pltpu.PrefetchScalarGridSpec(
                num_scalar_prefetch=0,
                grid=(m_pad // tm,),
                in_specs=[
                    pl.BlockSpec((tm, c), lambda i: (i, 0)),
                    _wspec((4, c, c), lambda i: (0, 0, 0), single_buffer),
                    _wspec((4, 1, c), lambda i: (0, 0, 0), single_buffer),
                    _wspec((c, 4 * cout), lambda i: (0, 0), single_buffer),
                    _wspec((1, 4 * cout), lambda i: (0, 0), single_buffer),
                ],
                out_specs=pl.BlockSpec((4, tm, 4 * cout), lambda i: (0, i, 0)),
            ),
            compiler_params=_mosaic_params(resident),
            cost_estimate=cost,
        )

    out = _call_weight_stationary(build, x_rows, w1_b, b1_f, w2_b, b2_f)

    out = out[:, :m] if m_pad != m else out
    # dims (d1h, d1w, n, h, w, co, d2h, d2w) -> pixel (4h+2*d1h+d2h, 4w+2*d1w+d2w);
    # single transpose also performs NHWC -> NCHW.
    out = out.reshape(2, 2, n, h, w, cout, 2, 2)
    out = jnp.transpose(out, (2, 5, 3, 0, 6, 4, 1, 7)).reshape(n, cout, 4 * h, 4 * w)
    return out


def branch_up2x(x_nchw, p, out_dtype=jnp.float32):
    w, b = p
    n, c, h, ww = x_nchw.shape
    cout = c // 2
    out_bpe = jnp.dtype(out_dtype).itemsize

    w_perm = jnp.transpose(w, (2, 3, 0, 1)).reshape(c, 4 * cout)   # cols (co, dh, dw)
    w_b = w_perm.astype(jnp.bfloat16)
    b_f = jnp.repeat(b, 4, axis=-1).astype(jnp.float32)

    x_rows = jnp.transpose(x_nchw.astype(jnp.bfloat16),
                           (0, 2, 3, 1)).reshape(n * h * ww, c)
    m = n * h * ww
    tm, m_pad = _choose_tile(m, max_tile=512)
    if m_pad != m:
        x_rows = jnp.pad(x_rows, ((0, m_pad - m), (0, 0)))

    w_bytes = 2 * (c * 4 * cout) + 4 * (4 * cout)
    tile_in = 2 * tm * c
    tile_out = out_bpe * tm * 4 * cout
    resident = 2 * tile_in + 2 * tile_out + 2 * w_bytes + 4 * tm * 4 * cout
    cost = pl.CostEstimate(flops=2 * m_pad * c * 4 * cout,
                           transcendentals=0,
                           bytes_accessed=2 * m_pad * c
                           + out_bpe * m_pad * 4 * cout + w_bytes)

    def build(single_buffer):
        return pl.pallas_call(
            _k2_kernel,
            out_shape=jax.ShapeDtypeStruct((m_pad, 4 * cout), out_dtype),
            grid_spec=pltpu.PrefetchScalarGridSpec(
                num_scalar_prefetch=0,
                grid=(m_pad // tm,),
                in_specs=[
                    pl.BlockSpec((tm, c), lambda i: (i, 0)),
                    _wspec((c, 4 * cout), lambda i: (0, 0), single_buffer),
                    _wspec((1, 4 * cout), lambda i: (0, 0), single_buffer),
                ],
                out_specs=pl.BlockSpec((tm, 4 * cout), lambda i: (i, 0)),
            ),
            compiler_params=_mosaic_params(resident),
            cost_estimate=cost,
        )

    out = _call_weight_stationary(build, x_rows, w_b, b_f)

    out = out[:m] if m_pad != m else out
    out = out.reshape(n, h, ww, cout, 2, 2)
    out = jnp.transpose(out, (0, 3, 1, 4, 2, 5)).reshape(n, cout, 2 * h, 2 * ww)
    return out


def branch_down2x(x_nchw, p, out_dtype=jnp.float32):
    w, b = p
    n, c, h, ww = x_nchw.shape
    assert h % 2 == 0 and ww % 2 == 0, "MaxPool2d(2,2) branch needs even H/W"
    h2, w2 = h // 2, ww // 2
    cout = 2 * c
    out_bpe = jnp.dtype(out_dtype).itemsize

    # Single XLA transpose (the unavoidable channels-last relayout from NCHW), done in
    # bf16 and producing window-major (4, M, C) -> contiguous (tm, C) max operands.
    # TODO(synk): an NHWC input path would make this a free reshape (no relayout).
    xp = x_nchw.astype(jnp.bfloat16).reshape(n, c, h2, 2, w2, 2)
    xp = jnp.transpose(xp, (3, 5, 0, 2, 4, 1)).reshape(4, n * h2 * w2, c)
    w_b = w.astype(jnp.bfloat16)
    b_f = b.astype(jnp.float32)

    m = n * h2 * w2
    tm, m_pad = _choose_tile(m, max_tile=512)
    if m_pad != m:
        xp = jnp.pad(xp, ((0, 0), (0, m_pad - m), (0, 0)))

    w_bytes = 2 * (c * cout) + 4 * cout
    tile_in = 2 * 4 * tm * c
    tile_out = out_bpe * tm * cout
    resident = 2 * tile_in + 2 * tile_out + 2 * w_bytes + 4 * tm * cout
    cost = pl.CostEstimate(flops=2 * m_pad * c * cout + 3 * m_pad * c,
                           transcendentals=0,
                           bytes_accessed=2 * m_pad * 4 * c
                           + out_bpe * m_pad * cout + w_bytes)

    def build(single_buffer):
        return pl.pallas_call(
            _k05_kernel,
            out_shape=jax.ShapeDtypeStruct((m_pad, cout), out_dtype),
            grid_spec=pltpu.PrefetchScalarGridSpec(
                num_scalar_prefetch=0,
                grid=(m_pad // tm,),
                in_specs=[
                    pl.BlockSpec((4, tm, c), lambda i: (0, i, 0)),
                    _wspec((c, cout), lambda i: (0, 0), single_buffer),
                    _wspec((1, cout), lambda i: (0, 0), single_buffer),
                ],
                out_specs=pl.BlockSpec((tm, cout), lambda i: (i, 0)),
            ),
            compiler_params=_mosaic_params(resident),
            cost_estimate=cost,
        )

    out = _call_weight_stationary(build, xp, w_b, b_f)

    out = out[:m] if m_pad != m else out
    out = out.reshape(n, h2, w2, cout)
    return jnp.transpose(out, (0, 3, 1, 2))


# ----------------------------------------------------------------------------
# Module wrapper with deterministic synthetic parameters
# ----------------------------------------------------------------------------
class Feature2PyramidPallas:
    def __init__(self, embed_dims, rescales=(4, 2, 1, 0.5), key=None,
                 out_dtype=jnp.float32):
        if key is None:
            key = jax.random.PRNGKey(0)
        self.rescales = rescales
        self.out_dtype = out_dtype        # bf16 halves the post-kernel HBM traffic
        self.params = []
        keys = jax.random.split(key, len(rescales) * 8).reshape(len(rescales), 8, 2)
        for i, k in enumerate(rescales):
            c = embed_dims[i]
            kk = keys[i]
            if k == 4:
                p = (
                    0.1 * jax.random.normal(kk[0], (2, 2, c, c), jnp.float32),        # deconv1 w
                    0.1 * jax.random.normal(kk[1], (1, c), jnp.float32),              # deconv1 b
                    1.0 + 0.1 * jax.random.normal(kk[2], (1, c), jnp.float32),        # BN gamma
                    0.1 * jax.random.normal(kk[3], (1, c), jnp.float32),              # BN beta
                    0.1 * jax.random.normal(kk[4], (1, c), jnp.float32),              # BN running_mean
                    1.0 + 0.1 * jnp.abs(jax.random.normal(kk[5], (1, c), jnp.float32)),  # BN running_var
                    0.1 * jax.random.normal(kk[6], (2, 2, c, c // 4), jnp.float32),   # deconv2 w
                    0.1 * jax.random.normal(kk[7], (1, c // 4), jnp.float32),         # deconv2 b
                )
            elif k == 2:
                p = (0.1 * jax.random.normal(kk[0], (2, 2, c, c // 2), jnp.float32),
                     0.1 * jax.random.normal(kk[1], (1, c // 2), jnp.float32))
            elif k == 1:
                p = None
            elif k == 0.5:
                p = (0.1 * jax.random.normal(kk[0], (c, 2 * c), jnp.float32),
                     0.1 * jax.random.normal(kk[1], (1, 2 * c), jnp.float32))
            else:
                raise KeyError(f"invalid {k} for feature2pyramid")
            self.params.append(p)

    def __call__(self, inputs):
        assert len(inputs) == len(self.rescales)
        outs = []
        for i, k in enumerate(self.rescales):
            x, p = inputs[i], self.params[i]
            if k == 4:
                outs.append(branch_up4x(x, p, self.out_dtype))
            elif k == 2:
                outs.append(branch_up2x(x, p, self.out_dtype))
            elif k == 1:
                outs.append(x)                   # nn.Identity
            elif k == 0.5:
                outs.append(branch_down2x(x, p, self.out_dtype))
        return tuple(outs)


# ----------------------------------------------------------------------------
# Plain-JAX reference (for correctness check only)
# ----------------------------------------------------------------------------
def _ref_convT2x2(x_nhwc, w, b):
    # w: (2, 2, cin, cout);  out[2h+i, 2w+j] = x[h, w] @ w[i, j] + b
    y = jnp.einsum('nhwc,ijcd->nhiwjd', x_nhwc, w) + b.reshape(-1)
    n, hh, _, ww, _, co = y.shape
    return y.reshape(n, 2 * hh, 2 * ww, co)


def _ref_forward(module, inputs):
    outs = []
    for i, k in enumerate(module.rescales):
        x = jnp.transpose(inputs[i], (0, 2, 3, 1))      # NHWC
        p = module.params[i]
        if k == 4:
            w1, b1, gamma, beta, mean, var, w2, b2 = p
            y = _ref_convT2x2(x, w1, b1)
            y = ((y - mean.reshape(-1)) * jax.lax.rsqrt(var.reshape(-1) + _BN_EPS)
                 * gamma.reshape(-1) + beta.reshape(-1))
            y = jax.nn.gelu(y, approximate=False)
            y = _ref_convT2x2(y, w2, b2)
        elif k == 2:
            w, b = p
            y = _ref_convT2x2(x, w, b)
        elif k == 1:
            y = x
        elif k == 0.5:
            w, b = p
            n, h, ww, c = x.shape
            y = x.reshape(n, h // 2, 2, ww // 2, 2, c).max(axis=(2, 4))
            y = jnp.einsum('nhwc,cd->nhwd', y, w) + b.reshape(-1)
        outs.append(jnp.transpose(y, (0, 3, 1, 2)))
    return tuple(outs)


if __name__ == "__main__":
    key = jax.random.PRNGKey(0)
    embed_dims = [32, 32, 32, 32]
    N, H, W = 2, 16, 16
    ks = jax.random.split(key, 5)
    inputs = [jax.random.normal(ks[i], (N, embed_dims[i], H, W), jnp.float32)
              for i in range(4)]

    neck = Feature2PyramidPallas(embed_dims, rescales=(4, 2, 1, 0.5), key=ks[4])
    outs = neck(inputs)
    outs = jax.block_until_ready(outs)

    refs = _ref_forward(neck, inputs)
    expected_shapes = [(N, embed_dims[0] // 4, 4 * H, 4 * W),
                       (N, embed_dims[1] // 2, 2 * H, 2 * W),
                       (N, embed_dims[2], H, W),
                       (N, embed_dims[3] * 2, H // 2, W // 2)]
    # Tolerance reflects bf16 MXU operands (rel ~2e-3 per matmul) plus the
    # EUP approximate reciprocal inside the erf polynomial of GELU.
    for o, r, s in zip(outs, refs, expected_shapes):
        assert o.shape == s, (o.shape, s)
        np.testing.assert_allclose(np.asarray(o, dtype=np.float32),
                                   np.asarray(r, dtype=np.float32),
                                   rtol=2e-2, atol=2e-2)

    print("KERNEL_OK")
</pallas_src>

<mosaic_0001>
module attributes {stable_mosaic.version = 11 : i64} {
  func.func @_k4_kernel(%arg0: i32, %arg1: memref<64x32xbf16, #tpu.memory_space<vmem>>, %arg2: memref<4x32x32xbf16, #tpu.memory_space<vmem>>, %arg3: memref<4x1x32xf32, #tpu.memory_space<vmem>>, %arg4: memref<32x32xbf16, #tpu.memory_space<vmem>>, %arg5: memref<1x32xf32, #tpu.memory_space<vmem>>, %arg6: memref<4x64x32xf32, #tpu.memory_space<vmem>>) attributes {dimension_semantics = [#tpu.dimension_semantics<parallel>], iteration_bounds = array<i64: 8>, scalar_prefetch = 0 : i64, scratch_operands = 0 : i64, tpu.core_type = #tpu.core_type<tc>, window_params = [{transform_indices = @transform_0, window_bounds = array<i64: 64, 32>}, {pipeline_mode = #tpu.pipeline_mode<synchronous>, transform_indices = @transform_1, window_bounds = array<i64: 4, 32, 32>}, {pipeline_mode = #tpu.pipeline_mode<synchronous>, transform_indices = @transform_2, window_bounds = array<i64: 4, 1, 32>}, {pipeline_mode = #tpu.pipeline_mode<synchronous>, transform_indices = @transform_3, window_bounds = array<i64: 32, 32>}, {pipeline_mode = #tpu.pipeline_mode<synchronous>, transform_indices = @transform_4, window_bounds = array<i64: 1, 32>}, {transform_indices = @transform_5, window_bounds = array<i64: 4, 64, 32>}]} {
    %c0 = arith.constant 0 : index
    %c0_0 = arith.constant 0 : index
    %0 = vector.load %arg1[%c0, %c0_0] : memref<64x32xbf16, #tpu.memory_space<vmem>>, vector<64x32xbf16>
    %c0_1 = arith.constant 0 : index
    %c0_2 = arith.constant 0 : index
    %1 = vector.load %arg4[%c0_1, %c0_2] : memref<32x32xbf16, #tpu.memory_space<vmem>>, vector<32x32xbf16>
    %c0_3 = arith.constant 0 : index
    %c0_4 = arith.constant 0 : index
    %2 = vector.load %arg5[%c0_3, %c0_4] : memref<1x32xf32, #tpu.memory_space<vmem>>, vector<1x32xf32>
    %c0_i32 = arith.constant 0 : i32
    %3 = arith.index_cast %c0_i32 : i32 to index
    %c0_5 = arith.constant 0 : index
    %c0_6 = arith.constant 0 : index
    %4 = vector.load %arg2[%3, %c0_5, %c0_6] : memref<4x32x32xbf16, #tpu.memory_space<vmem>>, vector<1x32x32xbf16>
    %5 = vector.shape_cast %4 : vector<1x32x32xbf16> to vector<32x32xbf16>
    %cst = arith.constant dense<0.000000e+00> : vector<64x32xf32>
    %6 = tpu.matmul %0, %5, %cst {dimension_numbers = #tpu.dot_dimension_numbers<[1], [0], [0], [1], [0, 0, 1, 1], [], []>} : vector<64x32xbf16>, vector<32x32xbf16>, vector<64x32xf32> -> vector<64x32xf32>
    %7 = arith.index_cast %c0_i32 : i32 to index
    %c0_7 = arith.constant 0 : index
    %c0_8 = arith.constant 0 : index
    %8 = vector.load %arg3[%7, %c0_7, %c0_8] : memref<4x1x32xf32, #tpu.memory_space<vmem>>, vector<1x1x32xf32>
    %9 = vector.shape_cast %8 : vector<1x1x32xf32> to vector<1x32xf32>
    %10 = vector.broadcast %9 : vector<1x32xf32> to vector<64x32xf32>
    %11 = arith.addf %6, %10 : vector<64x32xf32>
    %cst_9 = arith.constant 5.000000e-01 : f32
    %12 = vector.broadcast %cst_9 : f32 to vector<64x32xf32>
    %13 = arith.mulf %12, %11 : vector<64x32xf32>
    %cst_10 = arith.constant 0.707106769 : f32
    %14 = vector.broadcast %cst_10 : f32 to vector<64x32xf32>
    %15 = arith.mulf %11, %14 : vector<64x32xf32>
    %16 = math.absf %15 : vector<64x32xf32>
    %cst_11 = arith.constant 0.327591091 : f32
    %17 = vector.broadcast %cst_11 : f32 to vector<64x32xf32>
    %18 = arith.mulf %17, %16 : vector<64x32xf32>
    %cst_12 = arith.constant 1.000000e+00 : f32
    %19 = vector.broadcast %cst_12 : f32 to vector<64x32xf32>
    %20 = arith.addf %19, %18 : vector<64x32xf32>
    %21 = tpu.reciprocal %20 {approx = true} : vector<64x32xf32> -> vector<64x32xf32>
    %cst_13 = arith.constant 1.06140542 : f32
    %22 = vector.broadcast %cst_13 : f32 to vector<64x32xf32>
    %23 = arith.mulf %22, %21 : vector<64x32xf32>
    %cst_14 = arith.constant -1.45315206 : f32
    %24 = vector.broadcast %cst_14 : f32 to vector<64x32xf32>
    %25 = arith.addf %23, %24 : vector<64x32xf32>
    %26 = arith.mulf %25, %21 : vector<64x32xf32>
    %cst_15 = arith.constant 1.42141378 : f32
    %27 = vector.broadcast %cst_15 : f32 to vector<64x32xf32>
    %28 = arith.addf %26, %27 : vector<64x32xf32>
    %29 = arith.mulf %28, %21 : vector<64x32xf32>
    %cst_16 = arith.constant -0.284496725 : f32
    %30 = vector.broadcast %cst_16 : f32 to vector<64x32xf32>
    %31 = arith.addf %29, %30 : vector<64x32xf32>
    %32 = arith.mulf %31, %21 : vector<64x32xf32>
    %cst_17 = arith.constant 0.254829586 : f32
    %33 = vector.broadcast %cst_17 : f32 to vector<64x32xf32>
    %34 = arith.addf %32, %33 : vector<64x32xf32>
    %35 = arith.mulf %34, %21 : vector<64x32xf32>
    %cst_18 = arith.constant 0.000000e+00 : f32
    %36 = vector.broadcast %cst_18 : f32 to vector<64x32xf32>
    %37 = arith.subf %36, %16 : vector<64x32xf32>
    %38 = arith.mulf %37, %16 : vector<64x32xf32>
    %39 = math.exp %38 : vector<64x32xf32>
    %40 = arith.mulf %35, %39 : vector<64x32xf32>
    %cst_19 = arith.constant 1.000000e+00 : f32
    %41 = vector.broadcast %cst_19 : f32 to vector<64x32xf32>
    %42 = arith.subf %41, %40 : vector<64x32xf32>
    %cst_20 = arith.constant 0.000000e+00 : f32
    %43 = vector.broadcast %cst_20 : f32 to vector<64x32xf32>
    %44 = arith.cmpf oge, %15, %43 : vector<64x32xf32>
    %cst_21 = arith.constant 0.000000e+00 : f32
    %45 = vector.broadcast %cst_21 : f32 to vector<64x32xf32>
    %46 = arith.subf %45, %42 : vector<64x32xf32>
    %47 = arith.select %44, %42, %46 : vector<64x32xi1>, vector<64x32xf32>
    %cst_22 = arith.constant 1.000000e+00 : f32
    %48 = vector.broadcast %cst_22 : f32 to vector<64x32xf32>
    %49 = arith.addf %48, %47 : vector<64x32xf32>
    %50 = arith.mulf %13, %49 : vector<64x32xf32>
    %51 = arith.truncf %50 : vector<64x32xf32> to vector<64x32xbf16>
    %cst_23 = arith.constant dense<0.000000e+00> : vector<64x32xf32>
    %52 = tpu.matmul %51, %1, %cst_23 {dimension_numbers = #tpu.dot_dimension_numbers<[1], [0], [0], [1], [0, 0, 1, 1], [], []>} : vector<64x32xbf16>, vector<32x32xbf16>, vector<64x32xf32> -> vector<64x32xf32>
    %53 = vector.broadcast %2 : vector<1x32xf32> to vector<64x32xf32>
    %54 = arith.addf %52, %53 : vector<64x32xf32>
    %55 = arith.index_cast %c0_i32 : i32 to index
    %c0_24 = arith.constant 0 : index
    %c0_25 = arith.constant 0 : index
    %56 = vector.load %arg6[%55, %c0_24, %c0_25] : memref<4x64x32xf32, #tpu.memory_space<vmem>>, vector<1x64x32xf32>
    %57 = vector.shape_cast %56 : vector<1x64x32xf32> to vector<64x32xf32>
    %58 = vector.shape_cast %54 : vector<64x32xf32> to vector<1x64x32xf32>
    tpu.vector_store %arg6[%55, %c0_24, %c0_25], %58 {strides = array<i32>} : memref<4x64x32xf32, #tpu.memory_space<vmem>>, vector<1x64x32xf32>,
    %c1_i32 = arith.constant 1 : i32
    %59 = arith.index_cast %c1_i32 : i32 to index
    %c0_26 = arith.constant 0 : index
    %c0_27 = arith.constant 0 : index
    %60 = vector.load %arg2[%59, %c0_26, %c0_27] : memref<4x32x32xbf16, #tpu.memory_space<vmem>>, vector<1x32x32xbf16>
    %61 = vector.shape_cast %60 : vector<1x32x32xbf16> to vector<32x32xbf16>
    %cst_28 = arith.constant dense<0.000000e+00> : vector<64x32xf32>
    %62 = tpu.matmul %0, %61, %cst_28 {dimension_numbers = #tpu.dot_dimension_numbers<[1], [0], [0], [1], [0, 0, 1, 1], [], []>} : vector<64x32xbf16>, vector<32x32xbf16>, vector<64x32xf32> -> vector<64x32xf32>
    %63 = arith.index_cast %c1_i32 : i32 to index
    %c0_29 = arith.constant 0 : index
    %c0_30 = arith.constant 0 : index
    %64 = vector.load %arg3[%63, %c0_29, %c0_30] : memref<4x1x32xf32, #tpu.memory_space<vmem>>, vector<1x1x32xf32>
    %65 = vector.shape_cast %64 : vector<1x1x32xf32> to vector<1x32xf32>
    %66 = vector.broadcast %65 : vector<1x32xf32> to vector<64x32xf32>
    %67 = arith.addf %62, %66 : vector<64x32xf32>
    %cst_31 = arith.constant 5.000000e-01 : f32
    %68 = vector.broadcast %cst_31 : f32 to vector<64x32xf32>
    %69 = arith.mulf %68, %67 : vector<64x32xf32>
    %cst_32 = arith.constant 0.707106769 : f32
    %70 = vector.broadcast %cst_32 : f32 to vector<64x32xf32>
    %71 = arith.mulf %67, %70 : vector<64x32xf32>
    %72 = math.absf %71 : vector<64x32xf32>
    %cst_33 = arith.constant 0.327591091 : f32
    %73 = vector.broadcast %cst_33 : f32 to vector<64x32xf32>
    %74 = arith.mulf %73, %72 : vector<64x32xf32>
    %cst_34 = arith.constant 1.000000e+00 : f32
    %75 = vector.broadcast %cst_34 : f32 to vector<64x32xf32>
    %76 = arith.addf %75, %74 : vector<64x32xf32>
    %77 = tpu.reciprocal %76 {approx = true} : vector<64x32xf32> -> vector<64x32xf32>
    %cst_35 = arith.constant 1.06140542 : f32
    %78 = vector.broadcast %cst_35 : f32 to vector<64x32xf32>
    %79 = arith.mulf %78, %77 : vector<64x32xf32>
    %cst_36 = arith.constant -1.45315206 : f32
    %80 = vector.broadcast %cst_36 : f32 to vector<64x32xf32>
    %81 = arith.addf %79, %80 : vector<64x32xf32>
    %82 = arith.mulf %81, %77 : vector<64x32xf32>
    %cst_37 = arith.constant 1.42141378 : f32
    %83 = vector.broadcast %cst_37 : f32 to vector<64x32xf32>
    %84 = arith.addf %82, %83 : vector<64x32xf32>
    %85 = arith.mulf %84, %77 : vector<64x32xf32>
    %cst_38 = arith.constant -0.284496725 : f32
    %86 = vector.broadcast %cst_38 : f32 to vector<64x32xf32>
    %87 = arith.addf %85, %86 : vector<64x32xf32>
    %88 = arith.mulf %87, %77 : vector<64x32xf32>
    %cst_39 = arith.constant 0.254829586 : f32
    %89 = vector.broadcast %cst_39 : f32 to vector<64x32xf32>
    %90 = arith.addf %88, %89 : vector<64x32xf32>
    %91 = arith.mulf %90, %77 : vector<64x32xf32>
    %cst_40 = arith.constant 0.000000e+00 : f32
    %92 = vector.broadcast %cst_40 : f32 to vector<64x32xf32>
    %93 = arith.subf %92, %72 : vector<64x32xf32>
    %94 = arith.mulf %93, %72 : vector<64x32xf32>
    %95 = math.exp %94 : vector<64x32xf32>
    %96 = arith.mulf %91, %95 : vector<64x32xf32>
    %cst_41 = arith.constant 1.000000e+00 : f32
    %97 = vector.broadcast %cst_41 : f32 to vector<64x32xf32>
    %98 = arith.subf %97, %96 : vector<64x32xf32>
    %cst_42 = arith.constant 0.000000e+00 : f32
    %99 = vector.broadcast %cst_42 : f32 to vector<64x32xf32>
    %100 = arith.cmpf oge, %71, %99 : vector<64x32xf32>
    %cst_43 = arith.constant 0.000000e+00 : f32
    %101 = vector.broadcast %cst_43 : f32 to vector<64x32xf32>
    %102 = arith.subf %101, %98 : vector<64x32xf32>
    %103 = arith.select %100, %98, %102 : vector<64x32xi1>, vector<64x32xf32>
    %cst_44 = arith.constant 1.000000e+00 : f32
    %104 = vector.broadcast %cst_44 : f32 to vector<64x32xf32>
    %105 = arith.addf %104, %103 : vector<64x32xf32>
    %106 = arith.mulf %69, %105 : vector<64x32xf32>
    %107 = arith.truncf %106 : vector<64x32xf32> to vector<64x32xbf16>
    %cst_45 = arith.constant dense<0.000000e+00> : vector<64x32xf32>
    %108 = tpu.matmul %107, %1, %cst_45 {dimension_numbers = #tpu.dot_dimension_numbers<[1], [0], [0], [1], [0, 0, 1, 1], [], []>} : vector<64x32xbf16>, vector<32x32xbf16>, vector<64x32xf32> -> vector<64x32xf32>
    %109 = vector.broadcast %2 : vector<1x32xf32> to vector<64x32xf32>
    %110 = arith.addf %108, %109 : vector<64x32xf32>
    %111 = arith.index_cast %c1_i32 : i32 to index
    %c0_46 = arith.constant 0 : index
    %c0_47 = arith.constant 0 : index
    %112 = vector.load %arg6[%111, %c0_46, %c0_47] : memref<4x64x32xf32, #tpu.memory_space<vmem>>, vector<1x64x32xf32>
    %113 = vector.shape_cast %112 : vector<1x64x32xf32> to vector<64x32xf32>
    %114 = vector.shape_cast %110 : vector<64x32xf32> to vector<1x64x32xf32>
    tpu.vector_store %arg6[%111, %c0_46, %c0_47], %114 {strides = array<i32>} : memref<4x64x32xf32, #tpu.memory_space<vmem>>, vector<1x64x32xf32>,
    %c2_i32 = arith.constant 2 : i32
    %115 = arith.index_cast %c2_i32 : i32 to index
    %c0_48 = arith.constant 0 : index
    %c0_49 = arith.constant 0 : index
    %116 = vector.load %arg2[%115, %c0_48, %c0_49] : memref<4x32x32xbf16, #tpu.memory_space<vmem>>, vector<1x32x32xbf16>
    %117 = vector.shape_cast %116 : vector<1x32x32xbf16> to vector<32x32xbf16>
    %cst_50 = arith.constant dense<0.000000e+00> : vector<64x32xf32>
    %118 = tpu.matmul %0, %117, %cst_50 {dimension_numbers = #tpu.dot_dimension_numbers<[1], [0], [0], [1], [0, 0, 1, 1], [], []>} : vector<64x32xbf16>, vector<32x32xbf16>, vector<64x32xf32> -> vector<64x32xf32>
    %119 = arith.index_cast %c2_i32 : i32 to index
    %c0_51 = arith.constant 0 : index
    %c0_52 = arith.constant 0 : index
    %120 = vector.load %arg3[%119, %c0_51, %c0_52] : memref<4x1x32xf32, #tpu.memory_space<vmem>>, vector<1x1x32xf32>
    %121 = vector.shape_cast %120 : vector<1x1x32xf32> to vector<1x32xf32>
    %122 = vector.broadcast %121 : vector<1x32xf32> to vector<64x32xf32>
    %123 = arith.addf %118, %122 : vector<64x32xf32>
    %cst_53 = arith.constant 5.000000e-01 : f32
    %124 = vector.broadcast %cst_53 : f32 to vector<64x32xf32>
    %125 = arith.mulf %124, %123 : vector<64x32xf32>
    %cst_54 = arith.constant 0.707106769 : f32
    %126 = vector.broadcast %cst_54 : f32 to vector<64x32xf32>
    %127 = arith.mulf %123, %126 : vector<64x32xf32>
    %128 = math.absf %127 : vector<64x32xf32>
    %cst_55 = arith.constant 0.327591091 : f32
    %129 = vector.broadcast %cst_55 : f32 to vector<64x32xf32>
    %130 = arith.mulf %129, %128 : vector<64x32xf32>
    %cst_56 = arith.constant 1.000000e+00 : f32
    %131 = vector.broadcast %cst_56 : f32 to vector<64x32xf32>
    %132 = arith.addf %131, %130 : vector<64x32xf32>
    %133 = tpu.reciprocal %132 {approx = true} : vector<64x32xf32> -> vector<64x32xf32>
    %cst_57 = arith.constant 1.06140542 : f32
    %134 = vector.broadcast %cst_57 : f32 to vector<64x32xf32>
    %135 = arith.mulf %134, %133 : vector<64x32xf32>
    %cst_58 = arith.constant -1.45315206 : f32
    %136 = vector.broadcast %cst_58 : f32 to vector<64x32xf32>
    %137 = arith.addf %135, %136 : vector<64x32xf32>
    %138 = arith.mulf %137, %133 : vector<64x32xf32>
    %cst_59 = arith.constant 1.42141378 : f32
    %139 = vector.broadcast %cst_59 : f32 to vector<64x32xf32>
    %140 = arith.addf %138, %139 : vector<64x32xf32>
    %141 = arith.mulf %140, %133 : vector<64x32xf32>
    %cst_60 = arith.constant -0.284496725 : f32
    %142 = vector.broadcast %cst_60 : f32 to vector<64x32xf32>
    %143 = arith.addf %141, %142 : vector<64x32xf32>
    %144 = arith.mulf %143, %133 : vector<64x32xf32>
    %cst_61 = arith.constant 0.254829586 : f32
    %145 = vector.broadcast %cst_61 : f32 to vector<64x32xf32>
    %146 = arith.addf %144, %145 : vector<64x32xf32>
    %147 = arith.mulf %146, %133 : vector<64x32xf32>
    %cst_62 = arith.constant 0.000000e+00 : f32
    %148 = vector.broadcast %cst_62 : f32 to vector<64x32xf32>
    %149 = arith.subf %148, %128 : vector<64x32xf32>
    %150 = arith.mulf %149, %128 : vector<64x32xf32>
    %151 = math.exp %150 : vector<64x32xf32>
    %152 = arith.mulf %147, %151 : vector<64x32xf32>
    %cst_63 = arith.constant 1.000000e+00 : f32
    %153 = vector.broadcast %cst_63 : f32 to vector<64x32xf32>
    %154 = arith.subf %153, %152 : vector<64x32xf32>
    %cst_64 = arith.constant 0.000000e+00 : f32
    %155 = vector.broadcast %cst_64 : f32 to vector<64x32xf32>
    %156 = arith.cmpf oge, %127, %155 : vector<64x32xf32>
    %cst_65 = arith.constant 0.000000e+00 : f32
    %157 = vector.broadcast %cst_65 : f32 to vector<64x32xf32>
    %158 = arith.subf %157, %154 : vector<64x32xf32>
    %159 = arith.select %156, %154, %158 : vector<64x32xi1>, vector<64x32xf32>
    %cst_66 = arith.constant 1.000000e+00 : f32
    %160 = vector.broadcast %cst_66 : f32 to vector<64x32xf32>
    %161 = arith.addf %160, %159 : vector<64x32xf32>
    %162 = arith.mulf %125, %161 : vector<64x32xf32>
    %163 = arith.truncf %162 : vector<64x32xf32> to vector<64x32xbf16>
    %cst_67 = arith.constant dense<0.000000e+00> : vector<64x32xf32>
    %164 = tpu.matmul %163, %1, %cst_67 {dimension_numbers = #tpu.dot_dimension_numbers<[1], [0], [0], [1], [0, 0, 1, 1], [], []>} : vector<64x32xbf16>, vector<32x32xbf16>, vector<64x32xf32> -> vector<64x32xf32>
    %165 = vector.broadcast %2 : vector<1x32xf32> to vector<64x32xf32>
    %166 = arith.addf %164, %165 : vector<64x32xf32>
    %167 = arith.index_cast %c2_i32 : i32 to index
    %c0_68 = arith.constant 0 : index
    %c0_69 = arith.constant 0 : index
    %168 = vector.load %arg6[%167, %c0_68, %c0_69] : memref<4x64x32xf32, #tpu.memory_space<vmem>>, vector<1x64x32xf32>
    %169 = vector.shape_cast %168 : vector<1x64x32xf32> to vector<64x32xf32>
    %170 = vector.shape_cast %166 : vector<64x32xf32> to vector<1x64x32xf32>
    tpu.vector_store %arg6[%167, %c0_68, %c0_69], %170 {strides = array<i32>} : memref<4x64x32xf32, #tpu.memory_space<vmem>>, vector<1x64x32xf32>,
    %c3_i32 = arith.constant 3 : i32
    %171 = arith.index_cast %c3_i32 : i32 to index
    %c0_70 = arith.constant 0 : index
    %c0_71 = arith.constant 0 : index
    %172 = vector.load %arg2[%171, %c0_70, %c0_71] : memref<4x32x32xbf16, #tpu.memory_space<vmem>>, vector<1x32x32xbf16>
    %173 = vector.shape_cast %172 : vector<1x32x32xbf16> to vector<32x32xbf16>
    %cst_72 = arith.constant dense<0.000000e+00> : vector<64x32xf32>
    %174 = tpu.matmul %0, %173, %cst_72 {dimension_numbers = #tpu.dot_dimension_numbers<[1], [0], [0], [1], [0, 0, 1, 1], [], []>} : vector<64x32xbf16>, vector<32x32xbf16>, vector<64x32xf32> -> vector<64x32xf32>
    %175 = arith.index_cast %c3_i32 : i32 to index
    %c0_73 = arith.constant 0 : index
    %c0_74 = arith.constant 0 : index
    %176 = vector.load %arg3[%175, %c0_73, %c0_74] : memref<4x1x32xf32, #tpu.memory_space<vmem>>, vector<1x1x32xf32>
    %177 = vector.shape_cast %176 : vector<1x1x32xf32> to vector<1x32xf32>
    %178 = vector.broadcast %177 : vector<1x32xf32> to vector<64x32xf32>
    %179 = arith.addf %174, %178 : vector<64x32xf32>
    %cst_75 = arith.constant 5.000000e-01 : f32
    %180 = vector.broadcast %cst_75 : f32 to vector<64x32xf32>
    %181 = arith.mulf %180, %179 : vector<64x32xf32>
    %cst_76 = arith.constant 0.707106769 : f32
    %182 = vector.broadcast %cst_76 : f32 to vector<64x32xf32>
    %183 = arith.mulf %179, %182 : vector<64x32xf32>
    %184 = math.absf %183 : vector<64x32xf32>
    %cst_77 = arith.constant 0.327591091 : f32
    %185 = vector.broadcast %cst_77 : f32 to vector<64x32xf32>
    %186 = arith.mulf %185, %184 : vector<64x32xf32>
    %cst_78 = arith.constant 1.000000e+00 : f32
    %187 = vector.broadcast %cst_78 : f32 to vector<64x32xf32>
    %188 = arith.addf %187, %186 : vector<64x32xf32>
    %189 = tpu.reciprocal %188 {approx = true} : vector<64x32xf32> -> vector<64x32xf32>
    %cst_79 = arith.constant 1.06140542 : f32
    %190 = vector.broadcast %cst_79 : f32 to vector<64x32xf32>
    %191 = arith.mulf %190, %189 : vector<64x32xf32>
    %cst_80 = arith.constant -1.45315206 : f32
    %192 = vector.broadcast %cst_80 : f32 to vector<64x32xf32>
    %193 = arith.addf %191, %192 : vector<64x32xf32>
    %194 = arith.mulf %193, %189 : vector<64x32xf32>
    %cst_81 = arith.constant 1.42141378 : f32
    %195 = vector.broadcast %cst_81 : f32 to vector<64x32xf32>
    %196 = arith.addf %194, %195 : vector<64x32xf32>
    %197 = arith.mulf %196, %189 : vector<64x32xf32>
    %cst_82 = arith.constant -0.284496725 : f32
    %198 = vector.broadcast %cst_82 : f32 to vector<64x32xf32>
    %199 = arith.addf %197, %198 : vector<64x32xf32>
    %200 = arith.mulf %199, %189 : vector<64x32xf32>
    %cst_83 = arith.constant 0.254829586 : f32
    %201 = vector.broadcast %cst_83 : f32 to vector<64x32xf32>
    %202 = arith.addf %200, %201 : vector<64x32xf32>
    %203 = arith.mulf %202, %189 : vector<64x32xf32>
    %cst_84 = arith.constant 0.000000e+00 : f32
    %204 = vector.broadcast %cst_84 : f32 to vector<64x32xf32>
    %205 = arith.subf %204, %184 : vector<64x32xf32>
    %206 = arith.mulf %205, %184 : vector<64x32xf32>
    %207 = math.exp %206 : vector<64x32xf32>
    %208 = arith.mulf %203, %207 : vector<64x32xf32>
    %cst_85 = arith.constant 1.000000e+00 : f32
    %209 = vector.broadcast %cst_85 : f32 to vector<64x32xf32>
    %210 = arith.subf %209, %208 : vector<64x32xf32>
    %cst_86 = arith.constant 0.000000e+00 : f32
    %211 = vector.broadcast %cst_86 : f32 to vector<64x32xf32>
    %212 = arith.cmpf oge, %183, %211 : vector<64x32xf32>
    %cst_87 = arith.constant 0.000000e+00 : f32
    %213 = vector.broadcast %cst_87 : f32 to vector<64x32xf32>
    %214 = arith.subf %213, %210 : vector<64x32xf32>
    %215 = arith.select %212, %210, %214 : vector<64x32xi1>, vector<64x32xf32>
    %cst_88 = arith.constant 1.000000e+00 : f32
    %216 = vector.broadcast %cst_88 : f32 to vector<64x32xf32>
    %217 = arith.addf %216, %215 : vector<64x32xf32>
    %218 = arith.mulf %181, %217 : vector<64x32xf32>
    %219 = arith.truncf %218 : vector<64x32xf32> to vector<64x32xbf16>
    %cst_89 = arith.constant dense<0.000000e+00> : vector<64x32xf32>
    %220 = tpu.matmul %219, %1, %cst_89 {dimension_numbers = #tpu.dot_dimension_numbers<[1], [0], [0], [1], [0, 0, 1, 1], [], []>} : vector<64x32xbf16>, vector<32x32xbf16>, vector<64x32xf32> -> vector<64x32xf32>
    %221 = vector.broadcast %2 : vector<1x32xf32> to vector<64x32xf32>
    %222 = arith.addf %220, %221 : vector<64x32xf32>
    %223 = arith.index_cast %c3_i32 : i32 to index
    %c0_90 = arith.constant 0 : index
    %c0_91 = arith.constant 0 : index
    %224 = vector.load %arg6[%223, %c0_90, %c0_91] : memref<4x64x32xf32, #tpu.memory_space<vmem>>, vector<1x64x32xf32>
    %225 = vector.shape_cast %224 : vector<1x64x32xf32> to vector<64x32xf32>
    %226 = vector.shape_cast %222 : vector<64x32xf32> to vector<1x64x32xf32>
    tpu.vector_store %arg6[%223, %c0_90, %c0_91], %226 {strides = array<i32>} : memref<4x64x32xf32, #tpu.memory_space<vmem>>, vector<1x64x32xf32>,
    %c4_i32 = arith.constant 4 : i32
    return
  }
  func.func @transform_0(%arg0: i32) -> (i32, i32) {
    %c0_i32 = arith.constant 0 : i32
    %c0_i32_0 = arith.constant 0 : i32
    return %arg0, %c0_i32 : i32, i32
  }
  func.func @transform_1(%arg0: i32) -> (i32, i32, i32) {
    %c0_i32 = arith.constant 0 : i32
    %c0_i32_0 = arith.constant 0 : i32
    %c0_i32_1 = arith.constant 0 : i32
    %c0_i32_2 = arith.constant 0 : i32
    return %c0_i32, %c0_i32_0, %c0_i32_1 : i32, i32, i32
  }
  func.func @transform_2(%arg0: i32) -> (i32, i32, i32) {
    %c0_i32 = arith.constant 0 : i32
    %c0_i32_0 = arith.constant 0 : i32
    %c0_i32_1 = arith.constant 0 : i32
    %c0_i32_2 = arith.constant 0 : i32
    return %c0_i32, %c0_i32_0, %c0_i32_1 : i32, i32, i32
  }
  func.func @transform_3(%arg0: i32) -> (i32, i32) {
    %c0_i32 = arith.constant 0 : i32
    %c0_i32_0 = arith.constant 0 : i32
    %c0_i32_1 = arith.constant 0 : i32
    return %c0_i32, %c0_i32_0 : i32, i32
  }
  func.func @transform_4(%arg0: i32) -> (i32, i32) {
    %c0_i32 = arith.constant 0 : i32
    %c0_i32_0 = arith.constant 0 : i32
    %c0_i32_1 = arith.constant 0 : i32
    return %c0_i32, %c0_i32_0 : i32, i32
  }
  func.func @transform_5(%arg0: i32) -> (i32, i32, i32) {
    %c0_i32 = arith.constant 0 : i32
    %c0_i32_0 = arith.constant 0 : i32
    %c0_i32_1 = arith.constant 0 : i32
    return %c0_i32, %arg0, %c0_i32_0 : i32, i32, i32
  }
}

module attributes {stable_mosaic.version = 11 : i64} {
  func.func @_k4_kernel(%arg0: i32, %arg1: memref<64x32xbf16, #tpu.memory_space<vmem>>, %arg2: memref<4x32x32xbf16, #tpu.memory_space<vmem>>, %arg3: memref<4x1x32xf32, #tpu.memory_space<vmem>>, %arg4: memref<32x32xbf16, #tpu.memory_space<vmem>>, %arg5: memref<1x32xf32, #tpu.memory_space<vmem>>, %arg6: memref<4x64x32xf32, #tpu.memory_space<vmem>>) attributes {dimension_semantics = [#tpu.dimension_semantics<parallel>], iteration_bounds = array<i64: 8>, scalar_prefetch = 0 : i64, scratch_operands = 0 : i64, tpu.core_type = #tpu.core_type<tc>, window_params = [{transform_indices = @transform_0, window_bounds = array<i64: 64, 32>}, {pipeline_mode = #tpu.pipeline_mode<synchronous>, transform_indices = @transform_1, window_bounds = array<i64: 4, 32, 32>}, {pipeline_mode = #tpu.pipeline_mode<synchronous>, transform_indices = @transform_2, window_bounds = array<i64: 4, 1, 32>}, {pipeline_mode = #tpu.pipeline_mode<synchronous>, transform_indices = @transform_3, window_bounds = array<i64: 32, 32>}, {pipeline_mode = #tpu.pipeline_mode<synchronous>, transform_indices = @transform_4, window_bounds = array<i64: 1, 32>}, {transform_indices = @transform_5, window_bounds = array<i64: 4, 64, 32>}]} {
    %c0 = arith.constant 0 : index
    %c0_0 = arith.constant 0 : index
    %0 = vector.load %arg1[%c0, %c0_0] : memref<64x32xbf16, #tpu.memory_space<vmem>>, vector<64x32xbf16>
    %c0_1 = arith.constant 0 : index
    %c0_2 = arith.constant 0 : index
    %1 = vector.load %arg4[%c0_1, %c0_2] : memref<32x32xbf16, #tpu.memory_space<vmem>>, vector<32x32xbf16>
    %c0_3 = arith.constant 0 : index
    %c0_4 = arith.constant 0 : index
    %2 = vector.load %arg5[%c0_3, %c0_4] : memref<1x32xf32, #tpu.memory_space<vmem>>, vector<1x32xf32>
    %c0_i32 = arith.constant 0 : i32
    %3 = arith.index_cast %c0_i32 : i32 to index
    %c0_5 = arith.constant 0 : index
    %c0_6 = arith.constant 0 : index
    %4 = vector.load %arg2[%3, %c0_5, %c0_6] : memref<4x32x32xbf16, #tpu.memory_space<vmem>>, vector<1x32x32xbf16>
    %5 = vector.shape_cast %4 : vector<1x32x32xbf16> to vector<32x32xbf16>
    %cst = arith.constant dense<0.000000e+00> : vector<64x32xf32>
    %6 = tpu.matmul %0, %5, %cst {dimension_numbers = #tpu.dot_dimension_numbers<[1], [0], [0], [1], [0, 0, 1, 1], [], []>} : vector<64x32xbf16>, vector<32x32xbf16>, vector<64x32xf32> -> vector<64x32xf32>
    %7 = arith.index_cast %c0_i32 : i32 to index
    %c0_7 = arith.constant 0 : index
    %c0_8 = arith.constant 0 : index
    %8 = vector.load %arg3[%7, %c0_7, %c0_8] : memref<4x1x32xf32, #tpu.memory_space<vmem>>, vector<1x1x32xf32>
    %9 = vector.shape_cast %8 : vector<1x1x32xf32> to vector<1x32xf32>
    %10 = vector.broadcast %9 : vector<1x32xf32> to vector<64x32xf32>
    %11 = arith.addf %6, %10 : vector<64x32xf32>
    %cst_9 = arith.constant 5.000000e-01 : f32
    %12 = vector.broadcast %cst_9 : f32 to vector<64x32xf32>
    %13 = arith.mulf %12, %11 : vector<64x32xf32>
    %cst_10 = arith.constant 0.707106769 : f32
    %14 = vector.broadcast %cst_10 : f32 to vector<64x32xf32>
    %15 = arith.mulf %11, %14 : vector<64x32xf32>
    %16 = math.absf %15 : vector<64x32xf32>
    %cst_11 = arith.constant 0.327591091 : f32
    %17 = vector.broadcast %cst_11 : f32 to vector<64x32xf32>
    %18 = arith.mulf %17, %16 : vector<64x32xf32>
    %cst_12 = arith.constant 1.000000e+00 : f32
    %19 = vector.broadcast %cst_12 : f32 to vector<64x32xf32>
    %20 = arith.addf %19, %18 : vector<64x32xf32>
    %21 = tpu.reciprocal %20 {approx = true} : vector<64x32xf32> -> vector<64x32xf32>
    %cst_13 = arith.constant 1.06140542 : f32
    %22 = vector.broadcast %cst_13 : f32 to vector<64x32xf32>
    %23 = arith.mulf %22, %21 : vector<64x32xf32>
    %cst_14 = arith.constant -1.45315206 : f32
    %24 = vector.broadcast %cst_14 : f32 to vector<64x32xf32>
    %25 = arith.addf %23, %24 : vector<64x32xf32>
    %26 = arith.mulf %25, %21 : vector<64x32xf32>
    %cst_15 = arith.constant 1.42141378 : f32
    %27 = vector.broadcast %cst_15 : f32 to vector<64x32xf32>
    %28 = arith.addf %26, %27 : vector<64x32xf32>
    %29 = arith.mulf %28, %21 : vector<64x32xf32>
    %cst_16 = arith.constant -0.284496725 : f32
    %30 = vector.broadcast %cst_16 : f32 to vector<64x32xf32>
    %31 = arith.addf %29, %30 : vector<64x32xf32>
    %32 = arith.mulf %31, %21 : vector<64x32xf32>
    %cst_17 = arith.constant 0.254829586 : f32
    %33 = vector.broadcast %cst_17 : f32 to vector<64x32xf32>
    %34 = arith.addf %32, %33 : vector<64x32xf32>
    %35 = arith.mulf %34, %21 : vector<64x32xf32>
    %cst_18 = arith.constant 0.000000e+00 : f32
    %36 = vector.broadcast %cst_18 : f32 to vector<64x32xf32>
    %37 = arith.subf %36, %16 : vector<64x32xf32>
    %38 = arith.mulf %37, %16 : vector<64x32xf32>
    %39 = math.exp %38 : vector<64x32xf32>
    %40 = arith.mulf %35, %39 : vector<64x32xf32>
    %cst_19 = arith.constant 1.000000e+00 : f32
    %41 = vector.broadcast %cst_19 : f32 to vector<64x32xf32>
    %42 = arith.subf %41, %40 : vector<64x32xf32>
    %cst_20 = arith.constant 0.000000e+00 : f32
    %43 = vector.broadcast %cst_20 : f32 to vector<64x32xf32>
    %44 = arith.cmpf oge, %15, %43 : vector<64x32xf32>
    %cst_21 = arith.constant 0.000000e+00 : f32
    %45 = vector.broadcast %cst_21 : f32 to vector<64x32xf32>
    %46 = arith.subf %45, %42 : vector<64x32xf32>
    %47 = arith.select %44, %42, %46 : vector<64x32xi1>, vector<64x32xf32>
    %cst_22 = arith.constant 1.000000e+00 : f32
    %48 = vector.broadcast %cst_22 : f32 to vector<64x32xf32>
    %49 = arith.addf %48, %47 : vector<64x32xf32>
    %50 = arith.mulf %13, %49 : vector<64x32xf32>
    %51 = arith.truncf %50 : vector<64x32xf32> to vector<64x32xbf16>
    %cst_23 = arith.constant dense<0.000000e+00> : vector<64x32xf32>
    %52 = tpu.matmul %51, %1, %cst_23 {dimension_numbers = #tpu.dot_dimension_numbers<[1], [0], [0], [1], [0, 0, 1, 1], [], []>} : vector<64x32xbf16>, vector<32x32xbf16>, vector<64x32xf32> -> vector<64x32xf32>
    %53 = vector.broadcast %2 : vector<1x32xf32> to vector<64x32xf32>
    %54 = arith.addf %52, %53 : vector<64x32xf32>
    %55 = arith.index_cast %c0_i32 : i32 to index
    %c0_24 = arith.constant 0 : index
    %c0_25 = arith.constant 0 : index
    %56 = vector.load %arg6[%55, %c0_24, %c0_25] : memref<4x64x32xf32, #tpu.memory_space<vmem>>, vector<1x64x32xf32>
    %57 = vector.shape_cast %56 : vector<1x64x32xf32> to vector<64x32xf32>
    %58 = vector.shape_cast %54 : vector<64x32xf32> to vector<1x64x32xf32>
    tpu.vector_store %arg6[%55, %c0_24, %c0_25], %58 {strides = array<i32>} : memref<4x64x32xf32, #tpu.memory_space<vmem>>, vector<1x64x32xf32>,
    %c1_i32 = arith.constant 1 : i32
    %59 = arith.index_cast %c1_i32 : i32 to index
    %c0_26 = arith.constant 0 : index
    %c0_27 = arith.constant 0 : index
    %60 = vector.load %arg2[%59, %c0_26, %c0_27] : memref<4x32x32xbf16, #tpu.memory_space<vmem>>, vector<1x32x32xbf16>
    %61 = vector.shape_cast %60 : vector<1x32x32xbf16> to vector<32x32xbf16>
    %cst_28 = arith.constant dense<0.000000e+00> : vector<64x32xf32>
    %62 = tpu.matmul %0, %61, %cst_28 {dimension_numbers = #tpu.dot_dimension_numbers<[1], [0], [0], [1], [0, 0, 1, 1], [], []>} : vector<64x32xbf16>, vector<32x32xbf16>, vector<64x32xf32> -> vector<64x32xf32>
    %63 = arith.index_cast %c1_i32 : i32 to index
    %c0_29 = arith.constant 0 : index
    %c0_30 = arith.constant 0 : index
    %64 = vector.load %arg3[%63, %c0_29, %c0_30] : memref<4x1x32xf32, #tpu.memory_space<vmem>>, vector<1x1x32xf32>
    %65 = vector.shape_cast %64 : vector<1x1x32xf32> to vector<1x32xf32>
    %66 = vector.broadcast %65 : vector<1x32xf32> to vector<64x32xf32>
    %67 = arith.addf %62, %66 : vector<64x32xf32>
    %cst_31 = arith.constant 5.000000e-01 : f32
    %68 = vector.broadcast %cst_31 : f32 to vector<64x32xf32>
    %69 = arith.mulf %68, %67 : vector<64x32xf32>
    %cst_32 = arith.constant 0.707106769 : f32
    %70 = vector.broadcast %cst_32 : f32 to vector<64x32xf32>
    %71 = arith.mulf %67, %70 : vector<64x32xf32>
    %72 = math.absf %71 : vector<64x32xf32>
    %cst_33 = arith.constant 0.327591091 : f32
    %73 = vector.broadcast %cst_33 : f32 to vector<64x32xf32>
    %74 = arith.mulf %73, %72 : vector<64x32xf32>
    %cst_34 = arith.constant 1.000000e+00 : f32
    %75 = vector.broadcast %cst_34 : f32 to vector<64x32xf32>
    %76 = arith.addf %75, %74 : vector<64x32xf32>
    %77 = tpu.reciprocal %76 {approx = true} : vector<64x32xf32> -> vector<64x32xf32>
    %cst_35 = arith.constant 1.06140542 : f32
    %78 = vector.broadcast %cst_35 : f32 to vector<64x32xf32>
    %79 = arith.mulf %78, %77 : vector<64x32xf32>
    %cst_36 = arith.constant -1.45315206 : f32
    %80 = vector.broadcast %cst_36 : f32 to vector<64x32xf32>
    %81 = arith.addf %79, %80 : vector<64x32xf32>
    %82 = arith.mulf %81, %77 : vector<64x32xf32>
    %cst_37 = arith.constant 1.42141378 : f32
    %83 = vector.broadcast %cst_37 : f32 to vector<64x32xf32>
    %84 = arith.addf %82, %83 : vector<64x32xf32>
    %85 = arith.mulf %84, %77 : vector<64x32xf32>
    %cst_38 = arith.constant -0.284496725 : f32
    %86 = vector.broadcast %cst_38 : f32 to vector<64x32xf32>
    %87 = arith.addf %85, %86 : vector<64x32xf32>
    %88 = arith.mulf %87, %77 : vector<64x32xf32>
    %cst_39 = arith.constant 0.254829586 : f32
    %89 = vector.broadcast %cst_39 : f32 to vector<64x32xf32>
    %90 = arith.addf %88, %89 : vector<64x32xf32>
    %91 = arith.mulf %90, %77 : vector<64x32xf32>
    %cst_40 = arith.constant 0.000000e+00 : f32
    %92 = vector.broadcast %cst_40 : f32 to vector<64x32xf32>
    %93 = arith.subf %92, %72 : vector<64x32xf32>
    %94 = arith.mulf %93, %72 : vector<64x32xf32>
    %95 = math.exp %94 : vector<64x32xf32>
    %96 = arith.mulf %91, %95 : vector<64x32xf32>
    %cst_41 = arith.constant 1.000000e+00 : f32
    %97 = vector.broadcast %cst_41 : f32 to vector<64x32xf32>
    %98 = arith.subf %97, %96 : vector<64x32xf32>
    %cst_42 = arith.constant 0.000000e+00 : f32
    %99 = vector.broadcast %cst_42 : f32 to vector<64x32xf32>
    %100 = arith.cmpf oge, %71, %99 : vector<64x32xf32>
    %cst_43 = arith.constant 0.000000e+00 : f32
    %101 = vector.broadcast %cst_43 : f32 to vector<64x32xf32>
    %102 = arith.subf %101, %98 : vector<64x32xf32>
    %103 = arith.select %100, %98, %102 : vector<64x32xi1>, vector<64x32xf32>
    %cst_44 = arith.constant 1.000000e+00 : f32
    %104 = vector.broadcast %cst_44 : f32 to vector<64x32xf32>
    %105 = arith.addf %104, %103 : vector<64x32xf32>
    %106 = arith.mulf %69, %105 : vector<64x32xf32>
    %107 = arith.truncf %106 : vector<64x32xf32> to vector<64x32xbf16>
    %cst_45 = arith.constant dense<0.000000e+00> : vector<64x32xf32>
    %108 = tpu.matmul %107, %1, %cst_45 {dimension_numbers = #tpu.dot_dimension_numbers<[1], [0], [0], [1], [0, 0, 1, 1], [], []>} : vector<64x32xbf16>, vector<32x32xbf16>, vector<64x32xf32> -> vector<64x32xf32>
    %109 = vector.broadcast %2 : vector<1x32xf32> to vector<64x32xf32>
    %110 = arith.addf %108, %109 : vector<64x32xf32>
    %111 = arith.index_cast %c1_i32 : i32 to index
    %c0_46 = arith.constant 0 : index
    %c0_47 = arith.constant 0 : index
    %112 = vector.load %arg6[%111, %c0_46, %c0_47] : memref<4x64x32xf32, #tpu.memory_space<vmem>>, vector<1x64x32xf32>
    %113 = vector.shape_cast %112 : vector<1x64x32xf32> to vector<64x32xf32>
    %114 = vector.shape_cast %110 : vector<64x32xf32> to vector<1x64x32xf32>
    tpu.vector_store %arg6[%111, %c0_46, %c0_47], %114 {strides = array<i32>} : memref<4x64x32xf32, #tpu.memory_space<vmem>>, vector<1x64x32xf32>,
    %c2_i32 = arith.constant 2 : i32
    %115 = arith.index_cast %c2_i32 : i32 to index
    %c0_48 = arith.constant 0 : index
    %c0_49 = arith.constant 0 : index
    %116 = vector.load %arg2[%115, %c0_48, %c0_49] : memref<4x32x32xbf16, #tpu.memory_space<vmem>>, vector<1x32x32xbf16>
    %117 = vector.shape_cast %116 : vector<1x32x32xbf16> to vector<32x32xbf16>
    %cst_50 = arith.constant dense<0.000000e+00> : vector<64x32xf32>
    %118 = tpu.matmul %0, %117, %cst_50 {dimension_numbers = #tpu.dot_dimension_numbers<[1], [0], [0], [1], [0, 0, 1, 1], [], []>} : vector<64x32xbf16>, vector<32x32xbf16>, vector<64x32xf32> -> vector<64x32xf32>
    %119 = arith.index_cast %c2_i32 : i32 to index
    %c0_51 = arith.constant 0 : index
    %c0_52 = arith.constant 0 : index
    %120 = vector.load %arg3[%119, %c0_51, %c0_52] : memref<4x1x32xf32, #tpu.memory_space<vmem>>, vector<1x1x32xf32>
    %121 = vector.shape_cast %120 : vector<1x1x32xf32> to vector<1x32xf32>
    %122 = vector.broadcast %121 : vector<1x32xf32> to vector<64x32xf32>
    %123 = arith.addf %118, %122 : vector<64x32xf32>
    %cst_53 = arith.constant 5.000000e-01 : f32
    %124 = vector.broadcast %cst_53 : f32 to vector<64x32xf32>
    %125 = arith.mulf %124, %123 : vector<64x32xf32>
    %cst_54 = arith.constant 0.707106769 : f32
    %126 = vector.broadcast %cst_54 : f32 to vector<64x32xf32>
    %127 = arith.mulf %123, %126 : vector<64x32xf32>
    %128 = math.absf %127 : vector<64x32xf32>
    %cst_55 = arith.constant 0.327591091 : f32
    %129 = vector.broadcast %cst_55 : f32 to vector<64x32xf32>
    %130 = arith.mulf %129, %128 : vector<64x32xf32>
    %cst_56 = arith.constant 1.000000e+00 : f32
    %131 = vector.broadcast %cst_56 : f32 to vector<64x32xf32>
    %132 = arith.addf %131, %130 : vector<64x32xf32>
    %133 = tpu.reciprocal %132 {approx = true} : vector<64x32xf32> -> vector<64x32xf32>
    %cst_57 = arith.constant 1.06140542 : f32
    %134 = vector.broadcast %cst_57 : f32 to vector<64x32xf32>
    %135 = arith.mulf %134, %133 : vector<64x32xf32>
    %cst_58 = arith.constant -1.45315206 : f32
    %136 = vector.broadcast %cst_58 : f32 to vector<64x32xf32>
    %137 = arith.addf %135, %136 : vector<64x32xf32>
    %138 = arith.mulf %137, %133 : vector<64x32xf32>
    %cst_59 = arith.constant 1.42141378 : f32
    %139 = vector.broadcast %cst_59 : f32 to vector<64x32xf32>
    %140 = arith.addf %138, %139 : vector<64x32xf32>
    %141 = arith.mulf %140, %133 : vector<64x32xf32>
    %cst_60 = arith.constant -0.284496725 : f32
    %142 = vector.broadcast %cst_60 : f32 to vector<64x32xf32>
    %143 = arith.addf %141, %142 : vector<64x32xf32>
    %144 = arith.mulf %143, %133 : vector<64x32xf32>
    %cst_61 = arith.constant 0.254829586 : f32
    %145 = vector.broadcast %cst_61 : f32 to vector<64x32xf32>
    %146 = arith.addf %144, %145 : vector<64x32xf32>
    %147 = arith.mulf %146, %133 : vector<64x32xf32>
    %cst_62 = arith.constant 0.000000e+00 : f32
    %148 = vector.broadcast %cst_62 : f32 to vector<64x32xf32>
    %149 = arith.subf %148, %128 : vector<64x32xf32>
    %150 = arith.mulf %149, %128 : vector<64x32xf32>
    %151 = math.exp %150 : vector<64x32xf32>
    %152 = arith.mulf %147, %151 : vector<64x32xf32>
    %cst_63 = arith.constant 1.000000e+00 : f32
    %153 = vector.broadcast %cst_63 : f32 to vector<64x32xf32>
    %154 = arith.subf %153, %152 : vector<64x32xf32>
    %cst_64 = arith.constant 0.000000e+00 : f32
    %155 = vector.broadcast %cst_64 : f32 to vector<64x32xf32>
    %156 = arith.cmpf oge, %127, %155 : vector<64x32xf32>
    %cst_65 = arith.constant 0.000000e+00 : f32
    %157 = vector.broadcast %cst_65 : f32 to vector<64x32xf32>
    %158 = arith.subf %157, %154 : vector<64x32xf32>
    %159 = arith.select %156, %154, %158 : vector<64x32xi1>, vector<64x32xf32>
    %cst_66 = arith.constant 1.000000e+00 : f32
    %160 = vector.broadcast %cst_66 : f32 to vector<64x32xf32>
    %161 = arith.addf %160, %159 : vector<64x32xf32>
    %162 = arith.mulf %125, %161 : vector<64x32xf32>
    %163 = arith.truncf %162 : vector<64x32xf32> to vector<64x32xbf16>
    %cst_67 = arith.constant dense<0.000000e+00> : vector<64x32xf32>
    %164 = tpu.matmul %163, %1, %cst_67 {dimension_numbers = #tpu.dot_dimension_numbers<[1], [0], [0], [1], [0, 0, 1, 1], [], []>} : vector<64x32xbf16>, vector<32x32xbf16>, vector<64x32xf32> -> vector<64x32xf32>
    %165 = vector.broadcast %2 : vector<1x32xf32> to vector<64x32xf32>
    %166 = arith.addf %164, %165 : vector<64x32xf32>
    %167 = arith.index_cast %c2_i32 : i32 to index
    %c0_68 = arith.constant 0 : index
    %c0_69 = arith.constant 0 : index
    %168 = vector.load %arg6[%167, %c0_68, %c0_69] : memref<4x64x32xf32, #tpu.memory_space<vmem>>, vector<1x64x32xf32>
    %169 = vector.shape_cast %168 : vector<1x64x32xf32> to vector<64x32xf32>
    %170 = vector.shape_cast %166 : vector<64x32xf32> to vector<1x64x32xf32>
    tpu.vector_store %arg6[%167, %c0_68, %c0_69], %170 {strides = array<i32>} : memref<4x64x32xf32, #tpu.memory_space<vmem>>, vector<1x64x32xf32>,
    %c3_i32 = arith.constant 3 : i32
    %171 = arith.index_cast %c3_i32 : i32 to index
    %c0_70 = arith.constant 0 : index
    %c0_71 = arith.constant 0 : index
    %172 = vector.load %arg2[%171, %c0_70, %c0_71] : memref<4x32x32xbf16, #tpu.memory_space<vmem>>, vector<1x32x32xbf16>
    %173 = vector.shape_cast %172 : vector<1x32x32xbf16> to vector<32x32xbf16>
    %cst_72 = arith.constant dense<0.000000e+00> : vector<64x32xf32>
    %174 = tpu.matmul %0, %173, %cst_72 {dimension_numbers = #tpu.dot_dimension_numbers<[1], [0], [0], [1], [0, 0, 1, 1], [], []>} : vector<64x32xbf16>, vector<32x32xbf16>, vector<64x32xf32> -> vector<64x32xf32>
    %175 = arith.index_cast %c3_i32 : i32 to index
    %c0_73 = arith.constant 0 : index
    %c0_74 = arith.constant 0 : index
    %176 = vector.load %arg3[%175, %c0_73, %c0_74] : memref<4x1x32xf32, #tpu.memory_space<vmem>>, vector<1x1x32xf32>
    %177 = vector.shape_cast %176 : vector<1x1x32xf32> to vector<1x32xf32>
    %178 = vector.broadcast %177 : vector<1x32xf32> to vector<64x32xf32>
    %179 = arith.addf %174, %178 : vector<64x32xf32>
    %cst_75 = arith.constant 5.000000e-01 : f32
    %180 = vector.broadcast %cst_75 : f32 to vector<64x32xf32>
    %181 = arith.mulf %180, %179 : vector<64x32xf32>
    %cst_76 = arith.constant 0.707106769 : f32
    %182 = vector.broadcast %cst_76 : f32 to vector<64x32xf32>
    %183 = arith.mulf %179, %182 : vector<64x32xf32>
    %184 = math.absf %183 : vector<64x32xf32>
    %cst_77 = arith.constant 0.327591091 : f32
    %185 = vector.broadcast %cst_77 : f32 to vector<64x32xf32>
    %186 = arith.mulf %185, %184 : vector<64x32xf32>
    %cst_78 = arith.constant 1.000000e+00 : f32
    %187 = vector.broadcast %cst_78 : f32 to vector<64x32xf32>
    %188 = arith.addf %187, %186 : vector<64x32xf32>
    %189 = tpu.reciprocal %188 {approx = true} : vector<64x32xf32> -> vector<64x32xf32>
    %cst_79 = arith.constant 1.06140542 : f32
    %190 = vector.broadcast %cst_79 : f32 to vector<64x32xf32>
    %191 = arith.mulf %190, %189 : vector<64x32xf32>
    %cst_80 = arith.constant -1.45315206 : f32
    %192 = vector.broadcast %cst_80 : f32 to vector<64x32xf32>
    %193 = arith.addf %191, %192 : vector<64x32xf32>
    %194 = arith.mulf %193, %189 : vector<64x32xf32>
    %cst_81 = arith.constant 1.42141378 : f32
    %195 = vector.broadcast %cst_81 : f32 to vector<64x32xf32>
    %196 = arith.addf %194, %195 : vector<64x32xf32>
    %197 = arith.mulf %196, %189 : vector<64x32xf32>
    %cst_82 = arith.constant -0.284496725 : f32
    %198 = vector.broadcast %cst_82 : f32 to vector<64x32xf32>
    %199 = arith.addf %197, %198 : vector<64x32xf32>
    %200 = arith.mulf %199, %189 : vector<64x32xf32>
    %cst_83 = arith.constant 0.254829586 : f32
    %201 = vector.broadcast %cst_83 : f32 to vector<64x32xf32>
    %202 = arith.addf %200, %201 : vector<64x32xf32>
    %203 = arith.mulf %202, %189 : vector<64x32xf32>
    %cst_84 = arith.constant 0.000000e+00 : f32
    %204 = vector.broadcast %cst_84 : f32 to vector<64x32xf32>
    %205 = arith.subf %204, %184 : vector<64x32xf32>
    %206 = arith.mulf %205, %184 : vector<64x32xf32>
    %207 = math.exp %206 : vector<64x32xf32>
    %208 = arith.mulf %203, %207 : vector<64x32xf32>
    %cst_85 = arith.constant 1.000000e+00 : f32
    %209 = vector.broadcast %cst_85 : f32 to vector<64x32xf32>
    %210 = arith.subf %209, %208 : vector<64x32xf32>
    %cst_86 = arith.constant 0.000000e+00 : f32
    %211 = vector.broadcast %cst_86 : f32 to vector<64x32xf32>
    %212 = arith.cmpf oge, %183, %211 : vector<64x32xf32>
    %cst_87 = arith.constant 0.000000e+00 : f32
    %213 = vector.broadcast %cst_87 : f32 to vector<64x32xf32>
    %214 = arith.subf %213, %210 : vector<64x32xf32>
    %215 = arith.select %212, %210, %214 : vector<64x32xi1>, vector<64x32xf32>
    %cst_88 = arith.constant 1.000000e+00 : f32
    %216 = vector.broadcast %cst_88 : f32 to vector<64x32xf32>
    %217 = arith.addf %216, %215 : vector<64x32xf32>
    %218 = arith.mulf %181, %217 : vector<64x32xf32>
    %219 = arith.truncf %218 : vector<64x32xf32> to vector<64x32xbf16>
    %cst_89 = arith.constant dense<0.000000e+00> : vector<64x32xf32>
    %220 = tpu.matmul %219, %1, %cst_89 {dimension_numbers = #tpu.dot_dimension_numbers<[1], [0], [0], [1], [0, 0, 1, 1], [], []>} : vector<64x32xbf16>, vector<32x32xbf16>, vector<64x32xf32> -> vector<64x32xf32>
    %221 = vector.broadcast %2 : vector<1x32xf32> to vector<64x32xf32>
    %222 = arith.addf %220, %221 : vector<64x32xf32>
    %223 = arith.index_cast %c3_i32 : i32 to index
    %c0_90 = arith.constant 0 : index
    %c0_91 = arith.constant 0 : index
    %224 = vector.load %arg6[%223, %c0_90, %c0_91] : memref<4x64x32xf32, #tpu.memory_space<vmem>>, vector<1x64x32xf32>
    %225 = vector.shape_cast %224 : vector<1x64x32xf32> to vector<64x32xf32>
    %226 = vector.shape_cast %222 : vector<64x32xf32> to vector<1x64x32xf32>
    tpu.vector_store %arg6[%223, %c0_90, %c0_91], %226 {strides = array<i32>} : memref<4x64x32xf32, #tpu.memory_space<vmem>>, vector<1x64x32xf32>,
    %c4_i32 = arith.constant 4 : i32
    return
  }
  func.func @transform_0(%arg0: i32) -> (i32, i32) {
    %c0_i32 = arith.constant 0 : i32
    %c0_i32_0 = arith.constant 0 : i32
    return %arg0, %c0_i32 : i32, i32
  }
  func.func @transform_1(%arg0: i32) -> (i32, i32, i32) {
    %c0_i32 = arith.constant 0 : i32
    %c0_i32_0 = arith.constant 0 : i32
    %c0_i32_1 = arith.constant 0 : i32
    %c0_i32_2 = arith.constant 0 : i32
    return %c0_i32, %c0_i32_0, %c0_i32_1 : i32, i32, i32
  }
  func.func @transform_2(%arg0: i32) -> (i32, i32, i32) {
    %c0_i32 = arith.constant 0 : i32
    %c0_i32_0 = arith.constant 0 : i32
    %c0_i32_1 = arith.constant 0 : i32
    %c0_i32_2 = arith.constant 0 : i32
    return %c0_i32, %c0_i32_0, %c0_i32_1 : i32, i32, i32
  }
  func.func @transform_3(%arg0: i32) -> (i32, i32) {
    %c0_i32 = arith.constant 0 : i32
    %c0_i32_0 = arith.constant 0 : i32
    %c0_i32_1 = arith.constant 0 : i32
    return %c0_i32, %c0_i32_0 : i32, i32
  }
  func.func @transform_4(%arg0: i32) -> (i32, i32) {
    %c0_i32 = arith.constant 0 : i32
    %c0_i32_0 = arith.constant 0 : i32
    %c0_i32_1 = arith.constant 0 : i32
    return %c0_i32, %c0_i32_0 : i32, i32
  }
  func.func @transform_5(%arg0: i32) -> (i32, i32, i32) {
    %c0_i32 = arith.constant 0 : i32
    %c0_i32_0 = arith.constant 0 : i32
    %c0_i32_1 = arith.constant 0 : i32
    return %c0_i32, %arg0, %c0_i32_0 : i32, i32, i32
  }
}

</mosaic_0001>

<llo_original>
// kernel: tpu_custom_call.1
$region0: #{tpu_custom_call.1}
  #allocation0 [shape = 'u32[]', space=smem, size = 0x4, offset = 0x4, fixed_abs, tag = 'smem constant byte address 0x4 - core index']
  #allocation1 [shape = 'u32[144,128]{1,0:T(1,128)}', space=vmem, size = 0x12000, scoped, tag = 'internal scratch']
  %s0 = inlined_call_operand.vmem [shape: bf16[512,32], index: 0, kind: input, shape index: {}]
  %s1 = inlined_call_operand.vmem [shape: bf16[4,32,32], index: 1, kind: input, shape index: {}]
  %s2 = inlined_call_operand.vmem [shape: f32[4,1,32], index: 2, kind: input, shape index: {}]
  %s3 = inlined_call_operand.vmem [shape: bf16[32,32], index: 3, kind: input, shape index: {}]
  %s4 = inlined_call_operand.vmem [shape: f32[1,32], index: 4, kind: input, shape index: {}]
  %s5 = inlined_call_operand.vmem [shape: f32[4,512,32], index: 5, kind: output, shape index: {}]
  %s6 = sld [smem:[#allocation0]]
  $region87: #{tpu_custom_call.1} parent=0
    _
  %s8 = ssub.s32 1, %s6
  %s9 = scalar_select 0, %s8, %s6
  $region1: #{tpu_custom_call.1} parent=0
    #allocation2 [shape = 'u8[262144]{0}', space=vmem, size = 0x40000, scoped, tag = 'output window, operand 0']
    loop: start=0, step=1, limit=10
    $region2: #{tpu_custom_call.1} parent=1 // loop_pre_header
      _
    $region3: #{tpu_custom_call.1} parent=1 // loop_header
      %s11 = sphi 0, %s15
      %p12 = scmp.ge.s32.totalorder %s11, 10
      %s21 = sphi 0, %s23
      %s24 = sphi 0, %s21
      %s25 = sphi 0, %s24
      %s41 = sphi 0, %s25
      %s45 = sphi 0, %s45
      %s47 = sphi 0, %s45
      %s48 = sphi 0, %s47
      %s62 = sphi 0, %s48
      %s66 = sphi 0, %s66
      %s68 = sphi 0, %s66
      %s69 = sphi 0, %s68
      %s83 = sphi 0, %s69
      %s87 = sphi 0, %s87
      %s89 = sphi 0, %s87
      %s90 = sphi 0, %s89
      %s104 = sphi 0, %s90
      %s108 = sphi 0, %s108
      %s110 = sphi 0, %s108
      %s111 = sphi 0, %s110
      %s125 = sphi 0, %s111
      %s131 = sphi 0, %s133
      %s134 = sphi 0, %s131
      %s135 = sphi 0, %s134
      %s151 = sphi 0, %s135
    $region4: #{tpu_custom_call.1} parent=1 // loop_header_branch
      %14 = sbr.rel (%p12) target = $region8
    $region5: #{tpu_custom_call.1} parent=1 // loop_body
      %s16 = ssub.s32 %s11, 1
      %s17 = ssub.s32 %s11, 2
      %s18 = sadd.s32 %s11, 1
      %s19 = ssub.s32 %s11, %s18
      %p20 = scmp.eq.s32.totalorder %s19, 0
      %s22 = sadd.s32 %s21, 1
      %s23 = scalar_select %p20, %s21, %s22
      %p26 = pneg %p20
      %p27 = scmp.eq.s32.totalorder %s11, 7
      %p28 = por %p26, %p27
      %p29 = scmp.ne.s32.totalorder %s21, %s24
      %p30 = scmp.eq.s32.totalorder %s11, 0
      %p31 = por %p29, %p30
      %p32 = scmp.ne.s32.totalorder %s21, %s24
      %p33 = scmp.eq.s32.totalorder %s16, 7
      %p34 = por %p32, %p33
      %p35 = scmp.ne.s32.totalorder %s24, %s25
      %p36 = scmp.eq.s32.totalorder %s16, 0
      %p37 = por %p35, %p36
      %p38 = scmp.ne.s32.totalorder %s24, %s25
      %p39 = scmp.eq.s32.totalorder %s17, 7
      %p40 = por %p38, %p39
      %p42 = scmp.ne.s32.totalorder %s25, %s41
      %p43 = scmp.eq.s32.totalorder %s17, 0
      %p44 = por %p42, %p43
      %s46 = sadd.s32 %s45, 1
      %p49 = scmp.eq.s32.totalorder %s11, 7
      %p50 = scmp.ne.s32.totalorder %s45, %s47
      %p51 = scmp.eq.s32.totalorder %s11, 0
      %p52 = por %p50, %p51
      %p53 = scmp.ne.s32.totalorder %s45, %s47
      %p54 = scmp.eq.s32.totalorder %s16, 7
      %p55 = por %p53, %p54
      %p56 = scmp.ne.s32.totalorder %s47, %s48
      %p57 = scmp.eq.s32.totalorder %s16, 0
      %p58 = por %p56, %p57
      %p59 = scmp.ne.s32.totalorder %s47, %s48
      %p60 = scmp.eq.s32.totalorder %s17, 7
      %p61 = por %p59, %p60
      %p63 = scmp.ne.s32.totalorder %s48, %s62
      %p64 = scmp.eq.s32.totalorder %s17, 0
      %p65 = por %p63, %p64
      %s67 = sadd.s32 %s66, 1
      %p70 = scmp.eq.s32.totalorder %s11, 7
      %p71 = scmp.ne.s32.totalorder %s66, %s68
      %p72 = scmp.eq.s32.totalorder %s11, 0
      %p73 = por %p71, %p72
      %p74 = scmp.ne.s32.totalorder %s66, %s68
      %p75 = scmp.eq.s32.totalorder %s16, 7
      %p76 = por %p74, %p75
      %p77 = scmp.ne.s32.totalorder %s68, %s69
      %p78 = scmp.eq.s32.totalorder %s16, 0
      %p79 = por %p77, %p78
      %p80 = scmp.ne.s32.totalorder %s68, %s69
      %p81 = scmp.eq.s32.totalorder %s17, 7
      %p82 = por %p80, %p81
      %p84 = scmp.ne.s32.totalorder %s69, %s83
      %p85 = scmp.eq.s32.totalorder %s17, 0
      %p86 = por %p84, %p85
      %s88 = sadd.s32 %s87, 1
      %p91 = scmp.eq.s32.totalorder %s11, 7
      %p92 = scmp.ne.s32.totalorder %s87, %s89
      %p93 = scmp.eq.s32.totalorder %s11, 0
      %p94 = por %p92, %p93
      %p95 = scmp.ne.s32.totalorder %s87, %s89
      %p96 = scmp.eq.s32.totalorder %s16, 7
      %p97 = por %p95, %p96
      %p98 = scmp.ne.s32.totalorder %s89, %s90
      %p99 = scmp.eq.s32.totalorder %s16, 0
      %p100 = por %p98, %p99
      %p101 = scmp.ne.s32.totalorder %s89, %s90
      %p102 = scmp.eq.s32.totalorder %s17, 7
      %p103 = por %p101, %p102
      %p105 = scmp.ne.s32.totalorder %s90, %s104
      %p106 = scmp.eq.s32.totalorder %s17, 0
      %p107 = por %p105, %p106
      %s109 = sadd.s32 %s108, 1
      %p112 = scmp.eq.s32.totalorder %s11, 7
      %p113 = scmp.ne.s32.totalorder %s108, %s110
      %p114 = scmp.eq.s32.totalorder %s11, 0
      %p115 = por %p113, %p114
      %p116 = scmp.ne.s32.totalorder %s108, %s110
      %p117 = scmp.eq.s32.totalorder %s16, 7
      %p118 = por %p116, %p117
      %p119 = scmp.ne.s32.totalorder %s110, %s111
      %p120 = scmp.eq.s32.totalorder %s16, 0
      %p121 = por %p119, %p120
      %p122 = scmp.ne.s32.totalorder %s110, %s111
      %p123 = scmp.eq.s32.totalorder %s17, 7
      %p124 = por %p122, %p123
      %p126 = scmp.ne.s32.totalorder %s111, %s125
      %p127 = scmp.eq.s32.totalorder %s17, 0
      %p128 = por %p126, %p127
      %s129 = ssub.s32 %s11, %s18
      %p130 = scmp.eq.s32.totalorder %s129, 0
      %s132 = sadd.s32 %s131, 1
      %s133 = scalar_select %p130, %s131, %s132
      %p136 = pneg %p130
      %p137 = scmp.eq.s32.totalorder %s11, 7
      %p138 = por %p136, %p137
      %p139 = scmp.ne.s32.totalorder %s131, %s134
      %p140 = scmp.eq.s32.totalorder %s11, 0
      %p141 = por %p139, %p140
      %p142 = scmp.ne.s32.totalorder %s131, %s134
      %p143 = scmp.eq.s32.totalorder %s16, 7
      %p144 = por %p142, %p143
      %p145 = scmp.ne.s32.totalorder %s134, %s135
      %p146 = scmp.eq.s32.totalorder %s16, 0
      %p147 = por %p145, %p146
      %p148 = scmp.ne.s32.totalorder %s134, %s135
      %p149 = scmp.eq.s32.totalorder %s17, 7
      %p150 = por %p148, %p149
      %p152 = scmp.ne.s32.totalorder %s135, %s151
      %p153 = scmp.eq.s32.totalorder %s17, 0
      %p154 = por %p152, %p153
      %p155 = scmp.le.s32.totalorder 1, %s11
      %p156 = scmp.lt.s32.totalorder %s11, 9
      %p157 = pnand %p155, %p156
      %p158 = pneg %p157
      // Predicated region
      $region9: #{tpu_custom_call.1} parent=5 // pred_check
        _
      $region10: #{tpu_custom_call.1} parent=5 // pred_check_branch
        %160 = sbr.rel (%p157) target = $region12
      $region11: #{tpu_custom_call.1} parent=5 // pred_region
        %s161 = ssub.s32 %s11, 1
        // Predicated region
        $region13: #{tpu_custom_call.1} parent=11 // pred_check
          %p162 = pneg %p58
        $region14: #{tpu_custom_call.1} parent=11 // pred_check_branch
          %164 = sbr.rel (%p162) target = $region16
        $region15: #{tpu_custom_call.1} parent=11 // pred_region
          _
        $region16: #{tpu_custom_call.1} parent=11 // pred_fallthru
          _
        // Predicated region
        $region17: #{tpu_custom_call.1} parent=11 // pred_check
          %p165 = pneg %p79
        $region18: #{tpu_custom_call.1} parent=11 // pred_check_branch
          %167 = sbr.rel (%p165) target = $region20
        $region19: #{tpu_custom_call.1} parent=11 // pred_region
          _
        $region20: #{tpu_custom_call.1} parent=11 // pred_fallthru
          _
        // Predicated region
        $region21: #{tpu_custom_call.1} parent=11 // pred_check
          %p168 = pneg %p100
        $region22: #{tpu_custom_call.1} parent=11 // pred_check_branch
          %170 = sbr.rel (%p168) target = $region24
        $region23: #{tpu_custom_call.1} parent=11 // pred_region
          _
        $region24: #{tpu_custom_call.1} parent=11 // pred_fallthru
          _
        // Predicated region
        $region25: #{tpu_custom_call.1} parent=11 // pred_check
          %p171 = pneg %p121
        $region26: #{tpu_custom_call.1} parent=11 // pred_check_branch
          %173 = sbr.rel (%p171) target = $region28
        $region27: #{tpu_custom_call.1} parent=11 // pred_region
          _
        $region28: #{tpu_custom_call.1} parent=11 // pred_fallthru
          _
      $region12: #{tpu_custom_call.1} parent=5 // pred_fallthru
        _
      %p174 = scmp.lt.s32.totalorder %s11, 8
      // Predicated region
      $region29: #{tpu_custom_call.1} parent=5 // pred_check
        %p175 = pneg %p174
      $region30: #{tpu_custom_call.1} parent=5 // pred_check_branch
        %177 = sbr.rel (%p175) target = $region32
      $region31: #{tpu_custom_call.1} parent=5 // pred_region
        // Predicated region
        $region33: #{tpu_custom_call.1} parent=31 // pred_check
          %p178 = pneg %p31
        $region34: #{tpu_custom_call.1} parent=31 // pred_check_branch
          %180 = sbr.rel (%p178) target = $region36
        $region35: #{tpu_custom_call.1} parent=31 // pred_region
          %s181 = smul.u32 8, %s11
          %p182 = scmp.lt.s32.totalorder %s181, 63
          %s183 = scalar_select %p182, %s181, 63
          %s184 = smul.addr %s183, 4
          %s185 = scalar_lea.vmem %s0, %s184
          %s186 = smul.u32 8, %s11
        $region36: #{tpu_custom_call.1} parent=31 // pred_fallthru
          _
      $region32: #{tpu_custom_call.1} parent=5 // pred_fallthru
        _
      %p187 = scmp.le.s32.totalorder 1, %s11
      %p188 = scmp.lt.s32.totalorder %s11, 9
      %p189 = pnand %p187, %p188
      %p190 = pneg %p189
      // Predicated region
      $region37: #{tpu_custom_call.1} parent=5 // pred_check
        _
      $region38: #{tpu_custom_call.1} parent=5 // pred_check_branch
        %192 = sbr.rel (%p189) target = $region40
      $region39: #{tpu_custom_call.1} parent=5 // pred_region
        %s193 = ssub.s32 %s11, 1
        %s194 = smul.u32 8, %s16
        %p195 = scmp.lt.s32.totalorder %s194, 63
        %s196 = scalar_select %p195, %s194, 63
        %s197 = smul.addr %s196, 4
        %s198 = scalar_lea.vmem %s0, %s197
        %p199 = pneg %p37
        %p200 = pneg %p34
        %p201 = pneg %p58
        %p202 = pneg %p55
        %p203 = pneg %p79
        %p204 = pneg %p76
        %p205 = pneg %p100
        %p206 = pneg %p97
        %p207 = pneg %p121
        %p208 = pneg %p118
        %p209 = pneg %p147
        %p210 = pneg %p144
        %s211 = sand.u32 %s134, 1
        %s212 = sand.u32 %s134, 1
        %s213 = smul.addr %s212, 256
        %s214 = scalar_lea.vmem [#allocation2], %s213
        %s215 = smul.u32 8, %s16
        %p216 = scmp.lt.s32.totalorder %s215, 63
        %s217 = scalar_select %p216, %s215, 63
        %s218 = smul.addr %s217, 4
        %s219 = scalar_lea.vmem %s0, %s218
        %s220 = smul.u32 8, %s16
        %s221 = smul.u32 8, %s16
        %v223 = vld [vmem:[%s219] sm:$0xf]
        %v224 = vld [vmem:[%s219 + $0x4] sm:$0xf]
        %v225 = vld [vmem:[%s219 + $0x8] sm:$0xf]
        %v226 = vld [vmem:[%s219 + $0xc] sm:$0xf]
        %v227 = vld [vmem:[%s219 + $0x10] sm:$0xf]
        %v228 = vld [vmem:[%s219 + $0x14] sm:$0xf]
        %v229 = vld [vmem:[%s219 + $0x18] sm:$0xf]
        %v230 = vld [vmem:[%s219 + $0x1c] sm:$0xf]
        %v231 = vld [vmem:[%s3] sm:$0xf]
        %v232 = vld [vmem:[%s3 + $0x4] sm:$0xf]
        %v233 = vld [vmem:[%s3 + $0x8] sm:$0xf]
        %v234 = vld [vmem:[%s3 + $0xc] sm:$0xf]
        %v235 = vld [vmem:[%s4] sm:$0x1]
        %v236 = vld [vmem:[%s1] sm:$0xf]
        %v237 = vld [vmem:[%s1 + $0x4] sm:$0xf]
        %v238 = vld [vmem:[%s1 + $0x8] sm:$0xf]
        %v239 = vld [vmem:[%s1 + $0xc] sm:$0xf]
        %v240 = vld [vmem:[%s2] sm:$0x1]
        %v242 = vlaneseq
        %v243 = vshrl.u32 %v242, 7
        %v244 = vsub.s32 0, %v243
        %v245 = vrot.slane %v240, %v244
        %v255 = vunpack.c.l.b16 %v223
        %v256 = vunpack.c.l.b16 %v224
        %v257 = vunpack.c.l.b16 %v225
        %v258 = vunpack.c.l.b16 %v226
        %v259 = vunpack.c.l.b16 %v227
        %v260 = vunpack.c.l.b16 %v228
        %v261 = vunpack.c.l.b16 %v229
        %v262 = vunpack.c.l.b16 %v230
        %v263 = vpack.c.b16 %v256, %v255
        %v264 = vpack.c.b16 %v258, %v257
        %v265 = vpack.c.b16 %v260, %v259
        %v266 = vpack.c.b16 %v262, %v261
        %v271 = vunpack.c.l.b16 %v236
        %v272 = vunpack.c.l.b16 %v237
        %v273 = vunpack.c.l.b16 %v238
        %v274 = vunpack.c.l.b16 %v239
        %v275 = vpack.c.b16 %v272, %v271
        %v276 = vpack.c.b16 %v274, %v273
        %vm279 = vcmask 261120
        %v281 = vsel %vm279, %v263, 0
        %v284 = vsel %vm279, %v264, 0
        %v287 = vsel %vm279, %v265, 0
        %v290 = vsel %vm279, %v266, 0
        %292 = vmatprep.subr.bf16.mxu0 0
        %293 = vmatpush1.bf16.msra.mxu0 %v275
        %294 = vmatprep.subr.bf16.mxu0 0
        %295 = vmatpush1.bf16.msra.mxu0 %v276
        %296 = vmatprep.subr.bf16.mxu0 0
        %297 = vmatpush1.bf16.msra.mxu0 0
        %298 = vmatprep.subr.bf16.mxu0 0
        %299 = vmatpush1.bf16.msra.mxu0 0
        %300 = vmatprep.subr.bf16.mxu0 0
        %301 = vmatpush1.bf16.msra.mxu0 0
        %302 = vmatprep.subr.bf16.mxu0 0
        %303 = vmatpush1.bf16.msra.mxu0 0
        %304 = vmatprep.subr.bf16.mxu0 0
        %305 = vmatpush1.bf16.msra.mxu0 0
        %306 = vmatprep.subr.bf16.mxu0 0
        %307 = vmatpush1.bf16.msra.mxu0 0
        %308 = vmatprep.subr.bf16.mxu0 0
        %309 = vmatpush1.bf16.msra.mxu0 0
        %310 = vmatprep.subr.bf16.mxu0 0
        %311 = vmatpush1.bf16.msra.mxu0 0
        %312 = vmatprep.subr.bf16.mxu0 0
        %313 = vmatpush1.bf16.msra.mxu0 0
        %314 = vmatprep.subr.bf16.mxu0 0
        %315 = vmatpush1.bf16.msra.mxu0 0
        %316 = vmatprep.subr.bf16.mxu0 0
        %317 = vmatpush1.bf16.msra.mxu0 0
        %318 = vmatprep.subr.bf16.mxu0 0
        %319 = vmatpush1.bf16.msra.mxu0 0
        %320 = vmatprep.subr.bf16.mxu0 0
        %321 = vmatpush1.bf16.msra.mxu0 0
        %322 = vmatprep.subr.bf16.mxu0 0
        %323 = vmatpush1.bf16.msra.mxu0 0
        %324 = vmatprep.mubr.bf16.mxu0 0
        %325 = vmatmul.mubr.bf16.gmra.mrb[0].mxu0 %v281
        %v326 = vpop.f32.mrb[0].mxu0
        %v327 = vadd.f32 %v245, %v326
        %v328 = vpop.f32.mrb[0].mxu0
        %v329 = vpop.f32.mrb[0].mxu0
        %v330 = vadd.f32 %v245, %v329
        %v331 = vpop.f32.mrb[0].mxu0
        %332 = vmatprep.mubr.bf16.mxu0 0
        %333 = vmatmul.mubr.bf16.gmra.mrb[0].mxu0 %v284
        %v334 = vpop.f32.mrb[0].mxu0
        %v335 = vadd.f32 %v245, %v334
        %v336 = vpop.f32.mrb[0].mxu0
        %v337 = vpop.f32.mrb[0].mxu0
        %v338 = vadd.f32 %v245, %v337
        %v339 = vpop.f32.mrb[0].mxu0
        %340 = vmatprep.mubr.bf16.mxu0 0
        %341 = vmatmul.mubr.bf16.gmra.mrb[0].mxu0 %v287
        %v342 = vpop.f32.mrb[0].mxu0
        %v343 = vadd.f32 %v245, %v342
        %v344 = vpop.f32.mrb[0].mxu0
        %v345 = vpop.f32.mrb[0].mxu0
        %v346 = vadd.f32 %v245, %v345
        %v347 = vpop.f32.mrb[0].mxu0
        %348 = vmatprep.mubr.bf16.mxu0 0
        %349 = vmatmul.mubr.bf16.gmra.mrb[0].mxu0 %v290
        %v350 = vpop.f32.mrb[0].mxu0
        %v351 = vadd.f32 %v245, %v350
        %v352 = vpop.f32.mrb[0].mxu0
        %v353 = vpop.f32.mrb[0].mxu0
        %v354 = vadd.f32 %v245, %v353
        %v355 = vpop.f32.mrb[0].mxu0
        %356 = vdwg.mxu0
        %v357 = vmul.f32 %v327, 0.5
        %v358 = vmul.f32 %v330, 0.5
        %v359 = vmul.f32 %v335, 0.5
        %v360 = vmul.f32 %v338, 0.5
        %v361 = vmul.f32 %v343, 0.5
        %v362 = vmul.f32 %v346, 0.5
        %v363 = vmul.f32 %v351, 0.5
        %v364 = vmul.f32 %v354, 0.5
        %v365 = vmul.f32 %v327, 0.70710677
        %v366 = vmul.f32 %v330, 0.70710677
        %v367 = vmul.f32 %v335, 0.70710677
        %v368 = vmul.f32 %v338, 0.70710677
        %v369 = vmul.f32 %v343, 0.70710677
        %v370 = vmul.f32 %v346, 0.70710677
        %v371 = vmul.f32 %v351, 0.70710677
        %v372 = vmul.f32 %v354, 0.70710677
        %v373 = vand.u32 2147483647, %v365
        %v374 = vand.u32 2147483647, %v366
        %v375 = vand.u32 2147483647, %v367
        %v376 = vand.u32 2147483647, %v368
        %v377 = vand.u32 2147483647, %v369
        %v378 = vand.u32 2147483647, %v370
        %v379 = vand.u32 2147483647, %v371
        %v380 = vand.u32 2147483647, %v372
        %v381 = vmul.f32 %v373, 0.3275911
        %v382 = vmul.f32 %v374, 0.3275911
        %v383 = vmul.f32 %v375, 0.3275911
        %v384 = vmul.f32 %v376, 0.3275911
        %v385 = vmul.f32 %v377, 0.3275911
        %v386 = vmul.f32 %v378, 0.3275911
        %v387 = vmul.f32 %v379, 0.3275911
        %v388 = vmul.f32 %v380, 0.3275911
        %v389 = vadd.f32 %v381, 1.0
        %v390 = vadd.f32 %v382, 1.0
        %v391 = vadd.f32 %v383, 1.0
        %v392 = vadd.f32 %v384, 1.0
        %v393 = vadd.f32 %v385, 1.0
        %v394 = vadd.f32 %v386, 1.0
        %v395 = vadd.f32 %v387, 1.0
        %v396 = vadd.f32 %v388, 1.0
        %v397 = vrcp.pop %v389
        %v398 = vrcp.pop %v390
        %v399 = vrcp.pop %v391
        %v400 = vrcp.pop %v392
        %v401 = vrcp.pop %v393
        %v402 = vrcp.pop %v394
        %v403 = vrcp.pop %v395
        %v404 = vrcp.pop %v396
        %v405 = vmul.f32 %v397, 1.0614054
        %v406 = vmul.f32 %v398, 1.0614054
        %v407 = vmul.f32 %v399, 1.0614054
        %v408 = vmul.f32 %v400, 1.0614054
        %v409 = vmul.f32 %v401, 1.0614054
        %v410 = vmul.f32 %v402, 1.0614054
        %v411 = vmul.f32 %v403, 1.0614054
        %v412 = vmul.f32 %v404, 1.0614054
        %v413 = vadd.f32 %v405, -1.4531521
        %v414 = vadd.f32 %v406, -1.4531521
        %v415 = vadd.f32 %v407, -1.4531521
        %v416 = vadd.f32 %v408, -1.4531521
        %v417 = vadd.f32 %v409, -1.4531521
        %v418 = vadd.f32 %v410, -1.4531521
        %v419 = vadd.f32 %v411, -1.4531521
        %v420 = vadd.f32 %v412, -1.4531521
        %v421 = vmul.f32 %v413, %v397
        %v422 = vmul.f32 %v414, %v398
        %v423 = vmul.f32 %v415, %v399
        %v424 = vmul.f32 %v416, %v400
        %v425 = vmul.f32 %v417, %v401
        %v426 = vmul.f32 %v418, %v402
        %v427 = vmul.f32 %v419, %v403
        %v428 = vmul.f32 %v420, %v404
        %v429 = vadd.f32 %v421, 1.4214138
        %v430 = vadd.f32 %v422, 1.4214138
        %v431 = vadd.f32 %v423, 1.4214138
        %v432 = vadd.f32 %v424, 1.4214138
        %v433 = vadd.f32 %v425, 1.4214138
        %v434 = vadd.f32 %v426, 1.4214138
        %v435 = vadd.f32 %v427, 1.4214138
        %v436 = vadd.f32 %v428, 1.4214138
        %v437 = vmul.f32 %v429, %v397
        %v438 = vmul.f32 %v430, %v398
        %v439 = vmul.f32 %v431, %v399
        %v440 = vmul.f32 %v432, %v400
        %v441 = vmul.f32 %v433, %v401
        %v442 = vmul.f32 %v434, %v402
        %v443 = vmul.f32 %v435, %v403
        %v444 = vmul.f32 %v436, %v404
        %v445 = vadd.f32 %v437, -0.28449672
        %v446 = vadd.f32 %v438, -0.28449672
        %v447 = vadd.f32 %v439, -0.28449672
        %v448 = vadd.f32 %v440, -0.28449672
        %v449 = vadd.f32 %v441, -0.28449672
        %v450 = vadd.f32 %v442, -0.28449672
        %v451 = vadd.f32 %v443, -0.28449672
        %v452 = vadd.f32 %v444, -0.28449672
        %v453 = vmul.f32 %v445, %v397
        %v454 = vmul.f32 %v446, %v398
        %v455 = vmul.f32 %v447, %v399
        %v456 = vmul.f32 %v448, %v400
        %v457 = vmul.f32 %v449, %v401
        %v458 = vmul.f32 %v450, %v402
        %v459 = vmul.f32 %v451, %v403
        %v460 = vmul.f32 %v452, %v404
        %v461 = vadd.f32 %v453, 0.2548296
        %v462 = vadd.f32 %v454, 0.2548296
        %v463 = vadd.f32 %v455, 0.2548296
        %v464 = vadd.f32 %v456, 0.2548296
        %v465 = vadd.f32 %v457, 0.2548296
        %v466 = vadd.f32 %v458, 0.2548296
        %v467 = vadd.f32 %v459, 0.2548296
        %v468 = vadd.f32 %v460, 0.2548296
        %v469 = vmul.f32 %v461, %v397
        %v470 = vmul.f32 %v462, %v398
        %v471 = vmul.f32 %v463, %v399
        %v472 = vmul.f32 %v464, %v400
        %v473 = vmul.f32 %v465, %v401
        %v474 = vmul.f32 %v466, %v402
        %v475 = vmul.f32 %v467, %v403
        %v476 = vmul.f32 %v468, %v404
        %v477 = vsub.f32 0.0, %v373
        %v478 = vsub.f32 0.0, %v374
        %v479 = vsub.f32 0.0, %v375
        %v480 = vsub.f32 0.0, %v376
        %v481 = vsub.f32 0.0, %v377
        %v482 = vsub.f32 0.0, %v378
        %v483 = vsub.f32 0.0, %v379
        %v484 = vsub.f32 0.0, %v380
        %v485 = vmul.f32 %v477, %v373
        %v486 = vmul.f32 %v478, %v374
        %v487 = vmul.f32 %v479, %v375
        %v488 = vmul.f32 %v480, %v376
        %v489 = vmul.f32 %v481, %v377
        %v490 = vmul.f32 %v482, %v378
        %v491 = vmul.f32 %v483, %v379
        %v492 = vmul.f32 %v484, %v380
        %v493 = vmul.f32 %v485, 1.442695
        %v494 = vpow.pop %v493
        %v495 = vmul.f32 %v486, 1.442695
        %v496 = vpow.pop %v495
        %v497 = vmul.f32 %v487, 1.442695
        %v498 = vpow.pop %v497
        %v499 = vmul.f32 %v488, 1.442695
        %v500 = vpow.pop %v499
        %v501 = vmul.f32 %v489, 1.442695
        %v502 = vpow.pop %v501
        %v503 = vmul.f32 %v490, 1.442695
        %v504 = vpow.pop %v503
        %v505 = vmul.f32 %v491, 1.442695
        %v506 = vpow.pop %v505
        %v507 = vmul.f32 %v492, 1.442695
        %v508 = vpow.pop %v507
        %v509 = vmul.f32 %v469, %v494
        %v510 = vmul.f32 %v470, %v496
        %v511 = vmul.f32 %v471, %v498
        %v512 = vmul.f32 %v472, %v500
        %v513 = vmul.f32 %v473, %v502
        %v514 = vmul.f32 %v474, %v504
        %v515 = vmul.f32 %v475, %v506
        %v516 = vmul.f32 %v476, %v508
        %v517 = vsub.f32 1.0, %v509
        %v518 = vsub.f32 1.0, %v510
        %v519 = vsub.f32 1.0, %v511
        %v520 = vsub.f32 1.0, %v512
        %v521 = vsub.f32 1.0, %v513
        %v522 = vsub.f32 1.0, %v514
        %v523 = vsub.f32 1.0, %v515
        %v524 = vsub.f32 1.0, %v516
        %vm525 = vcmp.ge.f32.partialorder %v365, 0.0
        %vm526 = vcmp.ge.f32.partialorder %v366, 0.0
        %vm527 = vcmp.ge.f32.partialorder %v367, 0.0
        %vm528 = vcmp.ge.f32.partialorder %v368, 0.0
        %vm529 = vcmp.ge.f32.partialorder %v369, 0.0
        %vm530 = vcmp.ge.f32.partialorder %v370, 0.0
        %vm531 = vcmp.ge.f32.partialorder %v371, 0.0
        %vm532 = vcmp.ge.f32.partialorder %v372, 0.0
        %v533 = vsub.f32 0.0, %v517
        %v534 = vsub.f32 0.0, %v518
        %v535 = vsub.f32 0.0, %v519
        %v536 = vsub.f32 0.0, %v520
        %v537 = vsub.f32 0.0, %v521
        %v538 = vsub.f32 0.0, %v522
        %v539 = vsub.f32 0.0, %v523
        %v540 = vsub.f32 0.0, %v524
        %v541 = vsel %vm525, %v517, %v533
        %v542 = vsel %vm526, %v518, %v534
        %v543 = vsel %vm527, %v519, %v535
        %v544 = vsel %vm528, %v520, %v536
        %v545 = vsel %vm529, %v521, %v537
        %v546 = vsel %vm530, %v522, %v538
        %v547 = vsel %vm531, %v523, %v539
        %v548 = vsel %vm532, %v524, %v540
        %v549 = vadd.f32 %v541, 1.0
        %v550 = vadd.f32 %v542, 1.0
        %v551 = vadd.f32 %v543, 1.0
        %v552 = vadd.f32 %v544, 1.0
        %v553 = vadd.f32 %v545, 1.0
        %v554 = vadd.f32 %v546, 1.0
        %v555 = vadd.f32 %v547, 1.0
        %v556 = vadd.f32 %v548, 1.0
        %v557 = vmul.f32 %v357, %v549
        %v558 = vmul.f32 %v358, %v550
        %v559 = vmul.f32 %v359, %v551
        %v560 = vmul.f32 %v360, %v552
        %v561 = vmul.f32 %v361, %v553
        %v562 = vmul.f32 %v362, %v554
        %v563 = vmul.f32 %v363, %v555
        %v564 = vmul.f32 %v364, %v556
        %v565 = vpack.c.bf16 %v558, %v557
        %v566 = vpack.c.bf16 %v560, %v559
        %v567 = vpack.c.bf16 %v562, %v561
        %v568 = vpack.c.bf16 %v564, %v563
        %v570 = vlaneseq
        %v571 = vshrl.u32 %v570, 7
        %v572 = vsub.s32 0, %v571
        %v573 = vrot.slane %v235, %v572
        %v579 = vunpack.c.l.b16 %v231
        %v580 = vunpack.c.l.b16 %v232
        %v581 = vunpack.c.l.b16 %v233
        %v582 = vunpack.c.l.b16 %v234
        %v583 = vpack.c.b16 %v580, %v579
        %v584 = vpack.c.b16 %v582, %v581
        %v588 = vsel %vm279, %v565, 0
        %v591 = vsel %vm279, %v566, 0
        %v594 = vsel %vm279, %v567, 0
        %v597 = vsel %vm279, %v568, 0
        %599 = vmatprep.subr.bf16.mxu0 0
        %600 = vmatpush1.bf16.msra.mxu0 %v583
        %601 = vmatprep.subr.bf16.mxu0 0
        %602 = vmatpush1.bf16.msra.mxu0 %v584
        %603 = vmatprep.subr.bf16.mxu0 0
        %604 = vmatpush1.bf16.msra.mxu0 0
        %605 = vmatprep.subr.bf16.mxu0 0
        %606 = vmatpush1.bf16.msra.mxu0 0
        %607 = vmatprep.subr.bf16.mxu0 0
        %608 = vmatpush1.bf16.msra.mxu0 0
        %609 = vmatprep.subr.bf16.mxu0 0
        %610 = vmatpush1.bf16.msra.mxu0 0
        %611 = vmatprep.subr.bf16.mxu0 0
        %612 = vmatpush1.bf16.msra.mxu0 0
        %613 = vmatprep.subr.bf16.mxu0 0
        %614 = vmatpush1.bf16.msra.mxu0 0
        %615 = vmatprep.subr.bf16.mxu0 0
        %616 = vmatpush1.bf16.msra.mxu0 0
        %617 = vmatprep.subr.bf16.mxu0 0
        %618 = vmatpush1.bf16.msra.mxu0 0
        %619 = vmatprep.subr.bf16.mxu0 0
        %620 = vmatpush1.bf16.msra.mxu0 0
        %621 = vmatprep.subr.bf16.mxu0 0
        %622 = vmatpush1.bf16.msra.mxu0 0
        %623 = vmatprep.subr.bf16.mxu0 0
        %624 = vmatpush1.bf16.msra.mxu0 0
        %625 = vmatprep.subr.bf16.mxu0 0
        %626 = vmatpush1.bf16.msra.mxu0 0
        %627 = vmatprep.subr.bf16.mxu0 0
        %628 = vmatpush1.bf16.msra.mxu0 0
        %629 = vmatprep.subr.bf16.mxu0 0
        %630 = vmatpush1.bf16.msra.mxu0 0
        %631 = vmatprep.mubr.bf16.mxu0 0
        %632 = vmatmul.mubr.bf16.gmra.mrb[0].mxu0 %v588
        %v633 = vpop.f32.mrb[0].mxu0
        %v634 = vadd.f32 %v573, %v633
        %v635 = vpop.f32.mrb[0].mxu0
        %v636 = vpop.f32.mrb[0].mxu0
        %v637 = vadd.f32 %v573, %v636
        %v638 = vpop.f32.mrb[0].mxu0
        %639 = vmatprep.mubr.bf16.mxu0 0
        %640 = vmatmul.mubr.bf16.gmra.mrb[0].mxu0 %v591
        %v641 = vpop.f32.mrb[0].mxu0
        %v642 = vadd.f32 %v573, %v641
        %v643 = vpop.f32.mrb[0].mxu0
        %v644 = vpop.f32.mrb[0].mxu0
        %v645 = vadd.f32 %v573, %v644
        %v646 = vpop.f32.mrb[0].mxu0
        %647 = vmatprep.mubr.bf16.mxu0 0
        %648 = vmatmul.mubr.bf16.gmra.mrb[0].mxu0 %v594
        %v649 = vpop.f32.mrb[0].mxu0
        %v650 = vadd.f32 %v573, %v649
        %v651 = vpop.f32.mrb[0].mxu0
        %v652 = vpop.f32.mrb[0].mxu0
        %v653 = vadd.f32 %v573, %v652
        %v654 = vpop.f32.mrb[0].mxu0
        %655 = vmatprep.mubr.bf16.mxu0 0
        %656 = vmatmul.mubr.bf16.gmra.mrb[0].mxu0 %v597
        %v657 = vpop.f32.mrb[0].mxu0
        %v658 = vadd.f32 %v573, %v657
        %v659 = vpop.f32.mrb[0].mxu0
        %v660 = vpop.f32.mrb[0].mxu0
        %v661 = vadd.f32 %v573, %v660
        %v662 = vpop.f32.mrb[0].mxu0
        %663 = vdwg.mxu0
        %664 = vst.msk [vmem:[%s214] sm:$0xff] %vm279, %v634
        %665 = vst.msk [vmem:[%s214 + $0x8] sm:$0xff] %vm279, %v637
        %666 = vst.msk [vmem:[%s214 + $0x10] sm:$0xff] %vm279, %v642
        %667 = vst.msk [vmem:[%s214 + $0x18] sm:$0xff] %vm279, %v645
        %668 = vst.msk [vmem:[%s214 + $0x20] sm:$0xff] %vm279, %v650
        %669 = vst.msk [vmem:[%s214 + $0x28] sm:$0xff] %vm279, %v653
        %670 = vst.msk [vmem:[%s214 + $0x30] sm:$0xff] %vm279, %v658
        %671 = vst.msk [vmem:[%s214 + $0x38] sm:$0xff] %vm279, %v661
        %s672 = scalar_lea.vmem %s1, 16
        %v673 = vld [vmem:[%s672] sm:$0xf]
        %v674 = vld [vmem:[%s672 + $0x4] sm:$0xf]
        %v675 = vld [vmem:[%s672 + $0x8] sm:$0xf]
        %v676 = vld [vmem:[%s672 + $0xc] sm:$0xf]
        %s677 = scalar_lea.vmem %s2, 1
        %v678 = vld [vmem:[%s677] sm:$0x1]
        %v680 = vlaneseq
        %v681 = vshrl.u32 %v680, 7
        %v682 = vsub.s32 0, %v681
        %v683 = vrot.slane %v678, %v682
        %v689 = vunpack.c.l.b16 %v673
        %v690 = vunpack.c.l.b16 %v674
        %v691 = vunpack.c.l.b16 %v675
        %v692 = vunpack.c.l.b16 %v676
        %v693 = vpack.c.b16 %v690, %v689
        %v694 = vpack.c.b16 %v692, %v691
        %697 = vmatprep.subr.bf16.mxu0 0
        %698 = vmatpush1.bf16.msra.mxu0 %v693
        %699 = vmatprep.subr.bf16.mxu0 0
        %700 = vmatpush1.bf16.msra.mxu0 %v694
        %701 = vmatprep.subr.bf16.mxu0 0
        %702 = vmatpush1.bf16.msra.mxu0 0
        %703 = vmatprep.subr.bf16.mxu0 0
        %704 = vmatpush1.bf16.msra.mxu0 0
        %705 = vmatprep.subr.bf16.mxu0 0
        %706 = vmatpush1.bf16.msra.mxu0 0
        %707 = vmatprep.subr.bf16.mxu0 0
        %708 = vmatpush1.bf16.msra.mxu0 0
        %709 = vmatprep.subr.bf16.mxu0 0
        %710 = vmatpush1.bf16.msra.mxu0 0
        %711 = vmatprep.subr.bf16.mxu0 0
        %712 = vmatpush1.bf16.msra.mxu0 0
        %713 = vmatprep.subr.bf16.mxu0 0
        %714 = vmatpush1.bf16.msra.mxu0 0
        %715 = vmatprep.subr.bf16.mxu0 0
        %716 = vmatpush1.bf16.msra.mxu0 0
        %717 = vmatprep.subr.bf16.mxu0 0
        %718 = vmatpush1.bf16.msra.mxu0 0
        %719 = vmatprep.subr.bf16.mxu0 0
        %720 = vmatpush1.bf16.msra.mxu0 0
        %721 = vmatprep.subr.bf16.mxu0 0
        %722 = vmatpush1.bf16.msra.mxu0 0
        %723 = vmatprep.subr.bf16.mxu0 0
        %724 = vmatpush1.bf16.msra.mxu0 0
        %725 = vmatprep.subr.bf16.mxu0 0
        %726 = vmatpush1.bf16.msra.mxu0 0
        %727 = vmatprep.subr.bf16.mxu0 0
        %728 = vmatpush1.bf16.msra.mxu0 0
        %729 = vmatprep.mubr.bf16.mxu0 0
        %730 = vmatmul.mubr.bf16.gmra.mrb[0].mxu0 %v281
        %v731 = vpop.f32.mrb[0].mxu0
        %v732 = vadd.f32 %v683, %v731
        %v733 = vpop.f32.mrb[0].mxu0
        %v734 = vpop.f32.mrb[0].mxu0
        %v735 = vadd.f32 %v683, %v734
        %v736 = vpop.f32.mrb[0].mxu0
        %737 = vmatprep.mubr.bf16.mxu0 0
        %738 = vmatmul.mubr.bf16.gmra.mrb[0].mxu0 %v284
        %v739 = vpop.f32.mrb[0].mxu0
        %v740 = vadd.f32 %v683, %v739
        %v741 = vpop.f32.mrb[0].mxu0
        %v742 = vpop.f32.mrb[0].mxu0
        %v743 = vadd.f32 %v683, %v742
        %v744 = vpop.f32.mrb[0].mxu0
        %745 = vmatprep.mubr.bf16.mxu0 0
        %746 = vmatmul.mubr.bf16.gmra.mrb[0].mxu0 %v287
        %v747 = vpop.f32.mrb[0].mxu0
        %v748 = vadd.f32 %v683, %v747
        %v749 = vpop.f32.mrb[0].mxu0
        %v750 = vpop.f32.mrb[0].mxu0
        %v751 = vadd.f32 %v683, %v750
        %v752 = vpop.f32.mrb[0].mxu0
        %753 = vmatprep.mubr.bf16.mxu0 0
        %754 = vmatmul.mubr.bf16.gmra.mrb[0].mxu0 %v290
        %v755 = vpop.f32.mrb[0].mxu0
        %v756 = vadd.f32 %v683, %v755
        %v757 = vpop.f32.mrb[0].mxu0
        %v758 = vpop.f32.mrb[0].mxu0
        %v759 = vadd.f32 %v683, %v758
        %v760 = vpop.f32.mrb[0].mxu0
        %761 = vdwg.mxu0
        %v762 = vmul.f32 %v732, 0.5
        %v763 = vmul.f32 %v735, 0.5
        %v764 = vmul.f32 %v740, 0.5
        %v765 = vmul.f32 %v743, 0.5
        %v766 = vmul.f32 %v748, 0.5
        %v767 = vmul.f32 %v751, 0.5
        %v768 = vmul.f32 %v756, 0.5
        %v769 = vmul.f32 %v759, 0.5
        %v770 = vmul.f32 %v732, 0.70710677
        %v771 = vmul.f32 %v735, 0.70710677
        %v772 = vmul.f32 %v740, 0.70710677
        %v773 = vmul.f32 %v743, 0.70710677
        %v774 = vmul.f32 %v748, 0.70710677
        %v775 = vmul.f32 %v751, 0.70710677
        %v776 = vmul.f32 %v756, 0.70710677
        %v777 = vmul.f32 %v759, 0.70710677
        %v778 = vand.u32 2147483647, %v770
        %v779 = vand.u32 2147483647, %v771
        %v780 = vand.u32 2147483647, %v772
        %v781 = vand.u32 2147483647, %v773
        %v782 = vand.u32 2147483647, %v774
        %v783 = vand.u32 2147483647, %v775
        %v784 = vand.u32 2147483647, %v776
        %v785 = vand.u32 2147483647, %v777
        %v786 = vmul.f32 %v778, 0.3275911
        %v787 = vmul.f32 %v779, 0.3275911
        %v788 = vmul.f32 %v780, 0.3275911
        %v789 = vmul.f32 %v781, 0.3275911
        %v790 = vmul.f32 %v782, 0.3275911
        %v791 = vmul.f32 %v783, 0.3275911
        %v792 = vmul.f32 %v784, 0.3275911
        %v793 = vmul.f32 %v785, 0.3275911
        %v794 = vadd.f32 %v786, 1.0
        %v795 = vadd.f32 %v787, 1.0
        %v796 = vadd.f32 %v788, 1.0
        %v797 = vadd.f32 %v789, 1.0
        %v798 = vadd.f32 %v790, 1.0
        %v799 = vadd.f32 %v791, 1.0
        %v800 = vadd.f32 %v792, 1.0
        %v801 = vadd.f32 %v793, 1.0
        %v802 = vrcp.pop %v794
        %v803 = vrcp.pop %v795
        %v804 = vrcp.pop %v796
        %v805 = vrcp.pop %v797
        %v806 = vrcp.pop %v798
        %v807 = vrcp.pop %v799
        %v808 = vrcp.pop %v800
        %v809 = vrcp.pop %v801
        %v810 = vmul.f32 %v802, 1.0614054
        %v811 = vmul.f32 %v803, 1.0614054
        %v812 = vmul.f32 %v804, 1.0614054
        %v813 = vmul.f32 %v805, 1.0614054
        %v814 = vmul.f32 %v806, 1.0614054
        %v815 = vmul.f32 %v807, 1.0614054
        %v816 = vmul.f32 %v808, 1.0614054
        %v817 = vmul.f32 %v809, 1.0614054
        %v818 = vadd.f32 %v810, -1.4531521
        %v819 = vadd.f32 %v811, -1.4531521
        %v820 = vadd.f32 %v812, -1.4531521
        %v821 = vadd.f32 %v813, -1.4531521
        %v822 = vadd.f32 %v814, -1.4531521
        %v823 = vadd.f32 %v815, -1.4531521
        %v824 = vadd.f32 %v816, -1.4531521
        %v825 = vadd.f32 %v817, -1.4531521
        %v826 = vmul.f32 %v818, %v802
        %v827 = vmul.f32 %v819, %v803
        %v828 = vmul.f32 %v820, %v804
        %v829 = vmul.f32 %v821, %v805
        %v830 = vmul.f32 %v822, %v806
        %v831 = vmul.f32 %v823, %v807
        %v832 = vmul.f32 %v824, %v808
        %v833 = vmul.f32 %v825, %v809
        %v834 = vadd.f32 %v826, 1.4214138
        %v835 = vadd.f32 %v827, 1.4214138
        %v836 = vadd.f32 %v828, 1.4214138
        %v837 = vadd.f32 %v829, 1.4214138
        %v838 = vadd.f32 %v830, 1.4214138
        %v839 = vadd.f32 %v831, 1.4214138
        %v840 = vadd.f32 %v832, 1.4214138
        %v841 = vadd.f32 %v833, 1.4214138
        %v842 = vmul.f32 %v834, %v802
        %v843 = vmul.f32 %v835, %v803
        %v844 = vmul.f32 %v836, %v804
        %v845 = vmul.f32 %v837, %v805
        %v846 = vmul.f32 %v838, %v806
        %v847 = vmul.f32 %v839, %v807
        %v848 = vmul.f32 %v840, %v808
        %v849 = vmul.f32 %v841, %v809
        %v850 = vadd.f32 %v842, -0.28449672
        %v851 = vadd.f32 %v843, -0.28449672
        %v852 = vadd.f32 %v844, -0.28449672
        %v853 = vadd.f32 %v845, -0.28449672
        %v854 = vadd.f32 %v846, -0.28449672
        %v855 = vadd.f32 %v847, -0.28449672
        %v856 = vadd.f32 %v848, -0.28449672
        %v857 = vadd.f32 %v849, -0.28449672
        %v858 = vmul.f32 %v850, %v802
        %v859 = vmul.f32 %v851, %v803
        %v860 = vmul.f32 %v852, %v804
        %v861 = vmul.f32 %v853, %v805
        %v862 = vmul.f32 %v854, %v806
        %v863 = vmul.f32 %v855, %v807
        %v864 = vmul.f32 %v856, %v808
        %v865 = vmul.f32 %v857, %v809
        %v866 = vadd.f32 %v858, 0.2548296
        %v867 = vadd.f32 %v859, 0.2548296
        %v868 = vadd.f32 %v860, 0.2548296
        %v869 = vadd.f32 %v861, 0.2548296
        %v870 = vadd.f32 %v862, 0.2548296
        %v871 = vadd.f32 %v863, 0.2548296
        %v872 = vadd.f32 %v864, 0.2548296
        %v873 = vadd.f32 %v865, 0.2548296
        %v874 = vmul.f32 %v866, %v802
        %v875 = vmul.f32 %v867, %v803
        %v876 = vmul.f32 %v868, %v804
        %v877 = vmul.f32 %v869, %v805
        %v878 = vmul.f32 %v870, %v806
        %v879 = vmul.f32 %v871, %v807
        %v880 = vmul.f32 %v872, %v808
        %v881 = vmul.f32 %v873, %v809
        %v882 = vsub.f32 0.0, %v778
        %v883 = vsub.f32 0.0, %v779
        %v884 = vsub.f32 0.0, %v780
        %v885 = vsub.f32 0.0, %v781
        %v886 = vsub.f32 0.0, %v782
        %v887 = vsub.f32 0.0, %v783
        %v888 = vsub.f32 0.0, %v784
        %v889 = vsub.f32 0.0, %v785
        %v890 = vmul.f32 %v882, %v778
        %v891 = vmul.f32 %v883, %v779
        %v892 = vmul.f32 %v884, %v780
        %v893 = vmul.f32 %v885, %v781
        %v894 = vmul.f32 %v886, %v782
        %v895 = vmul.f32 %v887, %v783
        %v896 = vmul.f32 %v888, %v784
        %v897 = vmul.f32 %v889, %v785
        %v898 = vmul.f32 %v890, 1.442695
        %v899 = vpow.pop %v898
        %v900 = vmul.f32 %v891, 1.442695
        %v901 = vpow.pop %v900
        %v902 = vmul.f32 %v892, 1.442695
        %v903 = vpow.pop %v902
        %v904 = vmul.f32 %v893, 1.442695
        %v905 = vpow.pop %v904
        %v906 = vmul.f32 %v894, 1.442695
        %v907 = vpow.pop %v906
        %v908 = vmul.f32 %v895, 1.442695
        %v909 = vpow.pop %v908
        %v910 = vmul.f32 %v896, 1.442695
        %v911 = vpow.pop %v910
        %v912 = vmul.f32 %v897, 1.442695
        %v913 = vpow.pop %v912
        %v914 = vmul.f32 %v874, %v899
        %v915 = vmul.f32 %v875, %v901
        %v916 = vmul.f32 %v876, %v903
        %v917 = vmul.f32 %v877, %v905
        %v918 = vmul.f32 %v878, %v907
        %v919 = vmul.f32 %v879, %v909
        %v920 = vmul.f32 %v880, %v911
        %v921 = vmul.f32 %v881, %v913
        %v922 = vsub.f32 1.0, %v914
        %v923 = vsub.f32 1.0, %v915
        %v924 = vsub.f32 1.0, %v916
        %v925 = vsub.f32 1.0, %v917
        %v926 = vsub.f32 1.0, %v918
        %v927 = vsub.f32 1.0, %v919
        %v928 = vsub.f32 1.0, %v920
        %v929 = vsub.f32 1.0, %v921
        %vm930 = vcmp.ge.f32.partialorder %v770, 0.0
        %vm931 = vcmp.ge.f32.partialorder %v771, 0.0
        %vm932 = vcmp.ge.f32.partialorder %v772, 0.0
        %vm933 = vcmp.ge.f32.partialorder %v773, 0.0
        %vm934 = vcmp.ge.f32.partialorder %v774, 0.0
        %vm935 = vcmp.ge.f32.partialorder %v775, 0.0
        %vm936 = vcmp.ge.f32.partialorder %v776, 0.0
        %vm937 = vcmp.ge.f32.partialorder %v777, 0.0
        %v938 = vsub.f32 0.0, %v922
        %v939 = vsub.f32 0.0, %v923
        %v940 = vsub.f32 0.0, %v924
        %v941 = vsub.f32 0.0, %v925
        %v942 = vsub.f32 0.0, %v926
        %v943 = vsub.f32 0.0, %v927
        %v944 = vsub.f32 0.0, %v928
        %v945 = vsub.f32 0.0, %v929
        %v946 = vsel %vm930, %v922, %v938
        %v947 = vsel %vm931, %v923, %v939
        %v948 = vsel %vm932, %v924, %v940
        %v949 = vsel %vm933, %v925, %v941
        %v950 = vsel %vm934, %v926, %v942
        %v951 = vsel %vm935, %v927, %v943
        %v952 = vsel %vm936, %v928, %v944
        %v953 = vsel %vm937, %v929, %v945
        %v954 = vadd.f32 %v946, 1.0
        %v955 = vadd.f32 %v947, 1.0
        %v956 = vadd.f32 %v948, 1.0
        %v957 = vadd.f32 %v949, 1.0
        %v958 = vadd.f32 %v950, 1.0
        %v959 = vadd.f32 %v951, 1.0
        %v960 = vadd.f32 %v952, 1.0
        %v961 = vadd.f32 %v953, 1.0
        %v962 = vmul.f32 %v762, %v954
        %v963 = vmul.f32 %v763, %v955
        %v964 = vmul.f32 %v764, %v956
        %v965 = vmul.f32 %v765, %v957
        %v966 = vmul.f32 %v766, %v958
        %v967 = vmul.f32 %v767, %v959
        %v968 = vmul.f32 %v768, %v960
        %v969 = vmul.f32 %v769, %v961
        %v970 = vpack.c.bf16 %v963, %v962
        %v971 = vpack.c.bf16 %v965, %v964
        %v972 = vpack.c.bf16 %v967, %v966
        %v973 = vpack.c.bf16 %v969, %v968
        %v975 = vsel %vm279, %v970, 0
        %v978 = vsel %vm279, %v971, 0
        %v981 = vsel %vm279, %v972, 0
        %v984 = vsel %vm279, %v973, 0
        %986 = vmatprep.subr.bf16.mxu0 0
        %987 = vmatpush1.bf16.msra.mxu0 %v583
        %988 = vmatprep.subr.bf16.mxu0 0
        %989 = vmatpush1.bf16.msra.mxu0 %v584
        %990 = vmatprep.subr.bf16.mxu0 0
        %991 = vmatpush1.bf16.msra.mxu0 0
        %992 = vmatprep.subr.bf16.mxu0 0
        %993 = vmatpush1.bf16.msra.mxu0 0
        %994 = vmatprep.subr.bf16.mxu0 0
        %995 = vmatpush1.bf16.msra.mxu0 0
        %996 = vmatprep.subr.bf16.mxu0 0
        %997 = vmatpush1.bf16.msra.mxu0 0
        %998 = vmatprep.subr.bf16.mxu0 0
        %999 = vmatpush1.bf16.msra.mxu0 0
        %1000 = vmatprep.subr.bf16.mxu0 0
        %1001 = vmatpush1.bf16.msra.mxu0 0
        %1002 = vmatprep.subr.bf16.mxu0 0
        %1003 = vmatpush1.bf16.msra.mxu0 0
        %1004 = vmatprep.subr.bf16.mxu0 0
        %1005 = vmatpush1.bf16.msra.mxu0 0
        %1006 = vmatprep.subr.bf16.mxu0 0
        %1007 = vmatpush1.bf16.msra.mxu0 0
        %1008 = vmatprep.subr.bf16.mxu0 0
        %1009 = vmatpush1.bf16.msra.mxu0 0
        %1010 = vmatprep.subr.bf16.mxu0 0
        %1011 = vmatpush1.bf16.msra.mxu0 0
        %1012 = vmatprep.subr.bf16.mxu0 0
        %1013 = vmatpush1.bf16.msra.mxu0 0
        %1014 = vmatprep.subr.bf16.mxu0 0
        %1015 = vmatpush1.bf16.msra.mxu0 0
        %1016 = vmatprep.subr.bf16.mxu0 0
        %1017 = vmatpush1.bf16.msra.mxu0 0
        %1018 = vmatprep.mubr.bf16.mxu0 0
        %1019 = vmatmul.mubr.bf16.gmra.mrb[0].mxu0 %v975
        %v1020 = vpop.f32.mrb[0].mxu0
        %v1021 = vadd.f32 %v573, %v1020
        %v1022 = vpop.f32.mrb[0].mxu0
        %v1023 = vpop.f32.mrb[0].mxu0
        %v1024 = vadd.f32 %v573, %v1023
        %v1025 = vpop.f32.mrb[0].mxu0
        %1026 = vmatprep.mubr.bf16.mxu0 0
        %1027 = vmatmul.mubr.bf16.gmra.mrb[0].mxu0 %v978
        %v1028 = vpop.f32.mrb[0].mxu0
        %v1029 = vadd.f32 %v573, %v1028
        %v1030 = vpop.f32.mrb[0].mxu0
        %v1031 = vpop.f32.mrb[0].mxu0
        %v1032 = vadd.f32 %v573, %v1031
        %v1033 = vpop.f32.mrb[0].mxu0
        %1034 = vmatprep.mubr.bf16.mxu0 0
        %1035 = vmatmul.mubr.bf16.gmra.mrb[0].mxu0 %v981
        %v1036 = vpop.f32.mrb[0].mxu0
        %v1037 = vadd.f32 %v573, %v1036
        %v1038 = vpop.f32.mrb[0].mxu0
        %v1039 = vpop.f32.mrb[0].mxu0
        %v1040 = vadd.f32 %v573, %v1039
        %v1041 = vpop.f32.mrb[0].mxu0
        %1042 = vmatprep.mubr.bf16.mxu0 0
        %1043 = vmatmul.mubr.bf16.gmra.mrb[0].mxu0 %v984
        %v1044 = vpop.f32.mrb[0].mxu0
        %v1045 = vadd.f32 %v573, %v1044
        %v1046 = vpop.f32.mrb[0].mxu0
        %v1047 = vpop.f32.mrb[0].mxu0
        %v1048 = vadd.f32 %v573, %v1047
        %v1049 = vpop.f32.mrb[0].mxu0
        %1050 = vdwg.mxu0
        %s1051 = scalar_lea.vmem %s214, 64 [#allocation2]
        %1052 = vst.msk [vmem:[%s1051] sm:$0xff] %vm279, %v1021
        %1053 = vst.msk [vmem:[%s1051 + $0x8] sm:$0xff] %vm279, %v1024
        %1054 = vst.msk [vmem:[%s1051 + $0x10] sm:$0xff] %vm279, %v1029
        %1055 = vst.msk [vmem:[%s1051 + $0x18] sm:$0xff] %vm279, %v1032
        %1056 = vst.msk [vmem:[%s1051 + $0x20] sm:$0xff] %vm279, %v1037
        %1057 = vst.msk [vmem:[%s1051 + $0x28] sm:$0xff] %vm279, %v1040
        %1058 = vst.msk [vmem:[%s1051 + $0x30] sm:$0xff] %vm279, %v1045
        %1059 = vst.msk [vmem:[%s1051 + $0x38] sm:$0xff] %vm279, %v1048
        %s1060 = scalar_lea.vmem %s1, 32
        %v1061 = vld [vmem:[%s1060] sm:$0xf]
        %v1062 = vld [vmem:[%s1060 + $0x4] sm:$0xf]
        %v1063 = vld [vmem:[%s1060 + $0x8] sm:$0xf]
        %v1064 = vld [vmem:[%s1060 + $0xc] sm:$0xf]
        %s1065 = scalar_lea.vmem %s2, 2
        %v1066 = vld [vmem:[%s1065] sm:$0x1]
        %v1068 = vlaneseq
        %v1069 = vshrl.u32 %v1068, 7
        %v1070 = vsub.s32 0, %v1069
        %v1071 = vrot.slane %v1066, %v1070
        %v1077 = vunpack.c.l.b16 %v1061
        %v1078 = vunpack.c.l.b16 %v1062
        %v1079 = vunpack.c.l.b16 %v1063
        %v1080 = vunpack.c.l.b16 %v1064
        %v1081 = vpack.c.b16 %v1078, %v1077
        %v1082 = vpack.c.b16 %v1080, %v1079
        %1085 = vmatprep.subr.bf16.mxu0 0
        %1086 = vmatpush1.bf16.msra.mxu0 %v1081
        %1087 = vmatprep.subr.bf16.mxu0 0
        %1088 = vmatpush1.bf16.msra.mxu0 %v1082
        %1089 = vmatprep.subr.bf16.mxu0 0
        %1090 = vmatpush1.bf16.msra.mxu0 0
        %1091 = vmatprep.subr.bf16.mxu0 0
        %1092 = vmatpush1.bf16.msra.mxu0 0
        %1093 = vmatprep.subr.bf16.mxu0 0
        %1094 = vmatpush1.bf16.msra.mxu0 0
        %1095 = vmatprep.subr.bf16.mxu0 0
        %1096 = vmatpush1.bf16.msra.mxu0 0
        %1097 = vmatprep.subr.bf16.mxu0 0
        %1098 = vmatpush1.bf16.msra.mxu0 0
        %1099 = vmatprep.subr.bf16.mxu0 0
        %1100 = vmatpush1.bf16.msra.mxu0 0
        %1101 = vmatprep.subr.bf16.mxu0 0
        %1102 = vmatpush1.bf16.msra.mxu0 0
        %1103 = vmatprep.subr.bf16.mxu0 0
        %1104 = vmatpush1.bf16.msra.mxu0 0
        %1105 = vmatprep.subr.bf16.mxu0 0
        %1106 = vmatpush1.bf16.msra.mxu0 0
        %1107 = vmatprep.subr.bf16.mxu0 0
        %1108 = vmatpush1.bf16.msra.mxu0 0
        %1109 = vmatprep.subr.bf16.mxu0 0
        %1110 = vmatpush1.bf16.msra.mxu0 0
        %1111 = vmatprep.subr.bf16.mxu0 0
        %1112 = vmatpush1.bf16.msra.mxu0 0
        %1113 = vmatprep.subr.bf16.mxu0 0
        %1114 = vmatpush1.bf16.msra.mxu0 0
        %1115 = vmatprep.subr.bf16.mxu0 0
        %1116 = vmatpush1.bf16.msra.mxu0 0
        %1117 = vmatprep.mubr.bf16.mxu0 0
        %1118 = vmatmul.mubr.bf16.gmra.mrb[0].mxu0 %v281
        %v1119 = vpop.f32.mrb[0].mxu0
        %v1120 = vadd.f32 %v1071, %v1119
        %v1121 = vpop.f32.mrb[0].mxu0
        %v1122 = vpop.f32.mrb[0].mxu0
        %v1123 = vadd.f32 %v1071, %v1122
        %v1124 = vpop.f32.mrb[0].mxu0
        %1125 = vmatprep.mubr.bf16.mxu0 0
        %1126 = vmatmul.mubr.bf16.gmra.mrb[0].mxu0 %v284
        %v1127 = vpop.f32.mrb[0].mxu0
        %v1128 = vadd.f32 %v1071, %v1127
        %v1129 = vpop.f32.mrb[0].mxu0
        %v1130 = vpop.f32.mrb[0].mxu0
        %v1131 = vadd.f32 %v1071, %v1130
        %v1132 = vpop.f32.mrb[0].mxu0
        %1133 = vmatprep.mubr.bf16.mxu0 0
        %1134 = vmatmul.mubr.bf16.gmra.mrb[0].mxu0 %v287
        %v1135 = vpop.f32.mrb[0].mxu0
        %v1136 = vadd.f32 %v1071, %v1135
        %v1137 = vpop.f32.mrb[0].mxu0
        %v1138 = vpop.f32.mrb[0].mxu0
        %v1139 = vadd.f32 %v1071, %v1138
        %v1140 = vpop.f32.mrb[0].mxu0
        %1141 = vmatprep.mubr.bf16.mxu0 0
        %1142 = vmatmul.mubr.bf16.gmra.mrb[0].mxu0 %v290
        %v1143 = vpop.f32.mrb[0].mxu0
        %v1144 = vadd.f32 %v1071, %v1143
        %v1145 = vpop.f32.mrb[0].mxu0
        %v1146 = vpop.f32.mrb[0].mxu0
        %v1147 = vadd.f32 %v1071, %v1146
        %v1148 = vpop.f32.mrb[0].mxu0
        %1149 = vdwg.mxu0
        %v1150 = vmul.f32 %v1120, 0.5
        %v1151 = vmul.f32 %v1123, 0.5
        %v1152 = vmul.f32 %v1128, 0.5
        %v1153 = vmul.f32 %v1131, 0.5
        %v1154 = vmul.f32 %v1136, 0.5
        %v1155 = vmul.f32 %v1139, 0.5
        %v1156 = vmul.f32 %v1144, 0.5
        %v1157 = vmul.f32 %v1147, 0.5
        %v1158 = vmul.f32 %v1120, 0.70710677
        %v1159 = vmul.f32 %v1123, 0.70710677
        %v1160 = vmul.f32 %v1128, 0.70710677
        %v1161 = vmul.f32 %v1131, 0.70710677
        %v1162 = vmul.f32 %v1136, 0.70710677
        %v1163 = vmul.f32 %v1139, 0.70710677
        %v1164 = vmul.f32 %v1144, 0.70710677
        %v1165 = vmul.f32 %v1147, 0.70710677
        %v1166 = vand.u32 2147483647, %v1158
        %v1167 = vand.u32 2147483647, %v1159
        %v1168 = vand.u32 2147483647, %v1160
        %v1169 = vand.u32 2147483647, %v1161
        %v1170 = vand.u32 2147483647, %v1162
        %v1171 = vand.u32 2147483647, %v1163
        %v1172 = vand.u32 2147483647, %v1164
        %v1173 = vand.u32 2147483647, %v1165
        %v1174 = vmul.f32 %v1166, 0.3275911
        %v1175 = vmul.f32 %v1167, 0.3275911
        %v1176 = vmul.f32 %v1168, 0.3275911
        %v1177 = vmul.f32 %v1169, 0.3275911
        %v1178 = vmul.f32 %v1170, 0.3275911
        %v1179 = vmul.f32 %v1171, 0.3275911
        %v1180 = vmul.f32 %v1172, 0.3275911
        %v1181 = vmul.f32 %v1173, 0.3275911
        %v1182 = vadd.f32 %v1174, 1.0
        %v1183 = vadd.f32 %v1175, 1.0
        %v1184 = vadd.f32 %v1176, 1.0
        %v1185 = vadd.f32 %v1177, 1.0
        %v1186 = vadd.f32 %v1178, 1.0
        %v1187 = vadd.f32 %v1179, 1.0
        %v1188 = vadd.f32 %v1180, 1.0
        %v1189 = vadd.f32 %v1181, 1.0
        %v1190 = vrcp.pop %v1182
        %v1191 = vrcp.pop %v1183
        %v1192 = vrcp.pop %v1184
        %v1193 = vrcp.pop %v1185
        %v1194 = vrcp.pop %v1186
        %v1195 = vrcp.pop %v1187
        %v1196 = vrcp.pop %v1188
        %v1197 = vrcp.pop %v1189
        %v1198 = vmul.f32 %v1190, 1.0614054
        %v1199 = vmul.f32 %v1191, 1.0614054
        %v1200 = vmul.f32 %v1192, 1.0614054
        %v1201 = vmul.f32 %v1193, 1.0614054
        %v1202 = vmul.f32 %v1194, 1.0614054
        %v1203 = vmul.f32 %v1195, 1.0614054
        %v1204 = vmul.f32 %v1196, 1.0614054
        %v1205 = vmul.f32 %v1197, 1.0614054
        %v1206 = vadd.f32 %v1198, -1.4531521
        %v1207 = vadd.f32 %v1199, -1.4531521
        %v1208 = vadd.f32 %v1200, -1.4531521
        %v1209 = vadd.f32 %v1201, -1.4531521
        %v1210 = vadd.f32 %v1202, -1.4531521
        %v1211 = vadd.f32 %v1203, -1.4531521
        %v1212 = vadd.f32 %v1204, -1.4531521
        %v1213 = vadd.f32 %v1205, -1.4531521
        %v1214 = vmul.f32 %v1206, %v1190
        %v1215 = vmul.f32 %v1207, %v1191
        %v1216 = vmul.f32 %v1208, %v1192
        %v1217 = vmul.f32 %v1209, %v1193
        %v1218 = vmul.f32 %v1210, %v1194
        %v1219 = vmul.f32 %v1211, %v1195
        %v1220 = vmul.f32 %v1212, %v1196
        %v1221 = vmul.f32 %v1213, %v1197
        %v1222 = vadd.f32 %v1214, 1.4214138
        %v1223 = vadd.f32 %v1215, 1.4214138
        %v1224 = vadd.f32 %v1216, 1.4214138
        %v1225 = vadd.f32 %v1217, 1.4214138
        %v1226 = vadd.f32 %v1218, 1.4214138
        %v1227 = vadd.f32 %v1219, 1.4214138
        %v1228 = vadd.f32 %v1220, 1.4214138
        %v1229 = vadd.f32 %v1221, 1.4214138
        %v1230 = vmul.f32 %v1222, %v1190
        %v1231 = vmul.f32 %v1223, %v1191
        %v1232 = vmul.f32 %v1224, %v1192
        %v1233 = vmul.f32 %v1225, %v1193
        %v1234 = vmul.f32 %v1226, %v1194
        %v1235 = vmul.f32 %v1227, %v1195
        %v1236 = vmul.f32 %v1228, %v1196
        %v1237 = vmul.f32 %v1229, %v1197
        %v1238 = vadd.f32 %v1230, -0.28449672
        %v1239 = vadd.f32 %v1231, -0.28449672
        %v1240 = vadd.f32 %v1232, -0.28449672
        %v1241 = vadd.f32 %v1233, -0.28449672
        %v1242 = vadd.f32 %v1234, -0.28449672
        %v1243 = vadd.f32 %v1235, -0.28449672
        %v1244 = vadd.f32 %v1236, -0.28449672
        %v1245 = vadd.f32 %v1237, -0.28449672
        %v1246 = vmul.f32 %v1238, %v1190
        %v1247 = vmul.f32 %v1239, %v1191
        %v1248 = vmul.f32 %v1240, %v1192
        %v1249 = vmul.f32 %v1241, %v1193
        %v1250 = vmul.f32 %v1242, %v1194
        %v1251 = vmul.f32 %v1243, %v1195
        %v1252 = vmul.f32 %v1244, %v1196
        %v1253 = vmul.f32 %v1245, %v1197
        %v1254 = vadd.f32 %v1246, 0.2548296
        %v1255 = vadd.f32 %v1247, 0.2548296
        %v1256 = vadd.f32 %v1248, 0.2548296
        %v1257 = vadd.f32 %v1249, 0.2548296
        %v1258 = vadd.f32 %v1250, 0.2548296
        %v1259 = vadd.f32 %v1251, 0.2548296
        %v1260 = vadd.f32 %v1252, 0.2548296
        %v1261 = vadd.f32 %v1253, 0.2548296
        %v1262 = vmul.f32 %v1254, %v1190
        %v1263 = vmul.f32 %v1255, %v1191
        %v1264 = vmul.f32 %v1256, %v1192
        %v1265 = vmul.f32 %v1257, %v1193
        %v1266 = vmul.f32 %v1258, %v1194
        %v1267 = vmul.f32 %v1259, %v1195
        %v1268 = vmul.f32 %v1260, %v1196
        %v1269 = vmul.f32 %v1261, %v1197
        %v1270 = vsub.f32 0.0, %v1166
        %v1271 = vsub.f32 0.0, %v1167
        %v1272 = vsub.f32 0.0, %v1168
        %v1273 = vsub.f32 0.0, %v1169
        %v1274 = vsub.f32 0.0, %v1170
        %v1275 = vsub.f32 0.0, %v1171
        %v1276 = vsub.f32 0.0, %v1172
        %v1277 = vsub.f32 0.0, %v1173
        %v1278 = vmul.f32 %v1270, %v1166
        %v1279 = vmul.f32 %v1271, %v1167
        %v1280 = vmul.f32 %v1272, %v1168
        %v1281 = vmul.f32 %v1273, %v1169
        %v1282 = vmul.f32 %v1274, %v1170
        %v1283 = vmul.f32 %v1275, %v1171
        %v1284 = vmul.f32 %v1276, %v1172
        %v1285 = vmul.f32 %v1277, %v1173
        %v1286 = vmul.f32 %v1278, 1.442695
        %v1287 = vpow.pop %v1286
        %v1288 = vmul.f32 %v1279, 1.442695
        %v1289 = vpow.pop %v1288
        %v1290 = vmul.f32 %v1280, 1.442695
        %v1291 = vpow.pop %v1290
        %v1292 = vmul.f32 %v1281, 1.442695
        %v1293 = vpow.pop %v1292
        %v1294 = vmul.f32 %v1282, 1.442695
        %v1295 = vpow.pop %v1294
        %v1296 = vmul.f32 %v1283, 1.442695
        %v1297 = vpow.pop %v1296
        %v1298 = vmul.f32 %v1284, 1.442695
        %v1299 = vpow.pop %v1298
        %v1300 = vmul.f32 %v1285, 1.442695
        %v1301 = vpow.pop %v1300
        %v1302 = vmul.f32 %v1262, %v1287
        %v1303 = vmul.f32 %v1263, %v1289
        %v1304 = vmul.f32 %v1264, %v1291
        %v1305 = vmul.f32 %v1265, %v1293
        %v1306 = vmul.f32 %v1266, %v1295
        %v1307 = vmul.f32 %v1267, %v1297
        %v1308 = vmul.f32 %v1268, %v1299
        %v1309 = vmul.f32 %v1269, %v1301
        %v1310 = vsub.f32 1.0, %v1302
        %v1311 = vsub.f32 1.0, %v1303
        %v1312 = vsub.f32 1.0, %v1304
        %v1313 = vsub.f32 1.0, %v1305
        %v1314 = vsub.f32 1.0, %v1306
        %v1315 = vsub.f32 1.0, %v1307
        %v1316 = vsub.f32 1.0, %v1308
        %v1317 = vsub.f32 1.0, %v1309
        %vm1318 = vcmp.ge.f32.partialorder %v1158, 0.0
        %vm1319 = vcmp.ge.f32.partialorder %v1159, 0.0
        %vm1320 = vcmp.ge.f32.partialorder %v1160, 0.0
        %vm1321 = vcmp.ge.f32.partialorder %v1161, 0.0
        %vm1322 = vcmp.ge.f32.partialorder %v1162, 0.0
        %vm1323 = vcmp.ge.f32.partialorder %v1163, 0.0
        %vm1324 = vcmp.ge.f32.partialorder %v1164, 0.0
        %vm1325 = vcmp.ge.f32.partialorder %v1165, 0.0
        %v1326 = vsub.f32 0.0, %v1310
        %v1327 = vsub.f32 0.0, %v1311
        %v1328 = vsub.f32 0.0, %v1312
        %v1329 = vsub.f32 0.0, %v1313
        %v1330 = vsub.f32 0.0, %v1314
        %v1331 = vsub.f32 0.0, %v1315
        %v1332 = vsub.f32 0.0, %v1316
        %v1333 = vsub.f32 0.0, %v1317
        %v1334 = vsel %vm1318, %v1310, %v1326
        %v1335 = vsel %vm1319, %v1311, %v1327
        %v1336 = vsel %vm1320, %v1312, %v1328
        %v1337 = vsel %vm1321, %v1313, %v1329
        %v1338 = vsel %vm1322, %v1314, %v1330
        %v1339 = vsel %vm1323, %v1315, %v1331
        %v1340 = vsel %vm1324, %v1316, %v1332
        %v1341 = vsel %vm1325, %v1317, %v1333
        %v1342 = vadd.f32 %v1334, 1.0
        %v1343 = vadd.f32 %v1335, 1.0
        %v1344 = vadd.f32 %v1336, 1.0
        %v1345 = vadd.f32 %v1337, 1.0
        %v1346 = vadd.f32 %v1338, 1.0
        %v1347 = vadd.f32 %v1339, 1.0
        %v1348 = vadd.f32 %v1340, 1.0
        %v1349 = vadd.f32 %v1341, 1.0
        %v1350 = vmul.f32 %v1150, %v1342
        %v1351 = vmul.f32 %v1151, %v1343
        %v1352 = vmul.f32 %v1152, %v1344
        %v1353 = vmul.f32 %v1153, %v1345
        %v1354 = vmul.f32 %v1154, %v1346
        %v1355 = vmul.f32 %v1155, %v1347
        %v1356 = vmul.f32 %v1156, %v1348
        %v1357 = vmul.f32 %v1157, %v1349
        %v1358 = vpack.c.bf16 %v1351, %v1350
        %v1359 = vpack.c.bf16 %v1353, %v1352
        %v1360 = vpack.c.bf16 %v1355, %v1354
        %v1361 = vpack.c.bf16 %v1357, %v1356
        %v1363 = vsel %vm279, %v1358, 0
        %v1366 = vsel %vm279, %v1359, 0
        %v1369 = vsel %vm279, %v1360, 0
        %v1372 = vsel %vm279, %v1361, 0
        %1374 = vmatprep.subr.bf16.mxu0 0
        %1375 = vmatpush1.bf16.msra.mxu0 %v583
        %1376 = vmatprep.subr.bf16.mxu0 0
        %1377 = vmatpush1.bf16.msra.mxu0 %v584
        %1378 = vmatprep.subr.bf16.mxu0 0
        %1379 = vmatpush1.bf16.msra.mxu0 0
        %1380 = vmatprep.subr.bf16.mxu0 0
        %1381 = vmatpush1.bf16.msra.mxu0 0
        %1382 = vmatprep.subr.bf16.mxu0 0
        %1383 = vmatpush1.bf16.msra.mxu0 0
        %1384 = vmatprep.subr.bf16.mxu0 0
        %1385 = vmatpush1.bf16.msra.mxu0 0
        %1386 = vmatprep.subr.bf16.mxu0 0
        %1387 = vmatpush1.bf16.msra.mxu0 0
        %1388 = vmatprep.subr.bf16.mxu0 0
        %1389 = vmatpush1.bf16.msra.mxu0 0
        %1390 = vmatprep.subr.bf16.mxu0 0
        %1391 = vmatpush1.bf16.msra.mxu0 0
        %1392 = vmatprep.subr.bf16.mxu0 0
        %1393 = vmatpush1.bf16.msra.mxu0 0
        %1394 = vmatprep.subr.bf16.mxu0 0
        %1395 = vmatpush1.bf16.msra.mxu0 0
        %1396 = vmatprep.subr.bf16.mxu0 0
        %1397 = vmatpush1.bf16.msra.mxu0 0
        %1398 = vmatprep.subr.bf16.mxu0 0
        %1399 = vmatpush1.bf16.msra.mxu0 0
        %1400 = vmatprep.subr.bf16.mxu0 0
        %1401 = vmatpush1.bf16.msra.mxu0 0
        %1402 = vmatprep.subr.bf16.mxu0 0
        %1403 = vmatpush1.bf16.msra.mxu0 0
        %1404 = vmatprep.subr.bf16.mxu0 0
        %1405 = vmatpush1.bf16.msra.mxu0 0
        %1406 = vmatprep.mubr.bf16.mxu0 0
        %1407 = vmatmul.mubr.bf16.gmra.mrb[0].mxu0 %v1363
        %v1408 = vpop.f32.mrb[0].mxu0
        %v1409 = vadd.f32 %v573, %v1408
        %v1410 = vpop.f32.mrb[0].mxu0
        %v1411 = vpop.f32.mrb[0].mxu0
        %v1412 = vadd.f32 %v573, %v1411
        %v1413 = vpop.f32.mrb[0].mxu0
        %1414 = vmatprep.mubr.bf16.mxu0 0
        %1415 = vmatmul.mubr.bf16.gmra.mrb[0].mxu0 %v1366
        %v1416 = vpop.f32.mrb[0].mxu0
        %v1417 = vadd.f32 %v573, %v1416
        %v1418 = vpop.f32.mrb[0].mxu0
        %v1419 = vpop.f32.mrb[0].mxu0
        %v1420 = vadd.f32 %v573, %v1419
        %v1421 = vpop.f32.mrb[0].mxu0
        %1422 = vmatprep.mubr.bf16.mxu0 0
        %1423 = vmatmul.mubr.bf16.gmra.mrb[0].mxu0 %v1369
        %v1424 = vpop.f32.mrb[0].mxu0
        %v1425 = vadd.f32 %v573, %v1424
        %v1426 = vpop.f32.mrb[0].mxu0
        %v1427 = vpop.f32.mrb[0].mxu0
        %v1428 = vadd.f32 %v573, %v1427
        %v1429 = vpop.f32.mrb[0].mxu0
        %1430 = vmatprep.mubr.bf16.mxu0 0
        %1431 = vmatmul.mubr.bf16.gmra.mrb[0].mxu0 %v1372
        %v1432 = vpop.f32.mrb[0].mxu0
        %v1433 = vadd.f32 %v573, %v1432
        %v1434 = vpop.f32.mrb[0].mxu0
        %v1435 = vpop.f32.mrb[0].mxu0
        %v1436 = vadd.f32 %v573, %v1435
        %v1437 = vpop.f32.mrb[0].mxu0
        %1438 = vdwg.mxu0
        %s1439 = scalar_lea.vmem %s214, 128 [#allocation2]
        %1440 = vst.msk [vmem:[%s1439] sm:$0xff] %vm279, %v1409
        %1441 = vst.msk [vmem:[%s1439 + $0x8] sm:$0xff] %vm279, %v1412
        %1442 = vst.msk [vmem:[%s1439 + $0x10] sm:$0xff] %vm279, %v1417
        %1443 = vst.msk [vmem:[%s1439 + $0x18] sm:$0xff] %vm279, %v1420
        %1444 = vst.msk [vmem:[%s1439 + $0x20] sm:$0xff] %vm279, %v1425
        %1445 = vst.msk [vmem:[%s1439 + $0x28] sm:$0xff] %vm279, %v1428
        %1446 = vst.msk [vmem:[%s1439 + $0x30] sm:$0xff] %vm279, %v1433
        %1447 = vst.msk [vmem:[%s1439 + $0x38] sm:$0xff] %vm279, %v1436
        %s1448 = scalar_lea.vmem %s1, 48
        %v1449 = vld [vmem:[%s1448] sm:$0xf]
        %v1450 = vld [vmem:[%s1448 + $0x4] sm:$0xf]
        %v1451 = vld [vmem:[%s1448 + $0x8] sm:$0xf]
        %v1452 = vld [vmem:[%s1448 + $0xc] sm:$0xf]
        %s1453 = scalar_lea.vmem %s2, 3
        %v1454 = vld [vmem:[%s1453] sm:$0x1]
        %v1456 = vlaneseq
        %v1457 = vshrl.u32 %v1456, 7
        %v1458 = vsub.s32 0, %v1457
        %v1459 = vrot.slane %v1454, %v1458
        %v1465 = vunpack.c.l.b16 %v1449
        %v1466 = vunpack.c.l.b16 %v1450
        %v1467 = vunpack.c.l.b16 %v1451
        %v1468 = vunpack.c.l.b16 %v1452
        %v1469 = vpack.c.b16 %v1466, %v1465
        %v1470 = vpack.c.b16 %v1468, %v1467
        %1473 = vmatprep.subr.bf16.mxu0 0
        %1474 = vmatpush1.bf16.msra.mxu0 %v1469
        %1475 = vmatprep.subr.bf16.mxu0 0
        %1476 = vmatpush1.bf16.msra.mxu0 %v1470
        %1477 = vmatprep.subr.bf16.mxu0 0
        %1478 = vmatpush1.bf16.msra.mxu0 0
        %1479 = vmatprep.subr.bf16.mxu0 0
        %1480 = vmatpush1.bf16.msra.mxu0 0
        %1481 = vmatprep.subr.bf16.mxu0 0
        %1482 = vmatpush1.bf16.msra.mxu0 0
        %1483 = vmatprep.subr.bf16.mxu0 0
        %1484 = vmatpush1.bf16.msra.mxu0 0
        %1485 = vmatprep.subr.bf16.mxu0 0
        %1486 = vmatpush1.bf16.msra.mxu0 0
        %1487 = vmatprep.subr.bf16.mxu0 0
        %1488 = vmatpush1.bf16.msra.mxu0 0
        %1489 = vmatprep.subr.bf16.mxu0 0
        %1490 = vmatpush1.bf16.msra.mxu0 0
        %1491 = vmatprep.subr.bf16.mxu0 0
        %1492 = vmatpush1.bf16.msra.mxu0 0
        %1493 = vmatprep.subr.bf16.mxu0 0
        %1494 = vmatpush1.bf16.msra.mxu0 0
        %1495 = vmatprep.subr.bf16.mxu0 0
        %1496 = vmatpush1.bf16.msra.mxu0 0
        %1497 = vmatprep.subr.bf16.mxu0 0
        %1498 = vmatpush1.bf16.msra.mxu0 0
        %1499 = vmatprep.subr.bf16.mxu0 0
        %1500 = vmatpush1.bf16.msra.mxu0 0
        %1501 = vmatprep.subr.bf16.mxu0 0
        %1502 = vmatpush1.bf16.msra.mxu0 0
        %1503 = vmatprep.subr.bf16.mxu0 0
        %1504 = vmatpush1.bf16.msra.mxu0 0
        %1505 = vmatprep.mubr.bf16.mxu0 0
        %1506 = vmatmul.mubr.bf16.gmra.mrb[0].mxu0 %v281
        %v1507 = vpop.f32.mrb[0].mxu0
        %v1508 = vadd.f32 %v1459, %v1507
        %v1509 = vpop.f32.mrb[0].mxu0
        %v1510 = vpop.f32.mrb[0].mxu0
        %v1511 = vadd.f32 %v1459, %v1510
        %v1512 = vpop.f32.mrb[0].mxu0
        %1513 = vmatprep.mubr.bf16.mxu0 0
        %1514 = vmatmul.mubr.bf16.gmra.mrb[0].mxu0 %v284
        %v1515 = vpop.f32.mrb[0].mxu0
        %v1516 = vadd.f32 %v1459, %v1515
        %v1517 = vpop.f32.mrb[0].mxu0
        %v1518 = vpop.f32.mrb[0].mxu0
        %v1519 = vadd.f32 %v1459, %v1518
        %v1520 = vpop.f32.mrb[0].mxu0
        %1521 = vmatprep.mubr.bf16.mxu0 0
        %1522 = vmatmul.mubr.bf16.gmra.mrb[0].mxu0 %v287
        %v1523 = vpop.f32.mrb[0].mxu0
        %v1524 = vadd.f32 %v1459, %v1523
        %v1525 = vpop.f32.mrb[0].mxu0
        %v1526 = vpop.f32.mrb[0].mxu0
        %v1527 = vadd.f32 %v1459, %v1526
        %v1528 = vpop.f32.mrb[0].mxu0
        %1529 = vmatprep.mubr.bf16.mxu0 0
        %1530 = vmatmul.mubr.bf16.gmra.mrb[0].mxu0 %v290
        %v1531 = vpop.f32.mrb[0].mxu0
        %v1532 = vadd.f32 %v1459, %v1531
        %v1533 = vpop.f32.mrb[0].mxu0
        %v1534 = vpop.f32.mrb[0].mxu0
        %v1535 = vadd.f32 %v1459, %v1534
        %v1536 = vpop.f32.mrb[0].mxu0
        %1537 = vdwg.mxu0
        %v1538 = vmul.f32 %v1508, 0.5
        %v1539 = vmul.f32 %v1511, 0.5
        %v1540 = vmul.f32 %v1516, 0.5
        %v1541 = vmul.f32 %v1519, 0.5
        %v1542 = vmul.f32 %v1524, 0.5
        %v1543 = vmul.f32 %v1527, 0.5
        %v1544 = vmul.f32 %v1532, 0.5
        %v1545 = vmul.f32 %v1535, 0.5
        %v1546 = vmul.f32 %v1508, 0.70710677
        %v1547 = vmul.f32 %v1511, 0.70710677
        %v1548 = vmul.f32 %v1516, 0.70710677
        %v1549 = vmul.f32 %v1519, 0.70710677
        %v1550 = vmul.f32 %v1524, 0.70710677
        %v1551 = vmul.f32 %v1527, 0.70710677
        %v1552 = vmul.f32 %v1532, 0.70710677
        %v1553 = vmul.f32 %v1535, 0.70710677
        %v1554 = vand.u32 2147483647, %v1546
        %v1555 = vand.u32 2147483647, %v1547
        %v1556 = vand.u32 2147483647, %v1548
        %v1557 = vand.u32 2147483647, %v1549
        %v1558 = vand.u32 2147483647, %v1550
        %v1559 = vand.u32 2147483647, %v1551
        %v1560 = vand.u32 2147483647, %v1552
        %v1561 = vand.u32 2147483647, %v1553
        %v1562 = vmul.f32 %v1554, 0.3275911
        %v1563 = vmul.f32 %v1555, 0.3275911
        %v1564 = vmul.f32 %v1556, 0.3275911
        %v1565 = vmul.f32 %v1557, 0.3275911
        %v1566 = vmul.f32 %v1558, 0.3275911
        %v1567 = vmul.f32 %v1559, 0.3275911
        %v1568 = vmul.f32 %v1560, 0.3275911
        %v1569 = vmul.f32 %v1561, 0.3275911
        %v1570 = vadd.f32 %v1562, 1.0
        %v1571 = vadd.f32 %v1563, 1.0
        %v1572 = vadd.f32 %v1564, 1.0
        %v1573 = vadd.f32 %v1565, 1.0
        %v1574 = vadd.f32 %v1566, 1.0
        %v1575 = vadd.f32 %v1567, 1.0
        %v1576 = vadd.f32 %v1568, 1.0
        %v1577 = vadd.f32 %v1569, 1.0
        %v1578 = vrcp.pop %v1570
        %v1579 = vrcp.pop %v1571
        %v1580 = vrcp.pop %v1572
        %v1581 = vrcp.pop %v1573
        %v1582 = vrcp.pop %v1574
        %v1583 = vrcp.pop %v1575
        %v1584 = vrcp.pop %v1576
        %v1585 = vrcp.pop %v1577
        %v1586 = vmul.f32 %v1578, 1.0614054
        %v1587 = vmul.f32 %v1579, 1.0614054
        %v1588 = vmul.f32 %v1580, 1.0614054
        %v1589 = vmul.f32 %v1581, 1.0614054
        %v1590 = vmul.f32 %v1582, 1.0614054
        %v1591 = vmul.f32 %v1583, 1.0614054
        %v1592 = vmul.f32 %v1584, 1.0614054
        %v1593 = vmul.f32 %v1585, 1.0614054
        %v1594 = vadd.f32 %v1586, -1.4531521
        %v1595 = vadd.f32 %v1587, -1.4531521
        %v1596 = vadd.f32 %v1588, -1.4531521
        %v1597 = vadd.f32 %v1589, -1.4531521
        %v1598 = vadd.f32 %v1590, -1.4531521
        %v1599 = vadd.f32 %v1591, -1.4531521
        %v1600 = vadd.f32 %v1592, -1.4531521
        %v1601 = vadd.f32 %v1593, -1.4531521
        %v1602 = vmul.f32 %v1594, %v1578
        %v1603 = vmul.f32 %v1595, %v1579
        %v1604 = vmul.f32 %v1596, %v1580
        %v1605 = vmul.f32 %v1597, %v1581
        %v1606 = vmul.f32 %v1598, %v1582
        %v1607 = vmul.f32 %v1599, %v1583
        %v1608 = vmul.f32 %v1600, %v1584
        %v1609 = vmul.f32 %v1601, %v1585
        %v1610 = vadd.f32 %v1602, 1.4214138
        %v1611 = vadd.f32 %v1603, 1.4214138
        %v1612 = vadd.f32 %v1604, 1.4214138
        %v1613 = vadd.f32 %v1605, 1.4214138
        %v1614 = vadd.f32 %v1606, 1.4214138
        %v1615 = vadd.f32 %v1607, 1.4214138
        %v1616 = vadd.f32 %v1608, 1.4214138
        %v1617 = vadd.f32 %v1609, 1.4214138
        %v1618 = vmul.f32 %v1610, %v1578
        %v1619 = vmul.f32 %v1611, %v1579
        %v1620 = vmul.f32 %v1612, %v1580
        %v1621 = vmul.f32 %v1613, %v1581
        %v1622 = vmul.f32 %v1614, %v1582
        %v1623 = vmul.f32 %v1615, %v1583
        %v1624 = vmul.f32 %v1616, %v1584
        %v1625 = vmul.f32 %v1617, %v1585
        %v1626 = vadd.f32 %v1618, -0.28449672
        %v1627 = vadd.f32 %v1619, -0.28449672
        %v1628 = vadd.f32 %v1620, -0.28449672
        %v1629 = vadd.f32 %v1621, -0.28449672
        %v1630 = vadd.f32 %v1622, -0.28449672
        %v1631 = vadd.f32 %v1623, -0.28449672
        %v1632 = vadd.f32 %v1624, -0.28449672
        %v1633 = vadd.f32 %v1625, -0.28449672
        %v1634 = vmul.f32 %v1626, %v1578
        %v1635 = vmul.f32 %v1627, %v1579
        %v1636 = vmul.f32 %v1628, %v1580
        %v1637 = vmul.f32 %v1629, %v1581
        %v1638 = vmul.f32 %v1630, %v1582
        %v1639 = vmul.f32 %v1631, %v1583
        %v1640 = vmul.f32 %v1632, %v1584
        %v1641 = vmul.f32 %v1633, %v1585
        %v1642 = vadd.f32 %v1634, 0.2548296
        %v1643 = vadd.f32 %v1635, 0.2548296
        %v1644 = vadd.f32 %v1636, 0.2548296
        %v1645 = vadd.f32 %v1637, 0.2548296
        %v1646 = vadd.f32 %v1638, 0.2548296
        %v1647 = vadd.f32 %v1639, 0.2548296
        %v1648 = vadd.f32 %v1640, 0.2548296
        %v1649 = vadd.f32 %v1641, 0.2548296
        %v1650 = vmul.f32 %v1642, %v1578
        %v1651 = vmul.f32 %v1643, %v1579
        %v1652 = vmul.f32 %v1644, %v1580
        %v1653 = vmul.f32 %v1645, %v1581
        %v1654 = vmul.f32 %v1646, %v1582
        %v1655 = vmul.f32 %v1647, %v1583
        %v1656 = vmul.f32 %v1648, %v1584
        %v1657 = vmul.f32 %v1649, %v1585
        %v1658 = vsub.f32 0.0, %v1554
        %v1659 = vsub.f32 0.0, %v1555
        %v1660 = vsub.f32 0.0, %v1556
        %v1661 = vsub.f32 0.0, %v1557
        %v1662 = vsub.f32 0.0, %v1558
        %v1663 = vsub.f32 0.0, %v1559
        %v1664 = vsub.f32 0.0, %v1560
        %v1665 = vsub.f32 0.0, %v1561
        %v1666 = vmul.f32 %v1658, %v1554
        %v1667 = vmul.f32 %v1659, %v1555
        %v1668 = vmul.f32 %v1660, %v1556
        %v1669 = vmul.f32 %v1661, %v1557
        %v1670 = vmul.f32 %v1662, %v1558
        %v1671 = vmul.f32 %v1663, %v1559
        %v1672 = vmul.f32 %v1664, %v1560
        %v1673 = vmul.f32 %v1665, %v1561
        %v1674 = vmul.f32 %v1666, 1.442695
        %v1675 = vpow.pop %v1674
        %v1676 = vmul.f32 %v1667, 1.442695
        %v1677 = vpow.pop %v1676
        %v1678 = vmul.f32 %v1668, 1.442695
        %v1679 = vpow.pop %v1678
        %v1680 = vmul.f32 %v1669, 1.442695
        %v1681 = vpow.pop %v1680
        %v1682 = vmul.f32 %v1670, 1.442695
        %v1683 = vpow.pop %v1682
        %v1684 = vmul.f32 %v1671, 1.442695
        %v1685 = vpow.pop %v1684
        %v1686 = vmul.f32 %v1672, 1.442695
        %v1687 = vpow.pop %v1686
        %v1688 = vmul.f32 %v1673, 1.442695
        %v1689 = vpow.pop %v1688
        %v1690 = vmul.f32 %v1650, %v1675
        %v1691 = vmul.f32 %v1651, %v1677
        %v1692 = vmul.f32 %v1652, %v1679
        %v1693 = vmul.f32 %v1653, %v1681
        %v1694 = vmul.f32 %v1654, %v1683
        %v1695 = vmul.f32 %v1655, %v1685
        %v1696 = vmul.f32 %v1656, %v1687
        %v1697 = vmul.f32 %v1657, %v1689
        %v1698 = vsub.f32 1.0, %v1690
        %v1699 = vsub.f32 1.0, %v1691
        %v1700 = vsub.f32 1.0, %v1692
        %v1701 = vsub.f32 1.0, %v1693
        %v1702 = vsub.f32 1.0, %v1694
        %v1703 = vsub.f32 1.0, %v1695
        %v1704 = vsub.f32 1.0, %v1696
        %v1705 = vsub.f32 1.0, %v1697
        %vm1706 = vcmp.ge.f32.partialorder %v1546, 0.0
        %vm1707 = vcmp.ge.f32.partialorder %v1547, 0.0
        %vm1708 = vcmp.ge.f32.partialorder %v1548, 0.0
        %vm1709 = vcmp.ge.f32.partialorder %v1549, 0.0
        %vm1710 = vcmp.ge.f32.partialorder %v1550, 0.0
        %vm1711 = vcmp.ge.f32.partialorder %v1551, 0.0
        %vm1712 = vcmp.ge.f32.partialorder %v1552, 0.0
        %vm1713 = vcmp.ge.f32.partialorder %v1553, 0.0
        %v1714 = vsub.f32 0.0, %v1698
        %v1715 = vsub.f32 0.0, %v1699
        %v1716 = vsub.f32 0.0, %v1700
        %v1717 = vsub.f32 0.0, %v1701
        %v1718 = vsub.f32 0.0, %v1702
        %v1719 = vsub.f32 0.0, %v1703
        %v1720 = vsub.f32 0.0, %v1704
        %v1721 = vsub.f32 0.0, %v1705
        %v1722 = vsel %vm1706, %v1698, %v1714
        %v1723 = vsel %vm1707, %v1699, %v1715
        %v1724 = vsel %vm1708, %v1700, %v1716
        %v1725 = vsel %vm1709, %v1701, %v1717
        %v1726 = vsel %vm1710, %v1702, %v1718
        %v1727 = vsel %vm1711, %v1703, %v1719
        %v1728 = vsel %vm1712, %v1704, %v1720
        %v1729 = vsel %vm1713, %v1705, %v1721
        %v1730 = vadd.f32 %v1722, 1.0
        %v1731 = vadd.f32 %v1723, 1.0
        %v1732 = vadd.f32 %v1724, 1.0
        %v1733 = vadd.f32 %v1725, 1.0
        %v1734 = vadd.f32 %v1726, 1.0
        %v1735 = vadd.f32 %v1727, 1.0
        %v1736 = vadd.f32 %v1728, 1.0
        %v1737 = vadd.f32 %v1729, 1.0
        %v1738 = vmul.f32 %v1538, %v1730
        %v1739 = vmul.f32 %v1539, %v1731
        %v1740 = vmul.f32 %v1540, %v1732
        %v1741 = vmul.f32 %v1541, %v1733
        %v1742 = vmul.f32 %v1542, %v1734
        %v1743 = vmul.f32 %v1543, %v1735
        %v1744 = vmul.f32 %v1544, %v1736
        %v1745 = vmul.f32 %v1545, %v1737
        %v1746 = vpack.c.bf16 %v1739, %v1738
        %v1747 = vpack.c.bf16 %v1741, %v1740
        %v1748 = vpack.c.bf16 %v1743, %v1742
        %v1749 = vpack.c.bf16 %v1745, %v1744
        %v1751 = vsel %vm279, %v1746, 0
        %v1754 = vsel %vm279, %v1747, 0
        %v1757 = vsel %vm279, %v1748, 0
        %v1760 = vsel %vm279, %v1749, 0
        %1762 = vmatprep.subr.bf16.mxu0 0
        %1763 = vmatpush1.bf16.msra.mxu0 %v583
        %1764 = vmatprep.subr.bf16.mxu0 0
        %1765 = vmatpush1.bf16.msra.mxu0 %v584
        %1766 = vmatprep.subr.bf16.mxu0 0
        %1767 = vmatpush1.bf16.msra.mxu0 0
        %1768 = vmatprep.subr.bf16.mxu0 0
        %1769 = vmatpush1.bf16.msra.mxu0 0
        %1770 = vmatprep.subr.bf16.mxu0 0
        %1771 = vmatpush1.bf16.msra.mxu0 0
        %1772 = vmatprep.subr.bf16.mxu0 0
        %1773 = vmatpush1.bf16.msra.mxu0 0
        %1774 = vmatprep.subr.bf16.mxu0 0
        %1775 = vmatpush1.bf16.msra.mxu0 0
        %1776 = vmatprep.subr.bf16.mxu0 0
        %1777 = vmatpush1.bf16.msra.mxu0 0
        %1778 = vmatprep.subr.bf16.mxu0 0
        %1779 = vmatpush1.bf16.msra.mxu0 0
        %1780 = vmatprep.subr.bf16.mxu0 0
        %1781 = vmatpush1.bf16.msra.mxu0 0
        %1782 = vmatprep.subr.bf16.mxu0 0
        %1783 = vmatpush1.bf16.msra.mxu0 0
        %1784 = vmatprep.subr.bf16.mxu0 0
        %1785 = vmatpush1.bf16.msra.mxu0 0
        %1786 = vmatprep.subr.bf16.mxu0 0
        %1787 = vmatpush1.bf16.msra.mxu0 0
        %1788 = vmatprep.subr.bf16.mxu0 0
        %1789 = vmatpush1.bf16.msra.mxu0 0
        %1790 = vmatprep.subr.bf16.mxu0 0
        %1791 = vmatpush1.bf16.msra.mxu0 0
        %1792 = vmatprep.subr.bf16.mxu0 0
        %1793 = vmatpush1.bf16.msra.mxu0 0
        %1794 = vmatprep.mubr.bf16.mxu0 0
        %1795 = vmatmul.mubr.bf16.gmra.mrb[0].mxu0 %v1751
        %v1796 = vpop.f32.mrb[0].mxu0
        %v1797 = vadd.f32 %v573, %v1796
        %v1798 = vpop.f32.mrb[0].mxu0
        %v1799 = vpop.f32.mrb[0].mxu0
        %v1800 = vadd.f32 %v573, %v1799
        %v1801 = vpop.f32.mrb[0].mxu0
        %1802 = vmatprep.mubr.bf16.mxu0 0
        %1803 = vmatmul.mubr.bf16.gmra.mrb[0].mxu0 %v1754
        %v1804 = vpop.f32.mrb[0].mxu0
        %v1805 = vadd.f32 %v573, %v1804
        %v1806 = vpop.f32.mrb[0].mxu0
        %v1807 = vpop.f32.mrb[0].mxu0
        %v1808 = vadd.f32 %v573, %v1807
        %v1809 = vpop.f32.mrb[0].mxu0
        %1810 = vmatprep.mubr.bf16.mxu0 0
        %1811 = vmatmul.mubr.bf16.gmra.mrb[0].mxu0 %v1757
        %v1812 = vpop.f32.mrb[0].mxu0
        %v1813 = vadd.f32 %v573, %v1812
        %v1814 = vpop.f32.mrb[0].mxu0
        %v1815 = vpop.f32.mrb[0].mxu0
        %v1816 = vadd.f32 %v573, %v1815
        %v1817 = vpop.f32.mrb[0].mxu0
        %1818 = vmatprep.mubr.bf16.mxu0 0
        %1819 = vmatmul.mubr.bf16.gmra.mrb[0].mxu0 %v1760
        %v1820 = vpop.f32.mrb[0].mxu0
        %v1821 = vadd.f32 %v573, %v1820
        %v1822 = vpop.f32.mrb[0].mxu0
        %v1823 = vpop.f32.mrb[0].mxu0
        %v1824 = vadd.f32 %v573, %v1823
        %v1825 = vpop.f32.mrb[0].mxu0
        %1826 = vdwg.mxu0
        %s1827 = scalar_lea.vmem %s214, 192 [#allocation2]
        %1828 = vst.msk [vmem:[%s1827] sm:$0xff] %vm279, %v1797
        %1829 = vst.msk [vmem:[%s1827 + $0x8] sm:$0xff] %vm279, %v1800
        %1830 = vst.msk [vmem:[%s1827 + $0x10] sm:$0xff] %vm279, %v1805
        %1831 = vst.msk [vmem:[%s1827 + $0x18] sm:$0xff] %vm279, %v1808
        %1832 = vst.msk [vmem:[%s1827 + $0x20] sm:$0xff] %vm279, %v1813
        %1833 = vst.msk [vmem:[%s1827 + $0x28] sm:$0xff] %vm279, %v1816
        %1834 = vst.msk [vmem:[%s1827 + $0x30] sm:$0xff] %vm279, %v1821
        %1835 = vst.msk [vmem:[%s1827 + $0x38] sm:$0xff] %vm279, %v1824
        %s1836 = sand.u32 %s134, 1
        %s1837 = sand.u32 %s134, 1
        %s1838 = smul.addr %s1837, 256
        %s1839 = scalar_lea.vmem [#allocation2], %s1838
        // Predicated region
        $region41: #{tpu_custom_call.1} parent=39 // pred_check
          %p1840 = pneg %p144
        $region42: #{tpu_custom_call.1} parent=39 // pred_check_branch
          %1842 = sbr.rel (%p1840) target = $region44
        $region43: #{tpu_custom_call.1} parent=39 // pred_region
          %s1843 = smul.u32 8, %s16
          %s1844 = smul.addr %s1843, 8
          %s1845 = scalar_lea.vmem %s5, %s1844
          // Predicated region
          $region45: #{tpu_custom_call.1} parent=43 // pred_check
            _
          $region46: #{tpu_custom_call.1} parent=43 // pred_check_branch
            %1847 = sbr.rel (0) target = $region48
          $region47: #{tpu_custom_call.1} parent=43 // pred_region
            // Predicated region
            $region49: #{tpu_custom_call.1} parent=47 // pred_check
              _
            $region50: #{tpu_custom_call.1} parent=47 // pred_check_branch
              %1849 = sbr.rel (0) target = $region52
            $region51: #{tpu_custom_call.1} parent=47 // pred_region
              // Predicated region
              $region64: #{tpu_custom_call.1} parent=51 // pred_check
                _
              $region65: #{tpu_custom_call.1} parent=51 // pred_check_branch
                %1926 = sbr.rel (0) target = $region67
              $region66: #{tpu_custom_call.1} parent=51 // pred_region
                loop: start=0, step=1, limit=1
                $region68: #{tpu_custom_call.1} parent=66 // loop_pre_header
                  _
                $region69: #{tpu_custom_call.1} parent=66 // loop_header
                  %s1928 = sphi 0, %s1932
                  %p1929 = scmp.ge.s32.totalorder %s1928, 1
                  %s1933 = sphi %s1839, %s1839
                  %s1934 = sphi %s1845, %s1845
                $region70: #{tpu_custom_call.1} parent=66 // loop_header_branch
                  %1931 = sbr.rel (%p1929) target = $region74
                $region71: #{tpu_custom_call.1} parent=66 // loop_body
                  %v1935 = vld [vmem:[%s1933] sm:$0xff]
                  %1936 = vst [vmem:[%s1934] sm:$0xff] %v1935
                  %v1937 = vld [vmem:[%s1933 + $0x8] sm:$0xff]
                  %1938 = vst [vmem:[%s1934 + $0x8] sm:$0xff] %v1937
                  %v1939 = vld [vmem:[%s1933 + $0x10] sm:$0xff]
                  %1940 = vst [vmem:[%s1934 + $0x10] sm:$0xff] %v1939
                  %v1941 = vld [vmem:[%s1933 + $0x18] sm:$0xff]
                  %1942 = vst [vmem:[%s1934 + $0x18] sm:$0xff] %v1941
                  %v1943 = vld [vmem:[%s1933 + $0x20] sm:$0xff]
                  %1944 = vst [vmem:[%s1934 + $0x20] sm:$0xff] %v1943
                  %v1945 = vld [vmem:[%s1933 + $0x28] sm:$0xff]
                  %1946 = vst [vmem:[%s1934 + $0x28] sm:$0xff] %v1945
                  %v1947 = vld [vmem:[%s1933 + $0x30] sm:$0xff]
                  %1948 = vst [vmem:[%s1934 + $0x30] sm:$0xff] %v1947
                  %v1949 = vld [vmem:[%s1933 + $0x38] sm:$0xff]
                  %1950 = vst [vmem:[%s1934 + $0x38] sm:$0xff] %v1949
                  %v1951 = vld [vmem:[%s1933 + $0x40] sm:$0xff]
                  %1952 = vst [vmem:[%s1934 + $0x200] sm:$0xff] %v1951
                  %v1953 = vld [vmem:[%s1933 + $0x48] sm:$0xff]
                  %1954 = vst [vmem:[%s1934 + $0x208] sm:$0xff] %v1953
                  %v1955 = vld [vmem:[%s1933 + $0x50] sm:$0xff]
                  %1956 = vst [vmem:[%s1934 + $0x210] sm:$0xff] %v1955
                  %v1957 = vld [vmem:[%s1933 + $0x58] sm:$0xff]
                  %1958 = vst [vmem:[%s1934 + $0x218] sm:$0xff] %v1957
                  %v1959 = vld [vmem:[%s1933 + $0x60] sm:$0xff]
                  %1960 = vst [vmem:[%s1934 + $0x220] sm:$0xff] %v1959
                  %v1961 = vld [vmem:[%s1933 + $0x68] sm:$0xff]
                  %1962 = vst [vmem:[%s1934 + $0x228] sm:$0xff] %v1961
                  %v1963 = vld [vmem:[%s1933 + $0x70] sm:$0xff]
                  %1964 = vst [vmem:[%s1934 + $0x230] sm:$0xff] %v1963
                  %v1965 = vld [vmem:[%s1933 + $0x78] sm:$0xff]
                  %1966 = vst [vmem:[%s1934 + $0x238] sm:$0xff] %v1965
                  %v1967 = vld [vmem:[%s1933 + $0x80] sm:$0xff]
                  %1968 = vst [vmem:[%s1934 + $0x400] sm:$0xff] %v1967
                  %v1969 = vld [vmem:[%s1933 + $0x88] sm:$0xff]
                  %1970 = vst [vmem:[%s1934 + $0x408] sm:$0xff] %v1969
                  %v1971 = vld [vmem:[%s1933 + $0x90] sm:$0xff]
                  %1972 = vst [vmem:[%s1934 + $0x410] sm:$0xff] %v1971
                  %v1973 = vld [vmem:[%s1933 + $0x98] sm:$0xff]
                  %1974 = vst [vmem:[%s1934 + $0x418] sm:$0xff] %v1973
                  %v1975 = vld [vmem:[%s1933 + $0xa0] sm:$0xff]
                  %1976 = vst [vmem:[%s1934 + $0x420] sm:$0xff] %v1975
                  %v1977 = vld [vmem:[%s1933 + $0xa8] sm:$0xff]
                  %1978 = vst [vmem:[%s1934 + $0x428] sm:$0xff] %v1977
                  %v1979 = vld [vmem:[%s1933 + $0xb0] sm:$0xff]
                  %1980 = vst [vmem:[%s1934 + $0x430] sm:$0xff] %v1979
                  %v1981 = vld [vmem:[%s1933 + $0xb8] sm:$0xff]
                  %1982 = vst [vmem:[%s1934 + $0x438] sm:$0xff] %v1981
                  %v1983 = vld [vmem:[%s1933 + $0xc0] sm:$0xff]
                  %1984 = vst [vmem:[%s1934 + $0x600] sm:$0xff] %v1983
                  %v1985 = vld [vmem:[%s1933 + $0xc8] sm:$0xff]
                  %1986 = vst [vmem:[%s1934 + $0x608] sm:$0xff] %v1985
                  %v1987 = vld [vmem:[%s1933 + $0xd0] sm:$0xff]
                  %1988 = vst [vmem:[%s1934 + $0x610] sm:$0xff] %v1987
                  %v1989 = vld [vmem:[%s1933 + $0xd8] sm:$0xff]
                  %1990 = vst [vmem:[%s1934 + $0x618] sm:$0xff] %v1989
                  %v1991 = vld [vmem:[%s1933 + $0xe0] sm:$0xff]
                  %1992 = vst [vmem:[%s1934 + $0x620] sm:$0xff] %v1991
                  %v1993 = vld [vmem:[%s1933 + $0xe8] sm:$0xff]
                  %1994 = vst [vmem:[%s1934 + $0x628] sm:$0xff] %v1993
                  %v1995 = vld [vmem:[%s1933 + $0xf0] sm:$0xff]
                  %1996 = vst [vmem:[%s1934 + $0x630] sm:$0xff] %v1995
                  %v1997 = vld [vmem:[%s1933 + $0xf8] sm:$0xff]
                  %1998 = vst [vmem:[%s1934 + $0x638] sm:$0xff] %v1997
                $region72: #{tpu_custom_call.1} parent=66 // loop_footer
                  %s1932 = sadd.s32 1, %s1928
                $region73: #{tpu_custom_call.1} parent=66 // loop_footer_branch
                  %1927 = sbr.rel target = $region69
                $region74: #{tpu_custom_call.1} parent=66 // loop_exit
                  _
              $region67: #{tpu_custom_call.1} parent=51 // pred_fallthru
                _
              // Predicated region
              $region75: #{tpu_custom_call.1} parent=51 // pred_check
                _
              $region76: #{tpu_custom_call.1} parent=51 // pred_check_branch
                %2000 = sbr.rel target = $region78
              $region77: #{tpu_custom_call.1} parent=51 // pred_region
                _
              $region78: #{tpu_custom_call.1} parent=51 // pred_fallthru
                _
            $region52: #{tpu_custom_call.1} parent=47 // pred_fallthru
              _
            // Predicated region
            $region53: #{tpu_custom_call.1} parent=47 // pred_check
              _
            $region54: #{tpu_custom_call.1} parent=47 // pred_check_branch
              %1851 = sbr.rel target = $region56
            $region55: #{tpu_custom_call.1} parent=47 // pred_region
              loop: start=0, step=1, limit=1
              $region57: #{tpu_custom_call.1} parent=55 // loop_pre_header
                _
              $region58: #{tpu_custom_call.1} parent=55 // loop_header
                %s1854 = sphi 0, %s1858
                %p1855 = scmp.ge.s32.totalorder %s1854, 1
                %s1859 = sphi %s1839, %s1839
                %s1860 = sphi %s1845, %s1845
              $region59: #{tpu_custom_call.1} parent=55 // loop_header_branch
                %1857 = sbr.rel (%p1855) target = $region63
              $region60: #{tpu_custom_call.1} parent=55 // loop_body
                %v1861 = vld [vmem:[%s1859] sm:$0xff]
                %1862 = vst [vmem:[%s1860] sm:$0xff] %v1861
                %v1863 = vld [vmem:[%s1859 + $0x8] sm:$0xff]
                %1864 = vst [vmem:[%s1860 + $0x8] sm:$0xff] %v1863
                %v1865 = vld [vmem:[%s1859 + $0x10] sm:$0xff]
                %1866 = vst [vmem:[%s1860 + $0x10] sm:$0xff] %v1865
                %v1867 = vld [vmem:[%s1859 + $0x18] sm:$0xff]
                %1868 = vst [vmem:[%s1860 + $0x18] sm:$0xff] %v1867
                %v1869 = vld [vmem:[%s1859 + $0x20] sm:$0xff]
                %1870 = vst [vmem:[%s1860 + $0x20] sm:$0xff] %v1869
                %v1871 = vld [vmem:[%s1859 + $0x28] sm:$0xff]
                %1872 = vst [vmem:[%s1860 + $0x28] sm:$0xff] %v1871
                %v1873 = vld [vmem:[%s1859 + $0x30] sm:$0xff]
                %1874 = vst [vmem:[%s1860 + $0x30] sm:$0xff] %v1873
                %v1875 = vld [vmem:[%s1859 + $0x38] sm:$0xff]
                %1876 = vst [vmem:[%s1860 + $0x38] sm:$0xff] %v1875
                %v1877 = vld [vmem:[%s1859 + $0x40] sm:$0xff]
                %1878 = vst [vmem:[%s1860 + $0x200] sm:$0xff] %v1877
                %v1879 = vld [vmem:[%s1859 + $0x48] sm:$0xff]
                %1880 = vst [vmem:[%s1860 + $0x208] sm:$0xff] %v1879
                %v1881 = vld [vmem:[%s1859 + $0x50] sm:$0xff]
                %1882 = vst [vmem:[%s1860 + $0x210] sm:$0xff] %v1881
                %v1883 = vld [vmem:[%s1859 + $0x58] sm:$0xff]
                %1884 = vst [vmem:[%s1860 + $0x218] sm:$0xff] %v1883
                %v1885 = vld [vmem:[%s1859 + $0x60] sm:$0xff]
                %1886 = vst [vmem:[%s1860 + $0x220] sm:$0xff] %v1885
                %v1887 = vld [vmem:[%s1859 + $0x68] sm:$0xff]
                %1888 = vst [vmem:[%s1860 + $0x228] sm:$0xff] %v1887
                %v1889 = vld [vmem:[%s1859 + $0x70] sm:$0xff]
                %1890 = vst [vmem:[%s1860 + $0x230] sm:$0xff] %v1889
                %v1891 = vld [vmem:[%s1859 + $0x78] sm:$0xff]
                %1892 = vst [vmem:[%s1860 + $0x238] sm:$0xff] %v1891
                %v1893 = vld [vmem:[%s1859 + $0x80] sm:$0xff]
                %1894 = vst [vmem:[%s1860 + $0x400] sm:$0xff] %v1893
                %v1895 = vld [vmem:[%s1859 + $0x88] sm:$0xff]
                %1896 = vst [vmem:[%s1860 + $0x408] sm:$0xff] %v1895
                %v1897 = vld [vmem:[%s1859 + $0x90] sm:$0xff]
                %1898 = vst [vmem:[%s1860 + $0x410] sm:$0xff] %v1897
                %v1899 = vld [vmem:[%s1859 + $0x98] sm:$0xff]
                %1900 = vst [vmem:[%s1860 + $0x418] sm:$0xff] %v1899
                %v1901 = vld [vmem:[%s1859 + $0xa0] sm:$0xff]
                %1902 = vst [vmem:[%s1860 + $0x420] sm:$0xff] %v1901
                %v1903 = vld [vmem:[%s1859 + $0xa8] sm:$0xff]
                %1904 = vst [vmem:[%s1860 + $0x428] sm:$0xff] %v1903
                %v1905 = vld [vmem:[%s1859 + $0xb0] sm:$0xff]
                %1906 = vst [vmem:[%s1860 + $0x430] sm:$0xff] %v1905
                %v1907 = vld [vmem:[%s1859 + $0xb8] sm:$0xff]
                %1908 = vst [vmem:[%s1860 + $0x438] sm:$0xff] %v1907
                %v1909 = vld [vmem:[%s1859 + $0xc0] sm:$0xff]
                %1910 = vst [vmem:[%s1860 + $0x600] sm:$0xff] %v1909
                %v1911 = vld [vmem:[%s1859 + $0xc8] sm:$0xff]
                %1912 = vst [vmem:[%s1860 + $0x608] sm:$0xff] %v1911
                %v1913 = vld [vmem:[%s1859 + $0xd0] sm:$0xff]
                %1914 = vst [vmem:[%s1860 + $0x610] sm:$0xff] %v1913
                %v1915 = vld [vmem:[%s1859 + $0xd8] sm:$0xff]
                %1916 = vst [vmem:[%s1860 + $0x618] sm:$0xff] %v1915
                %v1917 = vld [vmem:[%s1859 + $0xe0] sm:$0xff]
                %1918 = vst [vmem:[%s1860 + $0x620] sm:$0xff] %v1917
                %v1919 = vld [vmem:[%s1859 + $0xe8] sm:$0xff]
                %1920 = vst [vmem:[%s1860 + $0x628] sm:$0xff] %v1919
                %v1921 = vld [vmem:[%s1859 + $0xf0] sm:$0xff]
                %1922 = vst [vmem:[%s1860 + $0x630] sm:$0xff] %v1921
                %v1923 = vld [vmem:[%s1859 + $0xf8] sm:$0xff]
                %1924 = vst [vmem:[%s1860 + $0x638] sm:$0xff] %v1923
              $region61: #{tpu_custom_call.1} parent=55 // loop_footer
                %s1858 = sadd.s32 1, %s1854
              $region62: #{tpu_custom_call.1} parent=55 // loop_footer_branch
                %1853 = sbr.rel target = $region58
              $region63: #{tpu_custom_call.1} parent=55 // loop_exit
                _
            $region56: #{tpu_custom_call.1} parent=47 // pred_fallthru
              _
          $region48: #{tpu_custom_call.1} parent=43 // pred_fallthru
            _
          %2001 = vnop
        $region44: #{tpu_custom_call.1} parent=39 // pred_fallthru
          _
      $region40: #{tpu_custom_call.1} parent=5 // pred_fallthru
        _
      %p2002 = scmp.le.s32.totalorder 2, %s11
      // Predicated region
      $region79: #{tpu_custom_call.1} parent=5 // pred_check
        %p2003 = pneg %p2002
      $region80: #{tpu_custom_call.1} parent=5 // pred_check_branch
        %2005 = sbr.rel (%p2003) target = $region82
      $region81: #{tpu_custom_call.1} parent=5 // pred_region
        %s2006 = ssub.s32 %s11, 2
        // Predicated region
        $region83: #{tpu_custom_call.1} parent=81 // pred_check
          %p2007 = pneg %p150
        $region84: #{tpu_custom_call.1} parent=81 // pred_check_branch
          %2009 = sbr.rel (%p2007) target = $region86
        $region85: #{tpu_custom_call.1} parent=81 // pred_region
          %s2010 = sand.u32 %s135, 1
          %s2011 = sand.u32 %s135, 1
          %s2012 = smul.addr %s2011, 256
          %s2013 = scalar_lea.vmem [#allocation2], %s2012
        $region86: #{tpu_custom_call.1} parent=81 // pred_fallthru
          _
      $region82: #{tpu_custom_call.1} parent=5 // pred_fallthru
        _
    $region6: #{tpu_custom_call.1} parent=1 // loop_footer
      %s15 = sadd.s32 1, %s11
    $region7: #{tpu_custom_call.1} parent=1 // loop_footer_branch
      %10 = sbr.rel target = $region3
    $region8: #{tpu_custom_call.1} parent=1 // loop_exit
      _

// kernel: tpu_custom_call.1
$region0: #{tpu_custom_call.1}
  #allocation0 [shape = 'u32[]', space=smem, size = 0x4, offset = 0x4, fixed_abs, tag = 'smem constant byte address 0x4 - core index']
  #allocation1 [shape = 'u32[144,128]{1,0:T(1,128)}', space=vmem, size = 0x12000, scoped, tag = 'internal scratch']
  %s0 = inlined_call_operand.vmem [shape: bf16[512,32], index: 0, kind: input, shape index: {}]
  %s1 = inlined_call_operand.vmem [shape: bf16[4,32,32], index: 1, kind: input, shape index: {}]
  %s2 = inlined_call_operand.vmem [shape: f32[4,1,32], index: 2, kind: input, shape index: {}]
  %s3 = inlined_call_operand.vmem [shape: bf16[32,32], index: 3, kind: input, shape index: {}]
  %s4 = inlined_call_operand.vmem [shape: f32[1,32], index: 4, kind: input, shape index: {}]
  %s5 = inlined_call_operand.vmem [shape: f32[4,512,32], index: 5, kind: output, shape index: {}]
  %s6 = sld [smem:[#allocation0]]
  $region87: #{tpu_custom_call.1} parent=0
    _
  %s8 = ssub.s32 1, %s6
  %s9 = scalar_select 0, %s8, %s6
  $region1: #{tpu_custom_call.1} parent=0
    #allocation2 [shape = 'u8[262144]{0}', space=vmem, size = 0x40000, scoped, tag = 'output window, operand 0']
    loop: start=0, step=1, limit=10
    $region2: #{tpu_custom_call.1} parent=1 // loop_pre_header
      _
    $region3: #{tpu_custom_call.1} parent=1 // loop_header
      %s11 = sphi 0, %s15
      %p12 = scmp.ge.s32.totalorder %s11, 10
      %s21 = sphi 0, %s23
      %s24 = sphi 0, %s21
      %s25 = sphi 0, %s24
      %s41 = sphi 0, %s25
      %s45 = sphi 0, %s45
      %s47 = sphi 0, %s45
      %s48 = sphi 0, %s47
      %s62 = sphi 0, %s48
      %s66 = sphi 0, %s66
      %s68 = sphi 0, %s66
      %s69 = sphi 0, %s68
      %s83 = sphi 0, %s69
      %s87 = sphi 0, %s87
      %s89 = sphi 0, %s87
      %s90 = sphi 0, %s89
      %s104 = sphi 0, %s90
      %s108 = sphi 0, %s108
      %s110 = sphi 0, %s108
      %s111 = sphi 0, %s110
      %s125 = sphi 0, %s111
      %s131 = sphi 0, %s133
      %s134 = sphi 0, %s131
      %s135 = sphi 0, %s134
      %s151 = sphi 0, %s135
    $region4: #{tpu_custom_call.1} parent=1 // loop_header_branch
      %14 = sbr.rel (%p12) target = $region8
    $region5: #{tpu_custom_call.1} parent=1 // loop_body
      %s16 = ssub.s32 %s11, 1
      %s17 = ssub.s32 %s11, 2
      %s18 = sadd.s32 %s11, 1
      %s19 = ssub.s32 %s11, %s18
      %p20 = scmp.eq.s32.totalorder %s19, 0
      %s22 = sadd.s32 %s21, 1
      %s23 = scalar_select %p20, %s21, %s22
      %p26 = pneg %p20
      %p27 = scmp.eq.s32.totalorder %s11, 7
      %p28 = por %p26, %p27
      %p29 = scmp.ne.s32.totalorder %s21, %s24
      %p30 = scmp.eq.s32.totalorder %s11, 0
      %p31 = por %p29, %p30
      %p32 = scmp.ne.s32.totalorder %s21, %s24
      %p33 = scmp.eq.s32.totalorder %s16, 7
      %p34 = por %p32, %p33
      %p35 = scmp.ne.s32.totalorder %s24, %s25
      %p36 = scmp.eq.s32.totalorder %s16, 0
      %p37 = por %p35, %p36
      %p38 = scmp.ne.s32.totalorder %s24, %s25
      %p39 = scmp.eq.s32.totalorder %s17, 7
      %p40 = por %p38, %p39
      %p42 = scmp.ne.s32.totalorder %s25, %s41
      %p43 = scmp.eq.s32.totalorder %s17, 0
      %p44 = por %p42, %p43
      %s46 = sadd.s32 %s45, 1
      %p49 = scmp.eq.s32.totalorder %s11, 7
      %p50 = scmp.ne.s32.totalorder %s45, %s47
      %p51 = scmp.eq.s32.totalorder %s11, 0
      %p52 = por %p50, %p51
      %p53 = scmp.ne.s32.totalorder %s45, %s47
      %p54 = scmp.eq.s32.totalorder %s16, 7
      %p55 = por %p53, %p54
      %p56 = scmp.ne.s32.totalorder %s47, %s48
      %p57 = scmp.eq.s32.totalorder %s16, 0
      %p58 = por %p56, %p57
      %p59 = scmp.ne.s32.totalorder %s47, %s48
      %p60 = scmp.eq.s32.totalorder %s17, 7
      %p61 = por %p59, %p60
      %p63 = scmp.ne.s32.totalorder %s48, %s62
      %p64 = scmp.eq.s32.totalorder %s17, 0
      %p65 = por %p63, %p64
      %s67 = sadd.s32 %s66, 1
      %p70 = scmp.eq.s32.totalorder %s11, 7
      %p71 = scmp.ne.s32.totalorder %s66, %s68
      %p72 = scmp.eq.s32.totalorder %s11, 0
      %p73 = por %p71, %p72
      %p74 = scmp.ne.s32.totalorder %s66, %s68
      %p75 = scmp.eq.s32.totalorder %s16, 7
      %p76 = por %p74, %p75
      %p77 = scmp.ne.s32.totalorder %s68, %s69
      %p78 = scmp.eq.s32.totalorder %s16, 0
      %p79 = por %p77, %p78
      %p80 = scmp.ne.s32.totalorder %s68, %s69
      %p81 = scmp.eq.s32.totalorder %s17, 7
      %p82 = por %p80, %p81
      %p84 = scmp.ne.s32.totalorder %s69, %s83
      %p85 = scmp.eq.s32.totalorder %s17, 0
      %p86 = por %p84, %p85
      %s88 = sadd.s32 %s87, 1
      %p91 = scmp.eq.s32.totalorder %s11, 7
      %p92 = scmp.ne.s32.totalorder %s87, %s89
      %p93 = scmp.eq.s32.totalorder %s11, 0
      %p94 = por %p92, %p93
      %p95 = scmp.ne.s32.totalorder %s87, %s89
      %p96 = scmp.eq.s32.totalorder %s16, 7
      %p97 = por %p95, %p96
      %p98 = scmp.ne.s32.totalorder %s89, %s90
      %p99 = scmp.eq.s32.totalorder %s16, 0
      %p100 = por %p98, %p99
      %p101 = scmp.ne.s32.totalorder %s89, %s90
      %p102 = scmp.eq.s32.totalorder %s17, 7
      %p103 = por %p101, %p102
      %p105 = scmp.ne.s32.totalorder %s90, %s104
      %p106 = scmp.eq.s32.totalorder %s17, 0
      %p107 = por %p105, %p106
      %s109 = sadd.s32 %s108, 1
      %p112 = scmp.eq.s32.totalorder %s11, 7
      %p113 = scmp.ne.s32.totalorder %s108, %s110
      %p114 = scmp.eq.s32.totalorder %s11, 0
      %p115 = por %p113, %p114
      %p116 = scmp.ne.s32.totalorder %s108, %s110
      %p117 = scmp.eq.s32.totalorder %s16, 7
      %p118 = por %p116, %p117
      %p119 = scmp.ne.s32.totalorder %s110, %s111
      %p120 = scmp.eq.s32.totalorder %s16, 0
      %p121 = por %p119, %p120
      %p122 = scmp.ne.s32.totalorder %s110, %s111
      %p123 = scmp.eq.s32.totalorder %s17, 7
      %p124 = por %p122, %p123
      %p126 = scmp.ne.s32.totalorder %s111, %s125
      %p127 = scmp.eq.s32.totalorder %s17, 0
      %p128 = por %p126, %p127
      %s129 = ssub.s32 %s11, %s18
      %p130 = scmp.eq.s32.totalorder %s129, 0
      %s132 = sadd.s32 %s131, 1
      %s133 = scalar_select %p130, %s131, %s132
      %p136 = pneg %p130
      %p137 = scmp.eq.s32.totalorder %s11, 7
      %p138 = por %p136, %p137
      %p139 = scmp.ne.s32.totalorder %s131, %s134
      %p140 = scmp.eq.s32.totalorder %s11, 0
      %p141 = por %p139, %p140
      %p142 = scmp.ne.s32.totalorder %s131, %s134
      %p143 = scmp.eq.s32.totalorder %s16, 7
      %p144 = por %p142, %p143
      %p145 = scmp.ne.s32.totalorder %s134, %s135
      %p146 = scmp.eq.s32.totalorder %s16, 0
      %p147 = por %p145, %p146
      %p148 = scmp.ne.s32.totalorder %s134, %s135
      %p149 = scmp.eq.s32.totalorder %s17, 7
      %p150 = por %p148, %p149
      %p152 = scmp.ne.s32.totalorder %s135, %s151
      %p153 = scmp.eq.s32.totalorder %s17, 0
      %p154 = por %p152, %p153
      %p155 = scmp.le.s32.totalorder 1, %s11
      %p156 = scmp.lt.s32.totalorder %s11, 9
      %p157 = pnand %p155, %p156
      %p158 = pneg %p157
      // Predicated region
      $region9: #{tpu_custom_call.1} parent=5 // pred_check
        _
      $region10: #{tpu_custom_call.1} parent=5 // pred_check_branch
        %160 = sbr.rel (%p157) target = $region12
      $region11: #{tpu_custom_call.1} parent=5 // pred_region
        %s161 = ssub.s32 %s11, 1
        // Predicated region
        $region13: #{tpu_custom_call.1} parent=11 // pred_check
          %p162 = pneg %p58
        $region14: #{tpu_custom_call.1} parent=11 // pred_check_branch
          %164 = sbr.rel (%p162) target = $region16
        $region15: #{tpu_custom_call.1} parent=11 // pred_region
          _
        $region16: #{tpu_custom_call.1} parent=11 // pred_fallthru
          _
        // Predicated region
        $region17: #{tpu_custom_call.1} parent=11 // pred_check
          %p165 = pneg %p79
        $region18: #{tpu_custom_call.1} parent=11 // pred_check_branch
          %167 = sbr.rel (%p165) target = $region20
        $region19: #{tpu_custom_call.1} parent=11 // pred_region
          _
        $region20: #{tpu_custom_call.1} parent=11 // pred_fallthru
          _
        // Predicated region
        $region21: #{tpu_custom_call.1} parent=11 // pred_check
          %p168 = pneg %p100
        $region22: #{tpu_custom_call.1} parent=11 // pred_check_branch
          %170 = sbr.rel (%p168) target = $region24
        $region23: #{tpu_custom_call.1} parent=11 // pred_region
          _
        $region24: #{tpu_custom_call.1} parent=11 // pred_fallthru
          _
        // Predicated region
        $region25: #{tpu_custom_call.1} parent=11 // pred_check
          %p171 = pneg %p121
        $region26: #{tpu_custom_call.1} parent=11 // pred_check_branch
          %173 = sbr.rel (%p171) target = $region28
        $region27: #{tpu_custom_call.1} parent=11 // pred_region
          _
        $region28: #{tpu_custom_call.1} parent=11 // pred_fallthru
          _
      $region12: #{tpu_custom_call.1} parent=5 // pred_fallthru
        _
      %p174 = scmp.lt.s32.totalorder %s11, 8
      // Predicated region
      $region29: #{tpu_custom_call.1} parent=5 // pred_check
        %p175 = pneg %p174
      $region30: #{tpu_custom_call.1} parent=5 // pred_check_branch
        %177 = sbr.rel (%p175) target = $region32
      $region31: #{tpu_custom_call.1} parent=5 // pred_region
        // Predicated region
        $region33: #{tpu_custom_call.1} parent=31 // pred_check
          %p178 = pneg %p31
        $region34: #{tpu_custom_call.1} parent=31 // pred_check_branch
          %180 = sbr.rel (%p178) target = $region36
        $region35: #{tpu_custom_call.1} parent=31 // pred_region
          %s181 = smul.u32 8, %s11
          %p182 = scmp.lt.s32.totalorder %s181, 63
          %s183 = scalar_select %p182, %s181, 63
          %s184 = smul.addr %s183, 4
          %s185 = scalar_lea.vmem %s0, %s184
          %s186 = smul.u32 8, %s11
        $region36: #{tpu_custom_call.1} parent=31 // pred_fallthru
          _
      $region32: #{tpu_custom_call.1} parent=5 // pred_fallthru
        _
      %p187 = scmp.le.s32.totalorder 1, %s11
      %p188 = scmp.lt.s32.totalorder %s11, 9
      %p189 = pnand %p187, %p188
      %p190 = pneg %p189
      // Predicated region
      $region37: #{tpu_custom_call.1} parent=5 // pred_check
        _
      $region38: #{tpu_custom_call.1} parent=5 // pred_check_branch
        %192 = sbr.rel (%p189) target = $region40
      $region39: #{tpu_custom_call.1} parent=5 // pred_region
        %s193 = ssub.s32 %s11, 1
        %s194 = smul.u32 8, %s16
        %p195 = scmp.lt.s32.totalorder %s194, 63
        %s196 = scalar_select %p195, %s194, 63
        %s197 = smul.addr %s196, 4
        %s198 = scalar_lea.vmem %s0, %s197
        %p199 = pneg %p37
        %p200 = pneg %p34
        %p201 = pneg %p58
        %p202 = pneg %p55
        %p203 = pneg %p79
        %p204 = pneg %p76
        %p205 = pneg %p100
        %p206 = pneg %p97
        %p207 = pneg %p121
        %p208 = pneg %p118
        %p209 = pneg %p147
        %p210 = pneg %p144
        %s211 = sand.u32 %s134, 1
        %s212 = sand.u32 %s134, 1
        %s213 = smul.addr %s212, 256
        %s214 = scalar_lea.vmem [#allocation2], %s213
        %s215 = smul.u32 8, %s16
        %p216 = scmp.lt.s32.totalorder %s215, 63
        %s217 = scalar_select %p216, %s215, 63
        %s218 = smul.addr %s217, 4
        %s219 = scalar_lea.vmem %s0, %s218
        %s220 = smul.u32 8, %s16
        %s221 = smul.u32 8, %s16
        %v223 = vld [vmem:[%s219] sm:$0xf]
        %v224 = vld [vmem:[%s219 + $0x4] sm:$0xf]
        %v225 = vld [vmem:[%s219 + $0x8] sm:$0xf]
        %v226 = vld [vmem:[%s219 + $0xc] sm:$0xf]
        %v227 = vld [vmem:[%s219 + $0x10] sm:$0xf]
        %v228 = vld [vmem:[%s219 + $0x14] sm:$0xf]
        %v229 = vld [vmem:[%s219 + $0x18] sm:$0xf]
        %v230 = vld [vmem:[%s219 + $0x1c] sm:$0xf]
        %v231 = vld [vmem:[%s3] sm:$0xf]
        %v232 = vld [vmem:[%s3 + $0x4] sm:$0xf]
        %v233 = vld [vmem:[%s3 + $0x8] sm:$0xf]
        %v234 = vld [vmem:[%s3 + $0xc] sm:$0xf]
        %v235 = vld [vmem:[%s4] sm:$0x1]
        %v236 = vld [vmem:[%s1] sm:$0xf]
        %v237 = vld [vmem:[%s1 + $0x4] sm:$0xf]
        %v238 = vld [vmem:[%s1 + $0x8] sm:$0xf]
        %v239 = vld [vmem:[%s1 + $0xc] sm:$0xf]
        %v240 = vld [vmem:[%s2] sm:$0x1]
        %v242 = vlaneseq
        %v243 = vshrl.u32 %v242, 7
        %v244 = vsub.s32 0, %v243
        %v245 = vrot.slane %v240, %v244
        %v255 = vunpack.c.l.b16 %v223
        %v256 = vunpack.c.l.b16 %v224
        %v257 = vunpack.c.l.b16 %v225
        %v258 = vunpack.c.l.b16 %v226
        %v259 = vunpack.c.l.b16 %v227
        %v260 = vunpack.c.l.b16 %v228
        %v261 = vunpack.c.l.b16 %v229
        %v262 = vunpack.c.l.b16 %v230
        %v263 = vpack.c.b16 %v256, %v255
        %v264 = vpack.c.b16 %v258, %v257
        %v265 = vpack.c.b16 %v260, %v259
        %v266 = vpack.c.b16 %v262, %v261
        %v271 = vunpack.c.l.b16 %v236
        %v272 = vunpack.c.l.b16 %v237
        %v273 = vunpack.c.l.b16 %v238
        %v274 = vunpack.c.l.b16 %v239
        %v275 = vpack.c.b16 %v272, %v271
        %v276 = vpack.c.b16 %v274, %v273
        %vm279 = vcmask 261120
        %v281 = vsel %vm279, %v263, 0
        %v284 = vsel %vm279, %v264, 0
        %v287 = vsel %vm279, %v265, 0
        %v290 = vsel %vm279, %v266, 0
        %292 = vmatprep.subr.bf16.mxu0 0
        %293 = vmatpush1.bf16.msra.mxu0 %v275
        %294 = vmatprep.subr.bf16.mxu0 0
        %295 = vmatpush1.bf16.msra.mxu0 %v276
        %296 = vmatprep.subr.bf16.mxu0 0
        %297 = vmatpush1.bf16.msra.mxu0 0
        %298 = vmatprep.subr.bf16.mxu0 0
        %299 = vmatpush1.bf16.msra.mxu0 0
        %300 = vmatprep.subr.bf16.mxu0 0
        %301 = vmatpush1.bf16.msra.mxu0 0
        %302 = vmatprep.subr.bf16.mxu0 0
        %303 = vmatpush1.bf16.msra.mxu0 0
        %304 = vmatprep.subr.bf16.mxu0 0
        %305 = vmatpush1.bf16.msra.mxu0 0
        %306 = vmatprep.subr.bf16.mxu0 0
        %307 = vmatpush1.bf16.msra.mxu0 0
        %308 = vmatprep.subr.bf16.mxu0 0
        %309 = vmatpush1.bf16.msra.mxu0 0
        %310 = vmatprep.subr.bf16.mxu0 0
        %311 = vmatpush1.bf16.msra.mxu0 0
        %312 = vmatprep.subr.bf16.mxu0 0
        %313 = vmatpush1.bf16.msra.mxu0 0
        %314 = vmatprep.subr.bf16.mxu0 0
        %315 = vmatpush1.bf16.msra.mxu0 0
        %316 = vmatprep.subr.bf16.mxu0 0
        %317 = vmatpush1.bf16.msra.mxu0 0
        %318 = vmatprep.subr.bf16.mxu0 0
        %319 = vmatpush1.bf16.msra.mxu0 0
        %320 = vmatprep.subr.bf16.mxu0 0
        %321 = vmatpush1.bf16.msra.mxu0 0
        %322 = vmatprep.subr.bf16.mxu0 0
        %323 = vmatpush1.bf16.msra.mxu0 0
        %324 = vmatprep.mubr.bf16.mxu0 0
        %325 = vmatmul.mubr.bf16.gmra.mrb[0].mxu0 %v281
        %v326 = vpop.f32.mrb[0].mxu0
        %v327 = vadd.f32 %v245, %v326
        %v328 = vpop.f32.mrb[0].mxu0
        %v329 = vpop.f32.mrb[0].mxu0
        %v330 = vadd.f32 %v245, %v329
        %v331 = vpop.f32.mrb[0].mxu0
        %332 = vmatprep.mubr.bf16.mxu0 0
        %333 = vmatmul.mubr.bf16.gmra.mrb[0].mxu0 %v284
        %v334 = vpop.f32.mrb[0].mxu0
        %v335 = vadd.f32 %v245, %v334
        %v336 = vpop.f32.mrb[0].mxu0
        %v337 = vpop.f32.mrb[0].mxu0
        %v338 = vadd.f32 %v245, %v337
        %v339 = vpop.f32.mrb[0].mxu0
        %340 = vmatprep.mubr.bf16.mxu0 0
        %341 = vmatmul.mubr.bf16.gmra.mrb[0].mxu0 %v287
        %v342 = vpop.f32.mrb[0].mxu0
        %v343 = vadd.f32 %v245, %v342
        %v344 = vpop.f32.mrb[0].mxu0
        %v345 = vpop.f32.mrb[0].mxu0
        %v346 = vadd.f32 %v245, %v345
        %v347 = vpop.f32.mrb[0].mxu0
        %348 = vmatprep.mubr.bf16.mxu0 0
        %349 = vmatmul.mubr.bf16.gmra.mrb[0].mxu0 %v290
        %v350 = vpop.f32.mrb[0].mxu0
        %v351 = vadd.f32 %v245, %v350
        %v352 = vpop.f32.mrb[0].mxu0
        %v353 = vpop.f32.mrb[0].mxu0
        %v354 = vadd.f32 %v245, %v353
        %v355 = vpop.f32.mrb[0].mxu0
        %356 = vdwg.mxu0
        %v357 = vmul.f32 %v327, 0.5
        %v358 = vmul.f32 %v330, 0.5
        %v359 = vmul.f32 %v335, 0.5
        %v360 = vmul.f32 %v338, 0.5
        %v361 = vmul.f32 %v343, 0.5
        %v362 = vmul.f32 %v346, 0.5
        %v363 = vmul.f32 %v351, 0.5
        %v364 = vmul.f32 %v354, 0.5
        %v365 = vmul.f32 %v327, 0.70710677
        %v366 = vmul.f32 %v330, 0.70710677
        %v367 = vmul.f32 %v335, 0.70710677
        %v368 = vmul.f32 %v338, 0.70710677
        %v369 = vmul.f32 %v343, 0.70710677
        %v370 = vmul.f32 %v346, 0.70710677
        %v371 = vmul.f32 %v351, 0.70710677
        %v372 = vmul.f32 %v354, 0.70710677
        %v373 = vand.u32 2147483647, %v365
        %v374 = vand.u32 2147483647, %v366
        %v375 = vand.u32 2147483647, %v367
        %v376 = vand.u32 2147483647, %v368
        %v377 = vand.u32 2147483647, %v369
        %v378 = vand.u32 2147483647, %v370
        %v379 = vand.u32 2147483647, %v371
        %v380 = vand.u32 2147483647, %v372
        %v381 = vmul.f32 %v373, 0.3275911
        %v382 = vmul.f32 %v374, 0.3275911
        %v383 = vmul.f32 %v375, 0.3275911
        %v384 = vmul.f32 %v376, 0.3275911
        %v385 = vmul.f32 %v377, 0.3275911
        %v386 = vmul.f32 %v378, 0.3275911
        %v387 = vmul.f32 %v379, 0.3275911
        %v388 = vmul.f32 %v380, 0.3275911
        %v389 = vadd.f32 %v381, 1.0
        %v390 = vadd.f32 %v382, 1.0
        %v391 = vadd.f32 %v383, 1.0
        %v392 = vadd.f32 %v384, 1.0
        %v393 = vadd.f32 %v385, 1.0
        %v394 = vadd.f32 %v386, 1.0
        %v395 = vadd.f32 %v387, 1.0
        %v396 = vadd.f32 %v388, 1.0
        %v397 = vrcp.pop %v389
        %v398 = vrcp.pop %v390
        %v399 = vrcp.pop %v391
        %v400 = vrcp.pop %v392
        %v401 = vrcp.pop %v393
        %v402 = vrcp.pop %v394
        %v403 = vrcp.pop %v395
        %v404 = vrcp.pop %v396
        %v405 = vmul.f32 %v397, 1.0614054
        %v406 = vmul.f32 %v398, 1.0614054
        %v407 = vmul.f32 %v399, 1.0614054
        %v408 = vmul.f32 %v400, 1.0614054
        %v409 = vmul.f32 %v401, 1.0614054
        %v410 = vmul.f32 %v402, 1.0614054
        %v411 = vmul.f32 %v403, 1.0614054
        %v412 = vmul.f32 %v404, 1.0614054
        %v413 = vadd.f32 %v405, -1.4531521
        %v414 = vadd.f32 %v406, -1.4531521
        %v415 = vadd.f32 %v407, -1.4531521
        %v416 = vadd.f32 %v408, -1.4531521
        %v417 = vadd.f32 %v409, -1.4531521
        %v418 = vadd.f32 %v410, -1.4531521
        %v419 = vadd.f32 %v411, -1.4531521
        %v420 = vadd.f32 %v412, -1.4531521
        %v421 = vmul.f32 %v413, %v397
        %v422 = vmul.f32 %v414, %v398
        %v423 = vmul.f32 %v415, %v399
        %v424 = vmul.f32 %v416, %v400
        %v425 = vmul.f32 %v417, %v401
        %v426 = vmul.f32 %v418, %v402
        %v427 = vmul.f32 %v419, %v403
        %v428 = vmul.f32 %v420, %v404
        %v429 = vadd.f32 %v421, 1.4214138
        %v430 = vadd.f32 %v422, 1.4214138
        %v431 = vadd.f32 %v423, 1.4214138
        %v432 = vadd.f32 %v424, 1.4214138
        %v433 = vadd.f32 %v425, 1.4214138
        %v434 = vadd.f32 %v426, 1.4214138
        %v435 = vadd.f32 %v427, 1.4214138
        %v436 = vadd.f32 %v428, 1.4214138
        %v437 = vmul.f32 %v429, %v397
        %v438 = vmul.f32 %v430, %v398
        %v439 = vmul.f32 %v431, %v399
        %v440 = vmul.f32 %v432, %v400
        %v441 = vmul.f32 %v433, %v401
        %v442 = vmul.f32 %v434, %v402
        %v443 = vmul.f32 %v435, %v403
        %v444 = vmul.f32 %v436, %v404
        %v445 = vadd.f32 %v437, -0.28449672
        %v446 = vadd.f32 %v438, -0.28449672
        %v447 = vadd.f32 %v439, -0.28449672
        %v448 = vadd.f32 %v440, -0.28449672
        %v449 = vadd.f32 %v441, -0.28449672
        %v450 = vadd.f32 %v442, -0.28449672
        %v451 = vadd.f32 %v443, -0.28449672
        %v452 = vadd.f32 %v444, -0.28449672
        %v453 = vmul.f32 %v445, %v397
        %v454 = vmul.f32 %v446, %v398
        %v455 = vmul.f32 %v447, %v399
        %v456 = vmul.f32 %v448, %v400
        %v457 = vmul.f32 %v449, %v401
        %v458 = vmul.f32 %v450, %v402
        %v459 = vmul.f32 %v451, %v403
        %v460 = vmul.f32 %v452, %v404
        %v461 = vadd.f32 %v453, 0.2548296
        %v462 = vadd.f32 %v454, 0.2548296
        %v463 = vadd.f32 %v455, 0.2548296
        %v464 = vadd.f32 %v456, 0.2548296
        %v465 = vadd.f32 %v457, 0.2548296
        %v466 = vadd.f32 %v458, 0.2548296
        %v467 = vadd.f32 %v459, 0.2548296
        %v468 = vadd.f32 %v460, 0.2548296
        %v469 = vmul.f32 %v461, %v397
        %v470 = vmul.f32 %v462, %v398
        %v471 = vmul.f32 %v463, %v399
        %v472 = vmul.f32 %v464, %v400
        %v473 = vmul.f32 %v465, %v401
        %v474 = vmul.f32 %v466, %v402
        %v475 = vmul.f32 %v467, %v403
        %v476 = vmul.f32 %v468, %v404
        %v477 = vsub.f32 0.0, %v373
        %v478 = vsub.f32 0.0, %v374
        %v479 = vsub.f32 0.0, %v375
        %v480 = vsub.f32 0.0, %v376
        %v481 = vsub.f32 0.0, %v377
        %v482 = vsub.f32 0.0, %v378
        %v483 = vsub.f32 0.0, %v379
        %v484 = vsub.f32 0.0, %v380
        %v485 = vmul.f32 %v477, %v373
        %v486 = vmul.f32 %v478, %v374
        %v487 = vmul.f32 %v479, %v375
        %v488 = vmul.f32 %v480, %v376
        %v489 = vmul.f32 %v481, %v377
        %v490 = vmul.f32 %v482, %v378
        %v491 = vmul.f32 %v483, %v379
        %v492 = vmul.f32 %v484, %v380
        %v493 = vmul.f32 %v485, 1.442695
        %v494 = vpow.pop %v493
        %v495 = vmul.f32 %v486, 1.442695
        %v496 = vpow.pop %v495
        %v497 = vmul.f32 %v487, 1.442695
        %v498 = vpow.pop %v497
        %v499 = vmul.f32 %v488, 1.442695
        %v500 = vpow.pop %v499
        %v501 = vmul.f32 %v489, 1.442695
        %v502 = vpow.pop %v501
        %v503 = vmul.f32 %v490, 1.442695
        %v504 = vpow.pop %v503
        %v505 = vmul.f32 %v491, 1.442695
        %v506 = vpow.pop %v505
        %v507 = vmul.f32 %v492, 1.442695
        %v508 = vpow.pop %v507
        %v509 = vmul.f32 %v469, %v494
        %v510 = vmul.f32 %v470, %v496
        %v511 = vmul.f32 %v471, %v498
        %v512 = vmul.f32 %v472, %v500
        %v513 = vmul.f32 %v473, %v502
        %v514 = vmul.f32 %v474, %v504
        %v515 = vmul.f32 %v475, %v506
        %v516 = vmul.f32 %v476, %v508
        %v517 = vsub.f32 1.0, %v509
        %v518 = vsub.f32 1.0, %v510
        %v519 = vsub.f32 1.0, %v511
        %v520 = vsub.f32 1.0, %v512
        %v521 = vsub.f32 1.0, %v513
        %v522 = vsub.f32 1.0, %v514
        %v523 = vsub.f32 1.0, %v515
        %v524 = vsub.f32 1.0, %v516
        %vm525 = vcmp.ge.f32.partialorder %v365, 0.0
        %vm526 = vcmp.ge.f32.partialorder %v366, 0.0
        %vm527 = vcmp.ge.f32.partialorder %v367, 0.0
        %vm528 = vcmp.ge.f32.partialorder %v368, 0.0
        %vm529 = vcmp.ge.f32.partialorder %v369, 0.0
        %vm530 = vcmp.ge.f32.partialorder %v370, 0.0
        %vm531 = vcmp.ge.f32.partialorder %v371, 0.0
        %vm532 = vcmp.ge.f32.partialorder %v372, 0.0
        %v533 = vsub.f32 0.0, %v517
        %v534 = vsub.f32 0.0, %v518
        %v535 = vsub.f32 0.0, %v519
        %v536 = vsub.f32 0.0, %v520
        %v537 = vsub.f32 0.0, %v521
        %v538 = vsub.f32 0.0, %v522
        %v539 = vsub.f32 0.0, %v523
        %v540 = vsub.f32 0.0, %v524
        %v541 = vsel %vm525, %v517, %v533
        %v542 = vsel %vm526, %v518, %v534
        %v543 = vsel %vm527, %v519, %v535
        %v544 = vsel %vm528, %v520, %v536
        %v545 = vsel %vm529, %v521, %v537
        %v546 = vsel %vm530, %v522, %v538
        %v547 = vsel %vm531, %v523, %v539
        %v548 = vsel %vm532, %v524, %v540
        %v549 = vadd.f32 %v541, 1.0
        %v550 = vadd.f32 %v542, 1.0
        %v551 = vadd.f32 %v543, 1.0
        %v552 = vadd.f32 %v544, 1.0
        %v553 = vadd.f32 %v545, 1.0
        %v554 = vadd.f32 %v546, 1.0
        %v555 = vadd.f32 %v547, 1.0
        %v556 = vadd.f32 %v548, 1.0
        %v557 = vmul.f32 %v357, %v549
        %v558 = vmul.f32 %v358, %v550
        %v559 = vmul.f32 %v359, %v551
        %v560 = vmul.f32 %v360, %v552
        %v561 = vmul.f32 %v361, %v553
        %v562 = vmul.f32 %v362, %v554
        %v563 = vmul.f32 %v363, %v555
        %v564 = vmul.f32 %v364, %v556
        %v565 = vpack.c.bf16 %v558, %v557
        %v566 = vpack.c.bf16 %v560, %v559
        %v567 = vpack.c.bf16 %v562, %v561
        %v568 = vpack.c.bf16 %v564, %v563
        %v570 = vlaneseq
        %v571 = vshrl.u32 %v570, 7
        %v572 = vsub.s32 0, %v571
        %v573 = vrot.slane %v235, %v572
        %v579 = vunpack.c.l.b16 %v231
        %v580 = vunpack.c.l.b16 %v232
        %v581 = vunpack.c.l.b16 %v233
        %v582 = vunpack.c.l.b16 %v234
        %v583 = vpack.c.b16 %v580, %v579
        %v584 = vpack.c.b16 %v582, %v581
        %v588 = vsel %vm279, %v565, 0
        %v591 = vsel %vm279, %v566, 0
        %v594 = vsel %vm279, %v567, 0
        %v597 = vsel %vm279, %v568, 0
        %599 = vmatprep.subr.bf16.mxu0 0
        %600 = vmatpush1.bf16.msra.mxu0 %v583
        %601 = vmatprep.subr.bf16.mxu0 0
        %602 = vmatpush1.bf16.msra.mxu0 %v584
        %603 = vmatprep.subr.bf16.mxu0 0
        %604 = vmatpush1.bf16.msra.mxu0 0
        %605 = vmatprep.subr.bf16.mxu0 0
        %606 = vmatpush1.bf16.msra.mxu0 0
        %607 = vmatprep.subr.bf16.mxu0 0
        %608 = vmatpush1.bf16.msra.mxu0 0
        %609 = vmatprep.subr.bf16.mxu0 0
        %610 = vmatpush1.bf16.msra.mxu0 0
        %611 = vmatprep.subr.bf16.mxu0 0
        %612 = vmatpush1.bf16.msra.mxu0 0
        %613 = vmatprep.subr.bf16.mxu0 0
        %614 = vmatpush1.bf16.msra.mxu0 0
        %615 = vmatprep.subr.bf16.mxu0 0
        %616 = vmatpush1.bf16.msra.mxu0 0
        %617 = vmatprep.subr.bf16.mxu0 0
        %618 = vmatpush1.bf16.msra.mxu0 0
        %619 = vmatprep.subr.bf16.mxu0 0
        %620 = vmatpush1.bf16.msra.mxu0 0
        %621 = vmatprep.subr.bf16.mxu0 0
        %622 = vmatpush1.bf16.msra.mxu0 0
        %623 = vmatprep.subr.bf16.mxu0 0
        %624 = vmatpush1.bf16.msra.mxu0 0
        %625 = vmatprep.subr.bf16.mxu0 0
        %626 = vmatpush1.bf16.msra.mxu0 0
        %627 = vmatprep.subr.bf16.mxu0 0
        %628 = vmatpush1.bf16.msra.mxu0 0
        %629 = vmatprep.subr.bf16.mxu0 0
        %630 = vmatpush1.bf16.msra.mxu0 0
        %631 = vmatprep.mubr.bf16.mxu0 0
        %632 = vmatmul.mubr.bf16.gmra.mrb[0].mxu0 %v588
        %v633 = vpop.f32.mrb[0].mxu0
        %v634 = vadd.f32 %v573, %v633
        %v635 = vpop.f32.mrb[0].mxu0
        %v636 = vpop.f32.mrb[0].mxu0
        %v637 = vadd.f32 %v573, %v636
        %v638 = vpop.f32.mrb[0].mxu0
        %639 = vmatprep.mubr.bf16.mxu0 0
        %640 = vmatmul.mubr.bf16.gmra.mrb[0].mxu0 %v591
        %v641 = vpop.f32.mrb[0].mxu0
        %v642 = vadd.f32 %v573, %v641
        %v643 = vpop.f32.mrb[0].mxu0
        %v644 = vpop.f32.mrb[0].mxu0
        %v645 = vadd.f32 %v573, %v644
        %v646 = vpop.f32.mrb[0].mxu0
        %647 = vmatprep.mubr.bf16.mxu0 0
        %648 = vmatmul.mubr.bf16.gmra.mrb[0].mxu0 %v594
        %v649 = vpop.f32.mrb[0].mxu0
        %v650 = vadd.f32 %v573, %v649
        %v651 = vpop.f32.mrb[0].mxu0
        %v652 = vpop.f32.mrb[0].mxu0
        %v653 = vadd.f32 %v573, %v652
        %v654 = vpop.f32.mrb[0].mxu0
        %655 = vmatprep.mubr.bf16.mxu0 0
        %656 = vmatmul.mubr.bf16.gmra.mrb[0].mxu0 %v597
        %v657 = vpop.f32.mrb[0].mxu0
        %v658 = vadd.f32 %v573, %v657
        %v659 = vpop.f32.mrb[0].mxu0
        %v660 = vpop.f32.mrb[0].mxu0
        %v661 = vadd.f32 %v573, %v660
        %v662 = vpop.f32.mrb[0].mxu0
        %663 = vdwg.mxu0
        %664 = vst.msk [vmem:[%s214] sm:$0xff] %vm279, %v634
        %665 = vst.msk [vmem:[%s214 + $0x8] sm:$0xff] %vm279, %v637
        %666 = vst.msk [vmem:[%s214 + $0x10] sm:$0xff] %vm279, %v642
        %667 = vst.msk [vmem:[%s214 + $0x18] sm:$0xff] %vm279, %v645
        %668 = vst.msk [vmem:[%s214 + $0x20] sm:$0xff] %vm279, %v650
        %669 = vst.msk [vmem:[%s214 + $0x28] sm:$0xff] %vm279, %v653
        %670 = vst.msk [vmem:[%s214 + $0x30] sm:$0xff] %vm279, %v658
        %671 = vst.msk [vmem:[%s214 + $0x38] sm:$0xff] %vm279, %v661
        %s672 = scalar_lea.vmem %s1, 16
        %v673 = vld [vmem:[%s672] sm:$0xf]
        %v674 = vld [vmem:[%s672 + $0x4] sm:$0xf]
        %v675 = vld [vmem:[%s672 + $0x8] sm:$0xf]
        %v676 = vld [vmem:[%s672 + $0xc] sm:$0xf]
        %s677 = scalar_lea.vmem %s2, 1
        %v678 = vld [vmem:[%s677] sm:$0x1]
        %v680 = vlaneseq
        %v681 = vshrl.u32 %v680, 7
        %v682 = vsub.s32 0, %v681
        %v683 = vrot.slane %v678, %v682
        %v689 = vunpack.c.l.b16 %v673
        %v690 = vunpack.c.l.b16 %v674
        %v691 = vunpack.c.l.b16 %v675
        %v692 = vunpack.c.l.b16 %v676
        %v693 = vpack.c.b16 %v690, %v689
        %v694 = vpack.c.b16 %v692, %v691
        %697 = vmatprep.subr.bf16.mxu0 0
        %698 = vmatpush1.bf16.msra.mxu0 %v693
        %699 = vmatprep.subr.bf16.mxu0 0
        %700 = vmatpush1.bf16.msra.mxu0 %v694
        %701 = vmatprep.subr.bf16.mxu0 0
        %702 = vmatpush1.bf16.msra.mxu0 0
        %703 = vmatprep.subr.bf16.mxu0 0
        %704 = vmatpush1.bf16.msra.mxu0 0
        %705 = vmatprep.subr.bf16.mxu0 0
        %706 = vmatpush1.bf16.msra.mxu0 0
        %707 = vmatprep.subr.bf16.mxu0 0
        %708 = vmatpush1.bf16.msra.mxu0 0
        %709 = vmatprep.subr.bf16.mxu0 0
        %710 = vmatpush1.bf16.msra.mxu0 0
        %711 = vmatprep.subr.bf16.mxu0 0
        %712 = vmatpush1.bf16.msra.mxu0 0
        %713 = vmatprep.subr.bf16.mxu0 0
        %714 = vmatpush1.bf16.msra.mxu0 0
        %715 = vmatprep.subr.bf16.mxu0 0
        %716 = vmatpush1.bf16.msra.mxu0 0
        %717 = vmatprep.subr.bf16.mxu0 0
        %718 = vmatpush1.bf16.msra.mxu0 0
        %719 = vmatprep.subr.bf16.mxu0 0
        %720 = vmatpush1.bf16.msra.mxu0 0
        %721 = vmatprep.subr.bf16.mxu0 0
        %722 = vmatpush1.bf16.msra.mxu0 0
        %723 = vmatprep.subr.bf16.mxu0 0
        %724 = vmatpush1.bf16.msra.mxu0 0
        %725 = vmatprep.subr.bf16.mxu0 0
        %726 = vmatpush1.bf16.msra.mxu0 0
        %727 = vmatprep.subr.bf16.mxu0 0
        %728 = vmatpush1.bf16.msra.mxu0 0
        %729 = vmatprep.mubr.bf16.mxu0 0
        %730 = vmatmul.mubr.bf16.gmra.mrb[0].mxu0 %v281
        %v731 = vpop.f32.mrb[0].mxu0
        %v732 = vadd.f32 %v683, %v731
        %v733 = vpop.f32.mrb[0].mxu0
        %v734 = vpop.f32.mrb[0].mxu0
        %v735 = vadd.f32 %v683, %v734
        %v736 = vpop.f32.mrb[0].mxu0
        %737 = vmatprep.mubr.bf16.mxu0 0
        %738 = vmatmul.mubr.bf16.gmra.mrb[0].mxu0 %v284
        %v739 = vpop.f32.mrb[0].mxu0
        %v740 = vadd.f32 %v683, %v739
        %v741 = vpop.f32.mrb[0].mxu0
        %v742 = vpop.f32.mrb[0].mxu0
        %v743 = vadd.f32 %v683, %v742
        %v744 = vpop.f32.mrb[0].mxu0
        %745 = vmatprep.mubr.bf16.mxu0 0
        %746 = vmatmul.mubr.bf16.gmra.mrb[0].mxu0 %v287
        %v747 = vpop.f32.mrb[0].mxu0
        %v748 = vadd.f32 %v683, %v747
        %v749 = vpop.f32.mrb[0].mxu0
        %v750 = vpop.f32.mrb[0].mxu0
        %v751 = vadd.f32 %v683, %v750
        %v752 = vpop.f32.mrb[0].mxu0
        %753 = vmatprep.mubr.bf16.mxu0 0
        %754 = vmatmul.mubr.bf16.gmra.mrb[0].mxu0 %v290
        %v755 = vpop.f32.mrb[0].mxu0
        %v756 = vadd.f32 %v683, %v755
        %v757 = vpop.f32.mrb[0].mxu0
        %v758 = vpop.f32.mrb[0].mxu0
        %v759 = vadd.f32 %v683, %v758
        %v760 = vpop.f32.mrb[0].mxu0
        %761 = vdwg.mxu0
        %v762 = vmul.f32 %v732, 0.5
        %v763 = vmul.f32 %v735, 0.5
        %v764 = vmul.f32 %v740, 0.5
        %v765 = vmul.f32 %v743, 0.5
        %v766 = vmul.f32 %v748, 0.5
        %v767 = vmul.f32 %v751, 0.5
        %v768 = vmul.f32 %v756, 0.5
        %v769 = vmul.f32 %v759, 0.5
        %v770 = vmul.f32 %v732, 0.70710677
        %v771 = vmul.f32 %v735, 0.70710677
        %v772 = vmul.f32 %v740, 0.70710677
        %v773 = vmul.f32 %v743, 0.70710677
        %v774 = vmul.f32 %v748, 0.70710677
        %v775 = vmul.f32 %v751, 0.70710677
        %v776 = vmul.f32 %v756, 0.70710677
        %v777 = vmul.f32 %v759, 0.70710677
        %v778 = vand.u32 2147483647, %v770
        %v779 = vand.u32 2147483647, %v771
        %v780 = vand.u32 2147483647, %v772
        %v781 = vand.u32 2147483647, %v773
        %v782 = vand.u32 2147483647, %v774
        %v783 = vand.u32 2147483647, %v775
        %v784 = vand.u32 2147483647, %v776
        %v785 = vand.u32 2147483647, %v777
        %v786 = vmul.f32 %v778, 0.3275911
        %v787 = vmul.f32 %v779, 0.3275911
        %v788 = vmul.f32 %v780, 0.3275911
        %v789 = vmul.f32 %v781, 0.3275911
        %v790 = vmul.f32 %v782, 0.3275911
        %v791 = vmul.f32 %v783, 0.3275911
        %v792 = vmul.f32 %v784, 0.3275911
        %v793 = vmul.f32 %v785, 0.3275911
        %v794 = vadd.f32 %v786, 1.0
        %v795 = vadd.f32 %v787, 1.0
        %v796 = vadd.f32 %v788, 1.0
        %v797 = vadd.f32 %v789, 1.0
        %v798 = vadd.f32 %v790, 1.0
        %v799 = vadd.f32 %v791, 1.0
        %v800 = vadd.f32 %v792, 1.0
        %v801 = vadd.f32 %v793, 1.0
        %v802 = vrcp.pop %v794
        %v803 = vrcp.pop %v795
        %v804 = vrcp.pop %v796
        %v805 = vrcp.pop %v797
        %v806 = vrcp.pop %v798
        %v807 = vrcp.pop %v799
        %v808 = vrcp.pop %v800
        %v809 = vrcp.pop %v801
        %v810 = vmul.f32 %v802, 1.0614054
        %v811 = vmul.f32 %v803, 1.0614054
        %v812 = vmul.f32 %v804, 1.0614054
        %v813 = vmul.f32 %v805, 1.0614054
        %v814 = vmul.f32 %v806, 1.0614054
        %v815 = vmul.f32 %v807, 1.0614054
        %v816 = vmul.f32 %v808, 1.0614054
        %v817 = vmul.f32 %v809, 1.0614054
        %v818 = vadd.f32 %v810, -1.4531521
        %v819 = vadd.f32 %v811, -1.4531521
        %v820 = vadd.f32 %v812, -1.4531521
        %v821 = vadd.f32 %v813, -1.4531521
        %v822 = vadd.f32 %v814, -1.4531521
        %v823 = vadd.f32 %v815, -1.4531521
        %v824 = vadd.f32 %v816, -1.4531521
        %v825 = vadd.f32 %v817, -1.4531521
        %v826 = vmul.f32 %v818, %v802
        %v827 = vmul.f32 %v819, %v803
        %v828 = vmul.f32 %v820, %v804
        %v829 = vmul.f32 %v821, %v805
        %v830 = vmul.f32 %v822, %v806
        %v831 = vmul.f32 %v823, %v807
        %v832 = vmul.f32 %v824, %v808
        %v833 = vmul.f32 %v825, %v809
        %v834 = vadd.f32 %v826, 1.4214138
        %v835 = vadd.f32 %v827, 1.4214138
        %v836 = vadd.f32 %v828, 1.4214138
        %v837 = vadd.f32 %v829, 1.4214138
        %v838 = vadd.f32 %v830, 1.4214138
        %v839 = vadd.f32 %v831, 1.4214138
        %v840 = vadd.f32 %v832, 1.4214138
        %v841 = vadd.f32 %v833, 1.4214138
        %v842 = vmul.f32 %v834, %v802
        %v843 = vmul.f32 %v835, %v803
        %v844 = vmul.f32 %v836, %v804
        %v845 = vmul.f32 %v837, %v805
        %v846 = vmul.f32 %v838, %v806
        %v847 = vmul.f32 %v839, %v807
        %v848 = vmul.f32 %v840, %v808
        %v849 = vmul.f32 %v841, %v809
        %v850 = vadd.f32 %v842, -0.28449672
        %v851 = vadd.f32 %v843, -0.28449672
        %v852 = vadd.f32 %v844, -0.28449672
        %v853 = vadd.f32 %v845, -0.28449672
        %v854 = vadd.f32 %v846, -0.28449672
        %v855 = vadd.f32 %v847, -0.28449672
        %v856 = vadd.f32 %v848, -0.28449672
        %v857 = vadd.f32 %v849, -0.28449672
        %v858 = vmul.f32 %v850, %v802
        %v859 = vmul.f32 %v851, %v803
        %v860 = vmul.f32 %v852, %v804
        %v861 = vmul.f32 %v853, %v805
        %v862 = vmul.f32 %v854, %v806
        %v863 = vmul.f32 %v855, %v807
        %v864 = vmul.f32 %v856, %v808
        %v865 = vmul.f32 %v857, %v809
        %v866 = vadd.f32 %v858, 0.2548296
        %v867 = vadd.f32 %v859, 0.2548296
        %v868 = vadd.f32 %v860, 0.2548296
        %v869 = vadd.f32 %v861, 0.2548296
        %v870 = vadd.f32 %v862, 0.2548296
        %v871 = vadd.f32 %v863, 0.2548296
        %v872 = vadd.f32 %v864, 0.2548296
        %v873 = vadd.f32 %v865, 0.2548296
        %v874 = vmul.f32 %v866, %v802
        %v875 = vmul.f32 %v867, %v803
        %v876 = vmul.f32 %v868, %v804
        %v877 = vmul.f32 %v869, %v805
        %v878 = vmul.f32 %v870, %v806
        %v879 = vmul.f32 %v871, %v807
        %v880 = vmul.f32 %v872, %v808
        %v881 = vmul.f32 %v873, %v809
        %v882 = vsub.f32 0.0, %v778
        %v883 = vsub.f32 0.0, %v779
        %v884 = vsub.f32 0.0, %v780
        %v885 = vsub.f32 0.0, %v781
        %v886 = vsub.f32 0.0, %v782
        %v887 = vsub.f32 0.0, %v783
        %v888 = vsub.f32 0.0, %v784
        %v889 = vsub.f32 0.0, %v785
        %v890 = vmul.f32 %v882, %v778
        %v891 = vmul.f32 %v883, %v779
        %v892 = vmul.f32 %v884, %v780
        %v893 = vmul.f32 %v885, %v781
        %v894 = vmul.f32 %v886, %v782
        %v895 = vmul.f32 %v887, %v783
        %v896 = vmul.f32 %v888, %v784
        %v897 = vmul.f32 %v889, %v785
        %v898 = vmul.f32 %v890, 1.442695
        %v899 = vpow.pop %v898
        %v900 = vmul.f32 %v891, 1.442695
        %v901 = vpow.pop %v900
        %v902 = vmul.f32 %v892, 1.442695
        %v903 = vpow.pop %v902
        %v904 = vmul.f32 %v893, 1.442695
        %v905 = vpow.pop %v904
        %v906 = vmul.f32 %v894, 1.442695
        %v907 = vpow.pop %v906
        %v908 = vmul.f32 %v895, 1.442695
        %v909 = vpow.pop %v908
        %v910 = vmul.f32 %v896, 1.442695
        %v911 = vpow.pop %v910
        %v912 = vmul.f32 %v897, 1.442695
        %v913 = vpow.pop %v912
        %v914 = vmul.f32 %v874, %v899
        %v915 = vmul.f32 %v875, %v901
        %v916 = vmul.f32 %v876, %v903
        %v917 = vmul.f32 %v877, %v905
        %v918 = vmul.f32 %v878, %v907
        %v919 = vmul.f32 %v879, %v909
        %v920 = vmul.f32 %v880, %v911
        %v921 = vmul.f32 %v881, %v913
        %v922 = vsub.f32 1.0, %v914
        %v923 = vsub.f32 1.0, %v915
        %v924 = vsub.f32 1.0, %v916
        %v925 = vsub.f32 1.0, %v917
        %v926 = vsub.f32 1.0, %v918
        %v927 = vsub.f32 1.0, %v919
        %v928 = vsub.f32 1.0, %v920
        %v929 = vsub.f32 1.0, %v921
        %vm930 = vcmp.ge.f32.partialorder %v770, 0.0
        %vm931 = vcmp.ge.f32.partialorder %v771, 0.0
        %vm932 = vcmp.ge.f32.partialorder %v772, 0.0
        %vm933 = vcmp.ge.f32.partialorder %v773, 0.0
        %vm934 = vcmp.ge.f32.partialorder %v774, 0.0
        %vm935 = vcmp.ge.f32.partialorder %v775, 0.0
        %vm936 = vcmp.ge.f32.partialorder %v776, 0.0
        %vm937 = vcmp.ge.f32.partialorder %v777, 0.0
        %v938 = vsub.f32 0.0, %v922
        %v939 = vsub.f32 0.0, %v923
        %v940 = vsub.f32 0.0, %v924
        %v941 = vsub.f32 0.0, %v925
        %v942 = vsub.f32 0.0, %v926
        %v943 = vsub.f32 0.0, %v927
        %v944 = vsub.f32 0.0, %v928
        %v945 = vsub.f32 0.0, %v929
        %v946 = vsel %vm930, %v922, %v938
        %v947 = vsel %vm931, %v923, %v939
        %v948 = vsel %vm932, %v924, %v940
        %v949 = vsel %vm933, %v925, %v941
        %v950 = vsel %vm934, %v926, %v942
        %v951 = vsel %vm935, %v927, %v943
        %v952 = vsel %vm936, %v928, %v944
        %v953 = vsel %vm937, %v929, %v945
        %v954 = vadd.f32 %v946, 1.0
        %v955 = vadd.f32 %v947, 1.0
        %v956 = vadd.f32 %v948, 1.0
        %v957 = vadd.f32 %v949, 1.0
        %v958 = vadd.f32 %v950, 1.0
        %v959 = vadd.f32 %v951, 1.0
        %v960 = vadd.f32 %v952, 1.0
        %v961 = vadd.f32 %v953, 1.0
        %v962 = vmul.f32 %v762, %v954
        %v963 = vmul.f32 %v763, %v955
        %v964 = vmul.f32 %v764, %v956
        %v965 = vmul.f32 %v765, %v957
        %v966 = vmul.f32 %v766, %v958
        %v967 = vmul.f32 %v767, %v959
        %v968 = vmul.f32 %v768, %v960
        %v969 = vmul.f32 %v769, %v961
        %v970 = vpack.c.bf16 %v963, %v962
        %v971 = vpack.c.bf16 %v965, %v964
        %v972 = vpack.c.bf16 %v967, %v966
        %v973 = vpack.c.bf16 %v969, %v968
        %v975 = vsel %vm279, %v970, 0
        %v978 = vsel %vm279, %v971, 0
        %v981 = vsel %vm279, %v972, 0
        %v984 = vsel %vm279, %v973, 0
        %986 = vmatprep.subr.bf16.mxu0 0
        %987 = vmatpush1.bf16.msra.mxu0 %v583
        %988 = vmatprep.subr.bf16.mxu0 0
        %989 = vmatpush1.bf16.msra.mxu0 %v584
        %990 = vmatprep.subr.bf16.mxu0 0
        %991 = vmatpush1.bf16.msra.mxu0 0
        %992 = vmatprep.subr.bf16.mxu0 0
        %993 = vmatpush1.bf16.msra.mxu0 0
        %994 = vmatprep.subr.bf16.mxu0 0
        %995 = vmatpush1.bf16.msra.mxu0 0
        %996 = vmatprep.subr.bf16.mxu0 0
        %997 = vmatpush1.bf16.msra.mxu0 0
        %998 = vmatprep.subr.bf16.mxu0 0
        %999 = vmatpush1.bf16.msra.mxu0 0
        %1000 = vmatprep.subr.bf16.mxu0 0
        %1001 = vmatpush1.bf16.msra.mxu0 0
        %1002 = vmatprep.subr.bf16.mxu0 0
        %1003 = vmatpush1.bf16.msra.mxu0 0
        %1004 = vmatprep.subr.bf16.mxu0 0
        %1005 = vmatpush1.bf16.msra.mxu0 0
        %1006 = vmatprep.subr.bf16.mxu0 0
        %1007 = vmatpush1.bf16.msra.mxu0 0
        %1008 = vmatprep.subr.bf16.mxu0 0
        %1009 = vmatpush1.bf16.msra.mxu0 0
        %1010 = vmatprep.subr.bf16.mxu0 0
        %1011 = vmatpush1.bf16.msra.mxu0 0
        %1012 = vmatprep.subr.bf16.mxu0 0
        %1013 = vmatpush1.bf16.msra.mxu0 0
        %1014 = vmatprep.subr.bf16.mxu0 0
        %1015 = vmatpush1.bf16.msra.mxu0 0
        %1016 = vmatprep.subr.bf16.mxu0 0
        %1017 = vmatpush1.bf16.msra.mxu0 0
        %1018 = vmatprep.mubr.bf16.mxu0 0
        %1019 = vmatmul.mubr.bf16.gmra.mrb[0].mxu0 %v975
        %v1020 = vpop.f32.mrb[0].mxu0
        %v1021 = vadd.f32 %v573, %v1020
        %v1022 = vpop.f32.mrb[0].mxu0
        %v1023 = vpop.f32.mrb[0].mxu0
        %v1024 = vadd.f32 %v573, %v1023
        %v1025 = vpop.f32.mrb[0].mxu0
        %1026 = vmatprep.mubr.bf16.mxu0 0
        %1027 = vmatmul.mubr.bf16.gmra.mrb[0].mxu0 %v978
        %v1028 = vpop.f32.mrb[0].mxu0
        %v1029 = vadd.f32 %v573, %v1028
        %v1030 = vpop.f32.mrb[0].mxu0
        %v1031 = vpop.f32.mrb[0].mxu0
        %v1032 = vadd.f32 %v573, %v1031
        %v1033 = vpop.f32.mrb[0].mxu0
        %1034 = vmatprep.mubr.bf16.mxu0 0
        %1035 = vmatmul.mubr.bf16.gmra.mrb[0].mxu0 %v981
        %v1036 = vpop.f32.mrb[0].mxu0
        %v1037 = vadd.f32 %v573, %v1036
        %v1038 = vpop.f32.mrb[0].mxu0
        %v1039 = vpop.f32.mrb[0].mxu0
        %v1040 = vadd.f32 %v573, %v1039
        %v1041 = vpop.f32.mrb[0].mxu0
        %1042 = vmatprep.mubr.bf16.mxu0 0
        %1043 = vmatmul.mubr.bf16.gmra.mrb[0].mxu0 %v984
        %v1044 = vpop.f32.mrb[0].mxu0
        %v1045 = vadd.f32 %v573, %v1044
        %v1046 = vpop.f32.mrb[0].mxu0
        %v1047 = vpop.f32.mrb[0].mxu0
        %v1048 = vadd.f32 %v573, %v1047
        %v1049 = vpop.f32.mrb[0].mxu0
        %1050 = vdwg.mxu0
        %s1051 = scalar_lea.vmem %s214, 64 [#allocation2]
        %1052 = vst.msk [vmem:[%s1051] sm:$0xff] %vm279, %v1021
        %1053 = vst.msk [vmem:[%s1051 + $0x8] sm:$0xff] %vm279, %v1024
        %1054 = vst.msk [vmem:[%s1051 + $0x10] sm:$0xff] %vm279, %v1029
        %1055 = vst.msk [vmem:[%s1051 + $0x18] sm:$0xff] %vm279, %v1032
        %1056 = vst.msk [vmem:[%s1051 + $0x20] sm:$0xff] %vm279, %v1037
        %1057 = vst.msk [vmem:[%s1051 + $0x28] sm:$0xff] %vm279, %v1040
        %1058 = vst.msk [vmem:[%s1051 + $0x30] sm:$0xff] %vm279, %v1045
        %1059 = vst.msk [vmem:[%s1051 + $0x38] sm:$0xff] %vm279, %v1048
        %s1060 = scalar_lea.vmem %s1, 32
        %v1061 = vld [vmem:[%s1060] sm:$0xf]
        %v1062 = vld [vmem:[%s1060 + $0x4] sm:$0xf]
        %v1063 = vld [vmem:[%s1060 + $0x8] sm:$0xf]
        %v1064 = vld [vmem:[%s1060 + $0xc] sm:$0xf]
        %s1065 = scalar_lea.vmem %s2, 2
        %v1066 = vld [vmem:[%s1065] sm:$0x1]
        %v1068 = vlaneseq
        %v1069 = vshrl.u32 %v1068, 7
        %v1070 = vsub.s32 0, %v1069
        %v1071 = vrot.slane %v1066, %v1070
        %v1077 = vunpack.c.l.b16 %v1061
        %v1078 = vunpack.c.l.b16 %v1062
        %v1079 = vunpack.c.l.b16 %v1063
        %v1080 = vunpack.c.l.b16 %v1064
        %v1081 = vpack.c.b16 %v1078, %v1077
        %v1082 = vpack.c.b16 %v1080, %v1079
        %1085 = vmatprep.subr.bf16.mxu0 0
        %1086 = vmatpush1.bf16.msra.mxu0 %v1081
        %1087 = vmatprep.subr.bf16.mxu0 0
        %1088 = vmatpush1.bf16.msra.mxu0 %v1082
        %1089 = vmatprep.subr.bf16.mxu0 0
        %1090 = vmatpush1.bf16.msra.mxu0 0
        %1091 = vmatprep.subr.bf16.mxu0 0
        %1092 = vmatpush1.bf16.msra.mxu0 0
        %1093 = vmatprep.subr.bf16.mxu0 0
        %1094 = vmatpush1.bf16.msra.mxu0 0
        %1095 = vmatprep.subr.bf16.mxu0 0
        %1096 = vmatpush1.bf16.msra.mxu0 0
        %1097 = vmatprep.subr.bf16.mxu0 0
        %1098 = vmatpush1.bf16.msra.mxu0 0
        %1099 = vmatprep.subr.bf16.mxu0 0
        %1100 = vmatpush1.bf16.msra.mxu0 0
        %1101 = vmatprep.subr.bf16.mxu0 0
        %1102 = vmatpush1.bf16.msra.mxu0 0
        %1103 = vmatprep.subr.bf16.mxu0 0
        %1104 = vmatpush1.bf16.msra.mxu0 0
        %1105 = vmatprep.subr.bf16.mxu0 0
        %1106 = vmatpush1.bf16.msra.mxu0 0
        %1107 = vmatprep.subr.bf16.mxu0 0
        %1108 = vmatpush1.bf16.msra.mxu0 0
        %1109 = vmatprep.subr.bf16.mxu0 0
        %1110 = vmatpush1.bf16.msra.mxu0 0
        %1111 = vmatprep.subr.bf16.mxu0 0
        %1112 = vmatpush1.bf16.msra.mxu0 0
        %1113 = vmatprep.subr.bf16.mxu0 0
        %1114 = vmatpush1.bf16.msra.mxu0 0
        %1115 = vmatprep.subr.bf16.mxu0 0
        %1116 = vmatpush1.bf16.msra.mxu0 0
        %1117 = vmatprep.mubr.bf16.mxu0 0
        %1118 = vmatmul.mubr.bf16.gmra.mrb[0].mxu0 %v281
        %v1119 = vpop.f32.mrb[0].mxu0
        %v1120 = vadd.f32 %v1071, %v1119
        %v1121 = vpop.f32.mrb[0].mxu0
        %v1122 = vpop.f32.mrb[0].mxu0
        %v1123 = vadd.f32 %v1071, %v1122
        %v1124 = vpop.f32.mrb[0].mxu0
        %1125 = vmatprep.mubr.bf16.mxu0 0
        %1126 = vmatmul.mubr.bf16.gmra.mrb[0].mxu0 %v284
        %v1127 = vpop.f32.mrb[0].mxu0
        %v1128 = vadd.f32 %v1071, %v1127
        %v1129 = vpop.f32.mrb[0].mxu0
        %v1130 = vpop.f32.mrb[0].mxu0
        %v1131 = vadd.f32 %v1071, %v1130
        %v1132 = vpop.f32.mrb[0].mxu0
        %1133 = vmatprep.mubr.bf16.mxu0 0
        %1134 = vmatmul.mubr.bf16.gmra.mrb[0].mxu0 %v287
        %v1135 = vpop.f32.mrb[0].mxu0
        %v1136 = vadd.f32 %v1071, %v1135
        %v1137 = vpop.f32.mrb[0].mxu0
        %v1138 = vpop.f32.mrb[0].mxu0
        %v1139 = vadd.f32 %v1071, %v1138
        %v1140 = vpop.f32.mrb[0].mxu0
        %1141 = vmatprep.mubr.bf16.mxu0 0
        %1142 = vmatmul.mubr.bf16.gmra.mrb[0].mxu0 %v290
        %v1143 = vpop.f32.mrb[0].mxu0
        %v1144 = vadd.f32 %v1071, %v1143
        %v1145 = vpop.f32.mrb[0].mxu0
        %v1146 = vpop.f32.mrb[0].mxu0
        %v1147 = vadd.f32 %v1071, %v1146
        %v1148 = vpop.f32.mrb[0].mxu0
        %1149 = vdwg.mxu0
        %v1150 = vmul.f32 %v1120, 0.5
        %v1151 = vmul.f32 %v1123, 0.5
        %v1152 = vmul.f32 %v1128, 0.5
        %v1153 = vmul.f32 %v1131, 0.5
        %v1154 = vmul.f32 %v1136, 0.5
        %v1155 = vmul.f32 %v1139, 0.5
        %v1156 = vmul.f32 %v1144, 0.5
        %v1157 = vmul.f32 %v1147, 0.5
        %v1158 = vmul.f32 %v1120, 0.70710677
        %v1159 = vmul.f32 %v1123, 0.70710677
        %v1160 = vmul.f32 %v1128, 0.70710677
        %v1161 = vmul.f32 %v1131, 0.70710677
        %v1162 = vmul.f32 %v1136, 0.70710677
        %v1163 = vmul.f32 %v1139, 0.70710677
        %v1164 = vmul.f32 %v1144, 0.70710677
        %v1165 = vmul.f32 %v1147, 0.70710677
        %v1166 = vand.u32 2147483647, %v1158
        %v1167 = vand.u32 2147483647, %v1159
        %v1168 = vand.u32 2147483647, %v1160
        %v1169 = vand.u32 2147483647, %v1161
        %v1170 = vand.u32 2147483647, %v1162
        %v1171 = vand.u32 2147483647, %v1163
        %v1172 = vand.u32 2147483647, %v1164
        %v1173 = vand.u32 2147483647, %v1165
        %v1174 = vmul.f32 %v1166, 0.3275911
        %v1175 = vmul.f32 %v1167, 0.3275911
        %v1176 = vmul.f32 %v1168, 0.3275911
        %v1177 = vmul.f32 %v1169, 0.3275911
        %v1178 = vmul.f32 %v1170, 0.3275911
        %v1179 = vmul.f32 %v1171, 0.3275911
        %v1180 = vmul.f32 %v1172, 0.3275911
        %v1181 = vmul.f32 %v1173, 0.3275911
        %v1182 = vadd.f32 %v1174, 1.0
        %v1183 = vadd.f32 %v1175, 1.0
        %v1184 = vadd.f32 %v1176, 1.0
        %v1185 = vadd.f32 %v1177, 1.0
        %v1186 = vadd.f32 %v1178, 1.0
        %v1187 = vadd.f32 %v1179, 1.0
        %v1188 = vadd.f32 %v1180, 1.0
        %v1189 = vadd.f32 %v1181, 1.0
        %v1190 = vrcp.pop %v1182
        %v1191 = vrcp.pop %v1183
        %v1192 = vrcp.pop %v1184
        %v1193 = vrcp.pop %v1185
        %v1194 = vrcp.pop %v1186
        %v1195 = vrcp.pop %v1187
        %v1196 = vrcp.pop %v1188
        %v1197 = vrcp.pop %v1189
        %v1198 = vmul.f32 %v1190, 1.0614054
        %v1199 = vmul.f32 %v1191, 1.0614054
        %v1200 = vmul.f32 %v1192, 1.0614054
        %v1201 = vmul.f32 %v1193, 1.0614054
        %v1202 = vmul.f32 %v1194, 1.0614054
        %v1203 = vmul.f32 %v1195, 1.0614054
        %v1204 = vmul.f32 %v1196, 1.0614054
        %v1205 = vmul.f32 %v1197, 1.0614054
        %v1206 = vadd.f32 %v1198, -1.4531521
        %v1207 = vadd.f32 %v1199, -1.4531521
        %v1208 = vadd.f32 %v1200, -1.4531521
        %v1209 = vadd.f32 %v1201, -1.4531521
        %v1210 = vadd.f32 %v1202, -1.4531521
        %v1211 = vadd.f32 %v1203, -1.4531521
        %v1212 = vadd.f32 %v1204, -1.4531521
        %v1213 = vadd.f32 %v1205, -1.4531521
        %v1214 = vmul.f32 %v1206, %v1190
        %v1215 = vmul.f32 %v1207, %v1191
        %v1216 = vmul.f32 %v1208, %v1192
        %v1217 = vmul.f32 %v1209, %v1193
        %v1218 = vmul.f32 %v1210, %v1194
        %v1219 = vmul.f32 %v1211, %v1195
        %v1220 = vmul.f32 %v1212, %v1196
        %v1221 = vmul.f32 %v1213, %v1197
        %v1222 = vadd.f32 %v1214, 1.4214138
        %v1223 = vadd.f32 %v1215, 1.4214138
        %v1224 = vadd.f32 %v1216, 1.4214138
        %v1225 = vadd.f32 %v1217, 1.4214138
        %v1226 = vadd.f32 %v1218, 1.4214138
        %v1227 = vadd.f32 %v1219, 1.4214138
        %v1228 = vadd.f32 %v1220, 1.4214138
        %v1229 = vadd.f32 %v1221, 1.4214138
        %v1230 = vmul.f32 %v1222, %v1190
        %v1231 = vmul.f32 %v1223, %v1191
        %v1232 = vmul.f32 %v1224, %v1192
        %v1233 = vmul.f32 %v1225, %v1193
        %v1234 = vmul.f32 %v1226, %v1194
        %v1235 = vmul.f32 %v1227, %v1195
        %v1236 = vmul.f32 %v1228, %v1196
        %v1237 = vmul.f32 %v1229, %v1197
        %v1238 = vadd.f32 %v1230, -0.28449672
        %v1239 = vadd.f32 %v1231, -0.28449672
        %v1240 = vadd.f32 %v1232, -0.28449672
        %v1241 = vadd.f32 %v1233, -0.28449672
        %v1242 = vadd.f32 %v1234, -0.28449672
        %v1243 = vadd.f32 %v1235, -0.28449672
        %v1244 = vadd.f32 %v1236, -0.28449672
        %v1245 = vadd.f32 %v1237, -0.28449672
        %v1246 = vmul.f32 %v1238, %v1190
        %v1247 = vmul.f32 %v1239, %v1191
        %v1248 = vmul.f32 %v1240, %v1192
        %v1249 = vmul.f32 %v1241, %v1193
        %v1250 = vmul.f32 %v1242, %v1194
        %v1251 = vmul.f32 %v1243, %v1195
        %v1252 = vmul.f32 %v1244, %v1196
        %v1253 = vmul.f32 %v1245, %v1197
        %v1254 = vadd.f32 %v1246, 0.2548296
        %v1255 = vadd.f32 %v1247, 0.2548296
        %v1256 = vadd.f32 %v1248, 0.2548296
        %v1257 = vadd.f32 %v1249, 0.2548296
        %v1258 = vadd.f32 %v1250, 0.2548296
        %v1259 = vadd.f32 %v1251, 0.2548296
        %v1260 = vadd.f32 %v1252, 0.2548296
        %v1261 = vadd.f32 %v1253, 0.2548296
        %v1262 = vmul.f32 %v1254, %v1190
        %v1263 = vmul.f32 %v1255, %v1191
        %v1264 = vmul.f32 %v1256, %v1192
        %v1265 = vmul.f32 %v1257, %v1193
        %v1266 = vmul.f32 %v1258, %v1194
        %v1267 = vmul.f32 %v1259, %v1195
        %v1268 = vmul.f32 %v1260, %v1196
        %v1269 = vmul.f32 %v1261, %v1197
        %v1270 = vsub.f32 0.0, %v1166
        %v1271 = vsub.f32 0.0, %v1167
        %v1272 = vsub.f32 0.0, %v1168
        %v1273 = vsub.f32 0.0, %v1169
        %v1274 = vsub.f32 0.0, %v1170
        %v1275 = vsub.f32 0.0, %v1171
        %v1276 = vsub.f32 0.0, %v1172
        %v1277 = vsub.f32 0.0, %v1173
        %v1278 = vmul.f32 %v1270, %v1166
        %v1279 = vmul.f32 %v1271, %v1167
        %v1280 = vmul.f32 %v1272, %v1168
        %v1281 = vmul.f32 %v1273, %v1169
        %v1282 = vmul.f32 %v1274, %v1170
        %v1283 = vmul.f32 %v1275, %v1171
        %v1284 = vmul.f32 %v1276, %v1172
        %v1285 = vmul.f32 %v1277, %v1173
        %v1286 = vmul.f32 %v1278, 1.442695
        %v1287 = vpow.pop %v1286
        %v1288 = vmul.f32 %v1279, 1.442695
        %v1289 = vpow.pop %v1288
        %v1290 = vmul.f32 %v1280, 1.442695
        %v1291 = vpow.pop %v1290
        %v1292 = vmul.f32 %v1281, 1.442695
        %v1293 = vpow.pop %v1292
        %v1294 = vmul.f32 %v1282, 1.442695
        %v1295 = vpow.pop %v1294
        %v1296 = vmul.f32 %v1283, 1.442695
        %v1297 = vpow.pop %v1296
        %v1298 = vmul.f32 %v1284, 1.442695
        %v1299 = vpow.pop %v1298
        %v1300 = vmul.f32 %v1285, 1.442695
        %v1301 = vpow.pop %v1300
        %v1302 = vmul.f32 %v1262, %v1287
        %v1303 = vmul.f32 %v1263, %v1289
        %v1304 = vmul.f32 %v1264, %v1291
        %v1305 = vmul.f32 %v1265, %v1293
        %v1306 = vmul.f32 %v1266, %v1295
        %v1307 = vmul.f32 %v1267, %v1297
        %v1308 = vmul.f32 %v1268, %v1299
        %v1309 = vmul.f32 %v1269, %v1301
        %v1310 = vsub.f32 1.0, %v1302
        %v1311 = vsub.f32 1.0, %v1303
        %v1312 = vsub.f32 1.0, %v1304
        %v1313 = vsub.f32 1.0, %v1305
        %v1314 = vsub.f32 1.0, %v1306
        %v1315 = vsub.f32 1.0, %v1307
        %v1316 = vsub.f32 1.0, %v1308
        %v1317 = vsub.f32 1.0, %v1309
        %vm1318 = vcmp.ge.f32.partialorder %v1158, 0.0
        %vm1319 = vcmp.ge.f32.partialorder %v1159, 0.0
        %vm1320 = vcmp.ge.f32.partialorder %v1160, 0.0
        %vm1321 = vcmp.ge.f32.partialorder %v1161, 0.0
        %vm1322 = vcmp.ge.f32.partialorder %v1162, 0.0
        %vm1323 = vcmp.ge.f32.partialorder %v1163, 0.0
        %vm1324 = vcmp.ge.f32.partialorder %v1164, 0.0
        %vm1325 = vcmp.ge.f32.partialorder %v1165, 0.0
        %v1326 = vsub.f32 0.0, %v1310
        %v1327 = vsub.f32 0.0, %v1311
        %v1328 = vsub.f32 0.0, %v1312
        %v1329 = vsub.f32 0.0, %v1313
        %v1330 = vsub.f32 0.0, %v1314
        %v1331 = vsub.f32 0.0, %v1315
        %v1332 = vsub.f32 0.0, %v1316
        %v1333 = vsub.f32 0.0, %v1317
        %v1334 = vsel %vm1318, %v1310, %v1326
        %v1335 = vsel %vm1319, %v1311, %v1327
        %v1336 = vsel %vm1320, %v1312, %v1328
        %v1337 = vsel %vm1321, %v1313, %v1329
        %v1338 = vsel %vm1322, %v1314, %v1330
        %v1339 = vsel %vm1323, %v1315, %v1331
        %v1340 = vsel %vm1324, %v1316, %v1332
        %v1341 = vsel %vm1325, %v1317, %v1333
        %v1342 = vadd.f32 %v1334, 1.0
        %v1343 = vadd.f32 %v1335, 1.0
        %v1344 = vadd.f32 %v1336, 1.0
        %v1345 = vadd.f32 %v1337, 1.0
        %v1346 = vadd.f32 %v1338, 1.0
        %v1347 = vadd.f32 %v1339, 1.0
        %v1348 = vadd.f32 %v1340, 1.0
        %v1349 = vadd.f32 %v1341, 1.0
        %v1350 = vmul.f32 %v1150, %v1342
        %v1351 = vmul.f32 %v1151, %v1343
        %v1352 = vmul.f32 %v1152, %v1344
        %v1353 = vmul.f32 %v1153, %v1345
        %v1354 = vmul.f32 %v1154, %v1346
        %v1355 = vmul.f32 %v1155, %v1347
        %v1356 = vmul.f32 %v1156, %v1348
        %v1357 = vmul.f32 %v1157, %v1349
        %v1358 = vpack.c.bf16 %v1351, %v1350
        %v1359 = vpack.c.bf16 %v1353, %v1352
        %v1360 = vpack.c.bf16 %v1355, %v1354
        %v1361 = vpack.c.bf16 %v1357, %v1356
        %v1363 = vsel %vm279, %v1358, 0
        %v1366 = vsel %vm279, %v1359, 0
        %v1369 = vsel %vm279, %v1360, 0
        %v1372 = vsel %vm279, %v1361, 0
        %1374 = vmatprep.subr.bf16.mxu0 0
        %1375 = vmatpush1.bf16.msra.mxu0 %v583
        %1376 = vmatprep.subr.bf16.mxu0 0
        %1377 = vmatpush1.bf16.msra.mxu0 %v584
        %1378 = vmatprep.subr.bf16.mxu0 0
        %1379 = vmatpush1.bf16.msra.mxu0 0
        %1380 = vmatprep.subr.bf16.mxu0 0
        %1381 = vmatpush1.bf16.msra.mxu0 0
        %1382 = vmatprep.subr.bf16.mxu0 0
        %1383 = vmatpush1.bf16.msra.mxu0 0
        %1384 = vmatprep.subr.bf16.mxu0 0
        %1385 = vmatpush1.bf16.msra.mxu0 0
        %1386 = vmatprep.subr.bf16.mxu0 0
        %1387 = vmatpush1.bf16.msra.mxu0 0
        %1388 = vmatprep.subr.bf16.mxu0 0
        %1389 = vmatpush1.bf16.msra.mxu0 0
        %1390 = vmatprep.subr.bf16.mxu0 0
        %1391 = vmatpush1.bf16.msra.mxu0 0
        %1392 = vmatprep.subr.bf16.mxu0 0
        %1393 = vmatpush1.bf16.msra.mxu0 0
        %1394 = vmatprep.subr.bf16.mxu0 0
        %1395 = vmatpush1.bf16.msra.mxu0 0
        %1396 = vmatprep.subr.bf16.mxu0 0
        %1397 = vmatpush1.bf16.msra.mxu0 0
        %1398 = vmatprep.subr.bf16.mxu0 0
        %1399 = vmatpush1.bf16.msra.mxu0 0
        %1400 = vmatprep.subr.bf16.mxu0 0
        %1401 = vmatpush1.bf16.msra.mxu0 0
        %1402 = vmatprep.subr.bf16.mxu0 0
        %1403 = vmatpush1.bf16.msra.mxu0 0
        %1404 = vmatprep.subr.bf16.mxu0 0
        %1405 = vmatpush1.bf16.msra.mxu0 0
        %1406 = vmatprep.mubr.bf16.mxu0 0
        %1407 = vmatmul.mubr.bf16.gmra.mrb[0].mxu0 %v1363
        %v1408 = vpop.f32.mrb[0].mxu0
        %v1409 = vadd.f32 %v573, %v1408
        %v1410 = vpop.f32.mrb[0].mxu0
        %v1411 = vpop.f32.mrb[0].mxu0
        %v1412 = vadd.f32 %v573, %v1411
        %v1413 = vpop.f32.mrb[0].mxu0
        %1414 = vmatprep.mubr.bf16.mxu0 0
        %1415 = vmatmul.mubr.bf16.gmra.mrb[0].mxu0 %v1366
        %v1416 = vpop.f32.mrb[0].mxu0
        %v1417 = vadd.f32 %v573, %v1416
        %v1418 = vpop.f32.mrb[0].mxu0
        %v1419 = vpop.f32.mrb[0].mxu0
        %v1420 = vadd.f32 %v573, %v1419
        %v1421 = vpop.f32.mrb[0].mxu0
        %1422 = vmatprep.mubr.bf16.mxu0 0
        %1423 = vmatmul.mubr.bf16.gmra.mrb[0].mxu0 %v1369
        %v1424 = vpop.f32.mrb[0].mxu0
        %v1425 = vadd.f32 %v573, %v1424
        %v1426 = vpop.f32.mrb[0].mxu0
        %v1427 = vpop.f32.mrb[0].mxu0
        %v1428 = vadd.f32 %v573, %v1427
        %v1429 = vpop.f32.mrb[0].mxu0
        %1430 = vmatprep.mubr.bf16.mxu0 0
        %1431 = vmatmul.mubr.bf16.gmra.mrb[0].mxu0 %v1372
        %v1432 = vpop.f32.mrb[0].mxu0
        %v1433 = vadd.f32 %v573, %v1432
        %v1434 = vpop.f32.mrb[0].mxu0
        %v1435 = vpop.f32.mrb[0].mxu0
        %v1436 = vadd.f32 %v573, %v1435
        %v1437 = vpop.f32.mrb[0].mxu0
        %1438 = vdwg.mxu0
        %s1439 = scalar_lea.vmem %s214, 128 [#allocation2]
        %1440 = vst.msk [vmem:[%s1439] sm:$0xff] %vm279, %v1409
        %1441 = vst.msk [vmem:[%s1439 + $0x8] sm:$0xff] %vm279, %v1412
        %1442 = vst.msk [vmem:[%s1439 + $0x10] sm:$0xff] %vm279, %v1417
        %1443 = vst.msk [vmem:[%s1439 + $0x18] sm:$0xff] %vm279, %v1420
        %1444 = vst.msk [vmem:[%s1439 + $0x20] sm:$0xff] %vm279, %v1425
        %1445 = vst.msk [vmem:[%s1439 + $0x28] sm:$0xff] %vm279, %v1428
        %1446 = vst.msk [vmem:[%s1439 + $0x30] sm:$0xff] %vm279, %v1433
        %1447 = vst.msk [vmem:[%s1439 + $0x38] sm:$0xff] %vm279, %v1436
        %s1448 = scalar_lea.vmem %s1, 48
        %v1449 = vld [vmem:[%s1448] sm:$0xf]
        %v1450 = vld [vmem:[%s1448 + $0x4] sm:$0xf]
        %v1451 = vld [vmem:[%s1448 + $0x8] sm:$0xf]
        %v1452 = vld [vmem:[%s1448 + $0xc] sm:$0xf]
        %s1453 = scalar_lea.vmem %s2, 3
        %v1454 = vld [vmem:[%s1453] sm:$0x1]
        %v1456 = vlaneseq
        %v1457 = vshrl.u32 %v1456, 7
        %v1458 = vsub.s32 0, %v1457
        %v1459 = vrot.slane %v1454, %v1458
        %v1465 = vunpack.c.l.b16 %v1449
        %v1466 = vunpack.c.l.b16 %v1450
        %v1467 = vunpack.c.l.b16 %v1451
        %v1468 = vunpack.c.l.b16 %v1452
        %v1469 = vpack.c.b16 %v1466, %v1465
        %v1470 = vpack.c.b16 %v1468, %v1467
        %1473 = vmatprep.subr.bf16.mxu0 0
        %1474 = vmatpush1.bf16.msra.mxu0 %v1469
        %1475 = vmatprep.subr.bf16.mxu0 0
        %1476 = vmatpush1.bf16.msra.mxu0 %v1470
        %1477 = vmatprep.subr.bf16.mxu0 0
        %1478 = vmatpush1.bf16.msra.mxu0 0
        %1479 = vmatprep.subr.bf16.mxu0 0
        %1480 = vmatpush1.bf16.msra.mxu0 0
        %1481 = vmatprep.subr.bf16.mxu0 0
        %1482 = vmatpush1.bf16.msra.mxu0 0
        %1483 = vmatprep.subr.bf16.mxu0 0
        %1484 = vmatpush1.bf16.msra.mxu0 0
        %1485 = vmatprep.subr.bf16.mxu0 0
        %1486 = vmatpush1.bf16.msra.mxu0 0
        %1487 = vmatprep.subr.bf16.mxu0 0
        %1488 = vmatpush1.bf16.msra.mxu0 0
        %1489 = vmatprep.subr.bf16.mxu0 0
        %1490 = vmatpush1.bf16.msra.mxu0 0
        %1491 = vmatprep.subr.bf16.mxu0 0
        %1492 = vmatpush1.bf16.msra.mxu0 0
        %1493 = vmatprep.subr.bf16.mxu0 0
        %1494 = vmatpush1.bf16.msra.mxu0 0
        %1495 = vmatprep.subr.bf16.mxu0 0
        %1496 = vmatpush1.bf16.msra.mxu0 0
        %1497 = vmatprep.subr.bf16.mxu0 0
        %1498 = vmatpush1.bf16.msra.mxu0 0
        %1499 = vmatprep.subr.bf16.mxu0 0
        %1500 = vmatpush1.bf16.msra.mxu0 0
        %1501 = vmatprep.subr.bf16.mxu0 0
        %1502 = vmatpush1.bf16.msra.mxu0 0
        %1503 = vmatprep.subr.bf16.mxu0 0
        %1504 = vmatpush1.bf16.msra.mxu0 0
        %1505 = vmatprep.mubr.bf16.mxu0 0
        %1506 = vmatmul.mubr.bf16.gmra.mrb[0].mxu0 %v281
        %v1507 = vpop.f32.mrb[0].mxu0
        %v1508 = vadd.f32 %v1459, %v1507
        %v1509 = vpop.f32.mrb[0].mxu0
        %v1510 = vpop.f32.mrb[0].mxu0
        %v1511 = vadd.f32 %v1459, %v1510
        %v1512 = vpop.f32.mrb[0].mxu0
        %1513 = vmatprep.mubr.bf16.mxu0 0
        %1514 = vmatmul.mubr.bf16.gmra.mrb[0].mxu0 %v284
        %v1515 = vpop.f32.mrb[0].mxu0
        %v1516 = vadd.f32 %v1459, %v1515
        %v1517 = vpop.f32.mrb[0].mxu0
        %v1518 = vpop.f32.mrb[0].mxu0
        %v1519 = vadd.f32 %v1459, %v1518
        %v1520 = vpop.f32.mrb[0].mxu0
        %1521 = vmatprep.mubr.bf16.mxu0 0
        %1522 = vmatmul.mubr.bf16.gmra.mrb[0].mxu0 %v287
        %v1523 = vpop.f32.mrb[0].mxu0
        %v1524 = vadd.f32 %v1459, %v1523
        %v1525 = vpop.f32.mrb[0].mxu0
        %v1526 = vpop.f32.mrb[0].mxu0
        %v1527 = vadd.f32 %v1459, %v1526
        %v1528 = vpop.f32.mrb[0].mxu0
        %1529 = vmatprep.mubr.bf16.mxu0 0
        %1530 = vmatmul.mubr.bf16.gmra.mrb[0].mxu0 %v290
        %v1531 = vpop.f32.mrb[0].mxu0
        %v1532 = vadd.f32 %v1459, %v1531
        %v1533 = vpop.f32.mrb[0].mxu0
        %v1534 = vpop.f32.mrb[0].mxu0
        %v1535 = vadd.f32 %v1459, %v1534
        %v1536 = vpop.f32.mrb[0].mxu0
        %1537 = vdwg.mxu0
        %v1538 = vmul.f32 %v1508, 0.5
        %v1539 = vmul.f32 %v1511, 0.5
        %v1540 = vmul.f32 %v1516, 0.5
        %v1541 = vmul.f32 %v1519, 0.5
        %v1542 = vmul.f32 %v1524, 0.5
        %v1543 = vmul.f32 %v1527, 0.5
        %v1544 = vmul.f32 %v1532, 0.5
        %v1545 = vmul.f32 %v1535, 0.5
        %v1546 = vmul.f32 %v1508, 0.70710677
        %v1547 = vmul.f32 %v1511, 0.70710677
        %v1548 = vmul.f32 %v1516, 0.70710677
        %v1549 = vmul.f32 %v1519, 0.70710677
        %v1550 = vmul.f32 %v1524, 0.70710677
        %v1551 = vmul.f32 %v1527, 0.70710677
        %v1552 = vmul.f32 %v1532, 0.70710677
        %v1553 = vmul.f32 %v1535, 0.70710677
        %v1554 = vand.u32 2147483647, %v1546
        %v1555 = vand.u32 2147483647, %v1547
        %v1556 = vand.u32 2147483647, %v1548
        %v1557 = vand.u32 2147483647, %v1549
        %v1558 = vand.u32 2147483647, %v1550
        %v1559 = vand.u32 2147483647, %v1551
        %v1560 = vand.u32 2147483647, %v1552
        %v1561 = vand.u32 2147483647, %v1553
        %v1562 = vmul.f32 %v1554, 0.3275911
        %v1563 = vmul.f32 %v1555, 0.3275911
        %v1564 = vmul.f32 %v1556, 0.3275911
        %v1565 = vmul.f32 %v1557, 0.3275911
        %v1566 = vmul.f32 %v1558, 0.3275911
        %v1567 = vmul.f32 %v1559, 0.3275911
        %v1568 = vmul.f32 %v1560, 0.3275911
        %v1569 = vmul.f32 %v1561, 0.3275911
        %v1570 = vadd.f32 %v1562, 1.0
        %v1571 = vadd.f32 %v1563, 1.0
        %v1572 = vadd.f32 %v1564, 1.0
        %v1573 = vadd.f32 %v1565, 1.0
        %v1574 = vadd.f32 %v1566, 1.0
        %v1575 = vadd.f32 %v1567, 1.0
        %v1576 = vadd.f32 %v1568, 1.0
        %v1577 = vadd.f32 %v1569, 1.0
        %v1578 = vrcp.pop %v1570
        %v1579 = vrcp.pop %v1571
        %v1580 = vrcp.pop %v1572
        %v1581 = vrcp.pop %v1573
        %v1582 = vrcp.pop %v1574
        %v1583 = vrcp.pop %v1575
        %v1584 = vrcp.pop %v1576
        %v1585 = vrcp.pop %v1577
        %v1586 = vmul.f32 %v1578, 1.0614054
        %v1587 = vmul.f32 %v1579, 1.0614054
        %v1588 = vmul.f32 %v1580, 1.0614054
        %v1589 = vmul.f32 %v1581, 1.0614054
        %v1590 = vmul.f32 %v1582, 1.0614054
        %v1591 = vmul.f32 %v1583, 1.0614054
        %v1592 = vmul.f32 %v1584, 1.0614054
        %v1593 = vmul.f32 %v1585, 1.0614054
        %v1594 = vadd.f32 %v1586, -1.4531521
        %v1595 = vadd.f32 %v1587, -1.4531521
        %v1596 = vadd.f32 %v1588, -1.4531521
        %v1597 = vadd.f32 %v1589, -1.4531521
        %v1598 = vadd.f32 %v1590, -1.4531521
        %v1599 = vadd.f32 %v1591, -1.4531521
        %v1600 = vadd.f32 %v1592, -1.4531521
        %v1601 = vadd.f32 %v1593, -1.4531521
        %v1602 = vmul.f32 %v1594, %v1578
        %v1603 = vmul.f32 %v1595, %v1579
        %v1604 = vmul.f32 %v1596, %v1580
        %v1605 = vmul.f32 %v1597, %v1581
        %v1606 = vmul.f32 %v1598, %v1582
        %v1607 = vmul.f32 %v1599, %v1583
        %v1608 = vmul.f32 %v1600, %v1584
        %v1609 = vmul.f32 %v1601, %v1585
        %v1610 = vadd.f32 %v1602, 1.4214138
        %v1611 = vadd.f32 %v1603, 1.4214138
        %v1612 = vadd.f32 %v1604, 1.4214138
        %v1613 = vadd.f32 %v1605, 1.4214138
        %v1614 = vadd.f32 %v1606, 1.4214138
        %v1615 = vadd.f32 %v1607, 1.4214138
        %v1616 = vadd.f32 %v1608, 1.4214138
        %v1617 = vadd.f32 %v1609, 1.4214138
        %v1618 = vmul.f32 %v1610, %v1578
        %v1619 = vmul.f32 %v1611, %v1579
        %v1620 = vmul.f32 %v1612, %v1580
        %v1621 = vmul.f32 %v1613, %v1581
        %v1622 = vmul.f32 %v1614, %v1582
        %v1623 = vmul.f32 %v1615, %v1583
        %v1624 = vmul.f32 %v1616, %v1584
        %v1625 = vmul.f32 %v1617, %v1585
        %v1626 = vadd.f32 %v1618, -0.28449672
        %v1627 = vadd.f32 %v1619, -0.28449672
        %v1628 = vadd.f32 %v1620, -0.28449672
        %v1629 = vadd.f32 %v1621, -0.28449672
        %v1630 = vadd.f32 %v1622, -0.28449672
        %v1631 = vadd.f32 %v1623, -0.28449672
        %v1632 = vadd.f32 %v1624, -0.28449672
        %v1633 = vadd.f32 %v1625, -0.28449672
        %v1634 = vmul.f32 %v1626, %v1578
        %v1635 = vmul.f32 %v1627, %v1579
        %v1636 = vmul.f32 %v1628, %v1580
        %v1637 = vmul.f32 %v1629, %v1581
        %v1638 = vmul.f32 %v1630, %v1582
        %v1639 = vmul.f32 %v1631, %v1583
        %v1640 = vmul.f32 %v1632, %v1584
        %v1641 = vmul.f32 %v1633, %v1585
        %v1642 = vadd.f32 %v1634, 0.2548296
        %v1643 = vadd.f32 %v1635, 0.2548296
        %v1644 = vadd.f32 %v1636, 0.2548296
        %v1645 = vadd.f32 %v1637, 0.2548296
        %v1646 = vadd.f32 %v1638, 0.2548296
        %v1647 = vadd.f32 %v1639, 0.2548296
        %v1648 = vadd.f32 %v1640, 0.2548296
        %v1649 = vadd.f32 %v1641, 0.2548296
        %v1650 = vmul.f32 %v1642, %v1578
        %v1651 = vmul.f32 %v1643, %v1579
        %v1652 = vmul.f32 %v1644, %v1580
        %v1653 = vmul.f32 %v1645, %v1581
        %v1654 = vmul.f32 %v1646, %v1582
        %v1655 = vmul.f32 %v1647, %v1583
        %v1656 = vmul.f32 %v1648, %v1584
        %v1657 = vmul.f32 %v1649, %v1585
        %v1658 = vsub.f32 0.0, %v1554
        %v1659 = vsub.f32 0.0, %v1555
        %v1660 = vsub.f32 0.0, %v1556
        %v1661 = vsub.f32 0.0, %v1557
        %v1662 = vsub.f32 0.0, %v1558
        %v1663 = vsub.f32 0.0, %v1559
        %v1664 = vsub.f32 0.0, %v1560
        %v1665 = vsub.f32 0.0, %v1561
        %v1666 = vmul.f32 %v1658, %v1554
        %v1667 = vmul.f32 %v1659, %v1555
        %v1668 = vmul.f32 %v1660, %v1556
        %v1669 = vmul.f32 %v1661, %v1557
        %v1670 = vmul.f32 %v1662, %v1558
        %v1671 = vmul.f32 %v1663, %v1559
        %v1672 = vmul.f32 %v1664, %v1560
        %v1673 = vmul.f32 %v1665, %v1561
        %v1674 = vmul.f32 %v1666, 1.442695
        %v1675 = vpow.pop %v1674
        %v1676 = vmul.f32 %v1667, 1.442695
        %v1677 = vpow.pop %v1676
        %v1678 = vmul.f32 %v1668, 1.442695
        %v1679 = vpow.pop %v1678
        %v1680 = vmul.f32 %v1669, 1.442695
        %v1681 = vpow.pop %v1680
        %v1682 = vmul.f32 %v1670, 1.442695
        %v1683 = vpow.pop %v1682
        %v1684 = vmul.f32 %v1671, 1.442695
        %v1685 = vpow.pop %v1684
        %v1686 = vmul.f32 %v1672, 1.442695
        %v1687 = vpow.pop %v1686
        %v1688 = vmul.f32 %v1673, 1.442695
        %v1689 = vpow.pop %v1688
        %v1690 = vmul.f32 %v1650, %v1675
        %v1691 = vmul.f32 %v1651, %v1677
        %v1692 = vmul.f32 %v1652, %v1679
        %v1693 = vmul.f32 %v1653, %v1681
        %v1694 = vmul.f32 %v1654, %v1683
        %v1695 = vmul.f32 %v1655, %v1685
        %v1696 = vmul.f32 %v1656, %v1687
        %v1697 = vmul.f32 %v1657, %v1689
        %v1698 = vsub.f32 1.0, %v1690
        %v1699 = vsub.f32 1.0, %v1691
        %v1700 = vsub.f32 1.0, %v1692
        %v1701 = vsub.f32 1.0, %v1693
        %v1702 = vsub.f32 1.0, %v1694
        %v1703 = vsub.f32 1.0, %v1695
        %v1704 = vsub.f32 1.0, %v1696
        %v1705 = vsub.f32 1.0, %v1697
        %vm1706 = vcmp.ge.f32.partialorder %v1546, 0.0
        %vm1707 = vcmp.ge.f32.partialorder %v1547, 0.0
        %vm1708 = vcmp.ge.f32.partialorder %v1548, 0.0
        %vm1709 = vcmp.ge.f32.partialorder %v1549, 0.0
        %vm1710 = vcmp.ge.f32.partialorder %v1550, 0.0
        %vm1711 = vcmp.ge.f32.partialorder %v1551, 0.0
        %vm1712 = vcmp.ge.f32.partialorder %v1552, 0.0
        %vm1713 = vcmp.ge.f32.partialorder %v1553, 0.0
        %v1714 = vsub.f32 0.0, %v1698
        %v1715 = vsub.f32 0.0, %v1699
        %v1716 = vsub.f32 0.0, %v1700
        %v1717 = vsub.f32 0.0, %v1701
        %v1718 = vsub.f32 0.0, %v1702
        %v1719 = vsub.f32 0.0, %v1703
        %v1720 = vsub.f32 0.0, %v1704
        %v1721 = vsub.f32 0.0, %v1705
        %v1722 = vsel %vm1706, %v1698, %v1714
        %v1723 = vsel %vm1707, %v1699, %v1715
        %v1724 = vsel %vm1708, %v1700, %v1716
        %v1725 = vsel %vm1709, %v1701, %v1717
        %v1726 = vsel %vm1710, %v1702, %v1718
        %v1727 = vsel %vm1711, %v1703, %v1719
        %v1728 = vsel %vm1712, %v1704, %v1720
        %v1729 = vsel %vm1713, %v1705, %v1721
        %v1730 = vadd.f32 %v1722, 1.0
        %v1731 = vadd.f32 %v1723, 1.0
        %v1732 = vadd.f32 %v1724, 1.0
        %v1733 = vadd.f32 %v1725, 1.0
        %v1734 = vadd.f32 %v1726, 1.0
        %v1735 = vadd.f32 %v1727, 1.0
        %v1736 = vadd.f32 %v1728, 1.0
        %v1737 = vadd.f32 %v1729, 1.0
        %v1738 = vmul.f32 %v1538, %v1730
        %v1739 = vmul.f32 %v1539, %v1731
        %v1740 = vmul.f32 %v1540, %v1732
        %v1741 = vmul.f32 %v1541, %v1733
        %v1742 = vmul.f32 %v1542, %v1734
        %v1743 = vmul.f32 %v1543, %v1735
        %v1744 = vmul.f32 %v1544, %v1736
        %v1745 = vmul.f32 %v1545, %v1737
        %v1746 = vpack.c.bf16 %v1739, %v1738
        %v1747 = vpack.c.bf16 %v1741, %v1740
        %v1748 = vpack.c.bf16 %v1743, %v1742
        %v1749 = vpack.c.bf16 %v1745, %v1744
        %v1751 = vsel %vm279, %v1746, 0
        %v1754 = vsel %vm279, %v1747, 0
        %v1757 = vsel %vm279, %v1748, 0
        %v1760 = vsel %vm279, %v1749, 0
        %1762 = vmatprep.subr.bf16.mxu0 0
        %1763 = vmatpush1.bf16.msra.mxu0 %v583
        %1764 = vmatprep.subr.bf16.mxu0 0
        %1765 = vmatpush1.bf16.msra.mxu0 %v584
        %1766 = vmatprep.subr.bf16.mxu0 0
        %1767 = vmatpush1.bf16.msra.mxu0 0
        %1768 = vmatprep.subr.bf16.mxu0 0
        %1769 = vmatpush1.bf16.msra.mxu0 0
        %1770 = vmatprep.subr.bf16.mxu0 0
        %1771 = vmatpush1.bf16.msra.mxu0 0
        %1772 = vmatprep.subr.bf16.mxu0 0
        %1773 = vmatpush1.bf16.msra.mxu0 0
        %1774 = vmatprep.subr.bf16.mxu0 0
        %1775 = vmatpush1.bf16.msra.mxu0 0
        %1776 = vmatprep.subr.bf16.mxu0 0
        %1777 = vmatpush1.bf16.msra.mxu0 0
        %1778 = vmatprep.subr.bf16.mxu0 0
        %1779 = vmatpush1.bf16.msra.mxu0 0
        %1780 = vmatprep.subr.bf16.mxu0 0
        %1781 = vmatpush1.bf16.msra.mxu0 0
        %1782 = vmatprep.subr.bf16.mxu0 0
        %1783 = vmatpush1.bf16.msra.mxu0 0
        %1784 = vmatprep.subr.bf16.mxu0 0
        %1785 = vmatpush1.bf16.msra.mxu0 0
        %1786 = vmatprep.subr.bf16.mxu0 0
        %1787 = vmatpush1.bf16.msra.mxu0 0
        %1788 = vmatprep.subr.bf16.mxu0 0
        %1789 = vmatpush1.bf16.msra.mxu0 0
        %1790 = vmatprep.subr.bf16.mxu0 0
        %1791 = vmatpush1.bf16.msra.mxu0 0
        %1792 = vmatprep.subr.bf16.mxu0 0
        %1793 = vmatpush1.bf16.msra.mxu0 0
        %1794 = vmatprep.mubr.bf16.mxu0 0
        %1795 = vmatmul.mubr.bf16.gmra.mrb[0].mxu0 %v1751
        %v1796 = vpop.f32.mrb[0].mxu0
        %v1797 = vadd.f32 %v573, %v1796
        %v1798 = vpop.f32.mrb[0].mxu0
        %v1799 = vpop.f32.mrb[0].mxu0
        %v1800 = vadd.f32 %v573, %v1799
        %v1801 = vpop.f32.mrb[0].mxu0
        %1802 = vmatprep.mubr.bf16.mxu0 0
        %1803 = vmatmul.mubr.bf16.gmra.mrb[0].mxu0 %v1754
        %v1804 = vpop.f32.mrb[0].mxu0
        %v1805 = vadd.f32 %v573, %v1804
        %v1806 = vpop.f32.mrb[0].mxu0
        %v1807 = vpop.f32.mrb[0].mxu0
        %v1808 = vadd.f32 %v573, %v1807
        %v1809 = vpop.f32.mrb[0].mxu0
        %1810 = vmatprep.mubr.bf16.mxu0 0
        %1811 = vmatmul.mubr.bf16.gmra.mrb[0].mxu0 %v1757
        %v1812 = vpop.f32.mrb[0].mxu0
        %v1813 = vadd.f32 %v573, %v1812
        %v1814 = vpop.f32.mrb[0].mxu0
        %v1815 = vpop.f32.mrb[0].mxu0
        %v1816 = vadd.f32 %v573, %v1815
        %v1817 = vpop.f32.mrb[0].mxu0
        %1818 = vmatprep.mubr.bf16.mxu0 0
        %1819 = vmatmul.mubr.bf16.gmra.mrb[0].mxu0 %v1760
        %v1820 = vpop.f32.mrb[0].mxu0
        %v1821 = vadd.f32 %v573, %v1820
        %v1822 = vpop.f32.mrb[0].mxu0
        %v1823 = vpop.f32.mrb[0].mxu0
        %v1824 = vadd.f32 %v573, %v1823
        %v1825 = vpop.f32.mrb[0].mxu0
        %1826 = vdwg.mxu0
        %s1827 = scalar_lea.vmem %s214, 192 [#allocation2]
        %1828 = vst.msk [vmem:[%s1827] sm:$0xff] %vm279, %v1797
        %1829 = vst.msk [vmem:[%s1827 + $0x8] sm:$0xff] %vm279, %v1800
        %1830 = vst.msk [vmem:[%s1827 + $0x10] sm:$0xff] %vm279, %v1805
        %1831 = vst.msk [vmem:[%s1827 + $0x18] sm:$0xff] %vm279, %v1808
        %1832 = vst.msk [vmem:[%s1827 + $0x20] sm:$0xff] %vm279, %v1813
        %1833 = vst.msk [vmem:[%s1827 + $0x28] sm:$0xff] %vm279, %v1816
        %1834 = vst.msk [vmem:[%s1827 + $0x30] sm:$0xff] %vm279, %v1821
        %1835 = vst.msk [vmem:[%s1827 + $0x38] sm:$0xff] %vm279, %v1824
        %s1836 = sand.u32 %s134, 1
        %s1837 = sand.u32 %s134, 1
        %s1838 = smul.addr %s1837, 256
        %s1839 = scalar_lea.vmem [#allocation2], %s1838
        // Predicated region
        $region41: #{tpu_custom_call.1} parent=39 // pred_check
          %p1840 = pneg %p144
        $region42: #{tpu_custom_call.1} parent=39 // pred_check_branch
          %1842 = sbr.rel (%p1840) target = $region44
        $region43: #{tpu_custom_call.1} parent=39 // pred_region
          %s1843 = smul.u32 8, %s16
          %s1844 = smul.addr %s1843, 8
          %s1845 = scalar_lea.vmem %s5, %s1844
          // Predicated region
          $region45: #{tpu_custom_call.1} parent=43 // pred_check
            _
          $region46: #{tpu_custom_call.1} parent=43 // pred_check_branch
            %1847 = sbr.rel (0) target = $region48
          $region47: #{tpu_custom_call.1} parent=43 // pred_region
            // Predicated region
            $region49: #{tpu_custom_call.1} parent=47 // pred_check
              _
            $region50: #{tpu_custom_call.1} parent=47 // pred_check_branch
              %1849 = sbr.rel (0) target = $region52
            $region51: #{tpu_custom_call.1} parent=47 // pred_region
              // Predicated region
              $region64: #{tpu_custom_call.1} parent=51 // pred_check
                _
              $region65: #{tpu_custom_call.1} parent=51 // pred_check_branch
                %1926 = sbr.rel (0) target = $region67
              $region66: #{tpu_custom_call.1} parent=51 // pred_region
                loop: start=0, step=1, limit=1
                $region68: #{tpu_custom_call.1} parent=66 // loop_pre_header
                  _
                $region69: #{tpu_custom_call.1} parent=66 // loop_header
                  %s1928 = sphi 0, %s1932
                  %p1929 = scmp.ge.s32.totalorder %s1928, 1
                  %s1933 = sphi %s1839, %s1839
                  %s1934 = sphi %s1845, %s1845
                $region70: #{tpu_custom_call.1} parent=66 // loop_header_branch
                  %1931 = sbr.rel (%p1929) target = $region74
                $region71: #{tpu_custom_call.1} parent=66 // loop_body
                  %v1935 = vld [vmem:[%s1933] sm:$0xff]
                  %1936 = vst [vmem:[%s1934] sm:$0xff] %v1935
                  %v1937 = vld [vmem:[%s1933 + $0x8] sm:$0xff]
                  %1938 = vst [vmem:[%s1934 + $0x8] sm:$0xff] %v1937
                  %v1939 = vld [vmem:[%s1933 + $0x10] sm:$0xff]
                  %1940 = vst [vmem:[%s1934 + $0x10] sm:$0xff] %v1939
                  %v1941 = vld [vmem:[%s1933 + $0x18] sm:$0xff]
                  %1942 = vst [vmem:[%s1934 + $0x18] sm:$0xff] %v1941
                  %v1943 = vld [vmem:[%s1933 + $0x20] sm:$0xff]
                  %1944 = vst [vmem:[%s1934 + $0x20] sm:$0xff] %v1943
                  %v1945 = vld [vmem:[%s1933 + $0x28] sm:$0xff]
                  %1946 = vst [vmem:[%s1934 + $0x28] sm:$0xff] %v1945
                  %v1947 = vld [vmem:[%s1933 + $0x30] sm:$0xff]
                  %1948 = vst [vmem:[%s1934 + $0x30] sm:$0xff] %v1947
                  %v1949 = vld [vmem:[%s1933 + $0x38] sm:$0xff]
                  %1950 = vst [vmem:[%s1934 + $0x38] sm:$0xff] %v1949
                  %v1951 = vld [vmem:[%s1933 + $0x40] sm:$0xff]
                  %1952 = vst [vmem:[%s1934 + $0x200] sm:$0xff] %v1951
                  %v1953 = vld [vmem:[%s1933 + $0x48] sm:$0xff]
                  %1954 = vst [vmem:[%s1934 + $0x208] sm:$0xff] %v1953
                  %v1955 = vld [vmem:[%s1933 + $0x50] sm:$0xff]
                  %1956 = vst [vmem:[%s1934 + $0x210] sm:$0xff] %v1955
                  %v1957 = vld [vmem:[%s1933 + $0x58] sm:$0xff]
                  %1958 = vst [vmem:[%s1934 + $0x218] sm:$0xff] %v1957
                  %v1959 = vld [vmem:[%s1933 + $0x60] sm:$0xff]
                  %1960 = vst [vmem:[%s1934 + $0x220] sm:$0xff] %v1959
                  %v1961 = vld [vmem:[%s1933 + $0x68] sm:$0xff]
                  %1962 = vst [vmem:[%s1934 + $0x228] sm:$0xff] %v1961
                  %v1963 = vld [vmem:[%s1933 + $0x70] sm:$0xff]
                  %1964 = vst [vmem:[%s1934 + $0x230] sm:$0xff] %v1963
                  %v1965 = vld [vmem:[%s1933 + $0x78] sm:$0xff]
                  %1966 = vst [vmem:[%s1934 + $0x238] sm:$0xff] %v1965
                  %v1967 = vld [vmem:[%s1933 + $0x80] sm:$0xff]
                  %1968 = vst [vmem:[%s1934 + $0x400] sm:$0xff] %v1967
                  %v1969 = vld [vmem:[%s1933 + $0x88] sm:$0xff]
                  %1970 = vst [vmem:[%s1934 + $0x408] sm:$0xff] %v1969
                  %v1971 = vld [vmem:[%s1933 + $0x90] sm:$0xff]
                  %1972 = vst [vmem:[%s1934 + $0x410] sm:$0xff] %v1971
                  %v1973 = vld [vmem:[%s1933 + $0x98] sm:$0xff]
                  %1974 = vst [vmem:[%s1934 + $0x418] sm:$0xff] %v1973
                  %v1975 = vld [vmem:[%s1933 + $0xa0] sm:$0xff]
                  %1976 = vst [vmem:[%s1934 + $0x420] sm:$0xff] %v1975
                  %v1977 = vld [vmem:[%s1933 + $0xa8] sm:$0xff]
                  %1978 = vst [vmem:[%s1934 + $0x428] sm:$0xff] %v1977
                  %v1979 = vld [vmem:[%s1933 + $0xb0] sm:$0xff]
                  %1980 = vst [vmem:[%s1934 + $0x430] sm:$0xff] %v1979
                  %v1981 = vld [vmem:[%s1933 + $0xb8] sm:$0xff]
                  %1982 = vst [vmem:[%s1934 + $0x438] sm:$0xff] %v1981
                  %v1983 = vld [vmem:[%s1933 + $0xc0] sm:$0xff]
                  %1984 = vst [vmem:[%s1934 + $0x600] sm:$0xff] %v1983
                  %v1985 = vld [vmem:[%s1933 + $0xc8] sm:$0xff]
                  %1986 = vst [vmem:[%s1934 + $0x608] sm:$0xff] %v1985
                  %v1987 = vld [vmem:[%s1933 + $0xd0] sm:$0xff]
                  %1988 = vst [vmem:[%s1934 + $0x610] sm:$0xff] %v1987
                  %v1989 = vld [vmem:[%s1933 + $0xd8] sm:$0xff]
                  %1990 = vst [vmem:[%s1934 + $0x618] sm:$0xff] %v1989
                  %v1991 = vld [vmem:[%s1933 + $0xe0] sm:$0xff]
                  %1992 = vst [vmem:[%s1934 + $0x620] sm:$0xff] %v1991
                  %v1993 = vld [vmem:[%s1933 + $0xe8] sm:$0xff]
                  %1994 = vst [vmem:[%s1934 + $0x628] sm:$0xff] %v1993
                  %v1995 = vld [vmem:[%s1933 + $0xf0] sm:$0xff]
                  %1996 = vst [vmem:[%s1934 + $0x630] sm:$0xff] %v1995
                  %v1997 = vld [vmem:[%s1933 + $0xf8] sm:$0xff]
                  %1998 = vst [vmem:[%s1934 + $0x638] sm:$0xff] %v1997
                $region72: #{tpu_custom_call.1} parent=66 // loop_footer
                  %s1932 = sadd.s32 1, %s1928
                $region73: #{tpu_custom_call.1} parent=66 // loop_footer_branch
                  %1927 = sbr.rel target = $region69
                $region74: #{tpu_custom_call.1} parent=66 // loop_exit
                  _
              $region67: #{tpu_custom_call.1} parent=51 // pred_fallthru
                _
              // Predicated region
              $region75: #{tpu_custom_call.1} parent=51 // pred_check
                _
              $region76: #{tpu_custom_call.1} parent=51 // pred_check_branch
                %2000 = sbr.rel target = $region78
              $region77: #{tpu_custom_call.1} parent=51 // pred_region
                _
              $region78: #{tpu_custom_call.1} parent=51 // pred_fallthru
                _
            $region52: #{tpu_custom_call.1} parent=47 // pred_fallthru
              _
            // Predicated region
            $region53: #{tpu_custom_call.1} parent=47 // pred_check
              _
            $region54: #{tpu_custom_call.1} parent=47 // pred_check_branch
              %1851 = sbr.rel target = $region56
            $region55: #{tpu_custom_call.1} parent=47 // pred_region
              loop: start=0, step=1, limit=1
              $region57: #{tpu_custom_call.1} parent=55 // loop_pre_header
                _
              $region58: #{tpu_custom_call.1} parent=55 // loop_header
                %s1854 = sphi 0, %s1858
                %p1855 = scmp.ge.s32.totalorder %s1854, 1
                %s1859 = sphi %s1839, %s1839
                %s1860 = sphi %s1845, %s1845
              $region59: #{tpu_custom_call.1} parent=55 // loop_header_branch
                %1857 = sbr.rel (%p1855) target = $region63
              $region60: #{tpu_custom_call.1} parent=55 // loop_body
                %v1861 = vld [vmem:[%s1859] sm:$0xff]
                %1862 = vst [vmem:[%s1860] sm:$0xff] %v1861
                %v1863 = vld [vmem:[%s1859 + $0x8] sm:$0xff]
                %1864 = vst [vmem:[%s1860 + $0x8] sm:$0xff] %v1863
                %v1865 = vld [vmem:[%s1859 + $0x10] sm:$0xff]
                %1866 = vst [vmem:[%s1860 + $0x10] sm:$0xff] %v1865
                %v1867 = vld [vmem:[%s1859 + $0x18] sm:$0xff]
                %1868 = vst [vmem:[%s1860 + $0x18] sm:$0xff] %v1867
                %v1869 = vld [vmem:[%s1859 + $0x20] sm:$0xff]
                %1870 = vst [vmem:[%s1860 + $0x20] sm:$0xff] %v1869
                %v1871 = vld [vmem:[%s1859 + $0x28] sm:$0xff]
                %1872 = vst [vmem:[%s1860 + $0x28] sm:$0xff] %v1871
                %v1873 = vld [vmem:[%s1859 + $0x30] sm:$0xff]
                %1874 = vst [vmem:[%s1860 + $0x30] sm:$0xff] %v1873
                %v1875 = vld [vmem:[%s1859 + $0x38] sm:$0xff]
                %1876 = vst [vmem:[%s1860 + $0x38] sm:$0xff] %v1875
                %v1877 = vld [vmem:[%s1859 + $0x40] sm:$0xff]
                %1878 = vst [vmem:[%s1860 + $0x200] sm:$0xff] %v1877
                %v1879 = vld [vmem:[%s1859 + $0x48] sm:$0xff]
                %1880 = vst [vmem:[%s1860 + $0x208] sm:$0xff] %v1879
                %v1881 = vld [vmem:[%s1859 + $0x50] sm:$0xff]
                %1882 = vst [vmem:[%s1860 + $0x210] sm:$0xff] %v1881
                %v1883 = vld [vmem:[%s1859 + $0x58] sm:$0xff]
                %1884 = vst [vmem:[%s1860 + $0x218] sm:$0xff] %v1883
                %v1885 = vld [vmem:[%s1859 + $0x60] sm:$0xff]
                %1886 = vst [vmem:[%s1860 + $0x220] sm:$0xff] %v1885
                %v1887 = vld [vmem:[%s1859 + $0x68] sm:$0xff]
                %1888 = vst [vmem:[%s1860 + $0x228] sm:$0xff] %v1887
                %v1889 = vld [vmem:[%s1859 + $0x70] sm:$0xff]
                %1890 = vst [vmem:[%s1860 + $0x230] sm:$0xff] %v1889
                %v1891 = vld [vmem:[%s1859 + $0x78] sm:$0xff]
                %1892 = vst [vmem:[%s1860 + $0x238] sm:$0xff] %v1891
                %v1893 = vld [vmem:[%s1859 + $0x80] sm:$0xff]
                %1894 = vst [vmem:[%s1860 + $0x400] sm:$0xff] %v1893
                %v1895 = vld [vmem:[%s1859 + $0x88] sm:$0xff]
                %1896 = vst [vmem:[%s1860 + $0x408] sm:$0xff] %v1895
                %v1897 = vld [vmem:[%s1859 + $0x90] sm:$0xff]
                %1898 = vst [vmem:[%s1860 + $0x410] sm:$0xff] %v1897
                %v1899 = vld [vmem:[%s1859 + $0x98] sm:$0xff]
                %1900 = vst [vmem:[%s1860 + $0x418] sm:$0xff] %v1899
                %v1901 = vld [vmem:[%s1859 + $0xa0] sm:$0xff]
                %1902 = vst [vmem:[%s1860 + $0x420] sm:$0xff] %v1901
                %v1903 = vld [vmem:[%s1859 + $0xa8] sm:$0xff]
                %1904 = vst [vmem:[%s1860 + $0x428] sm:$0xff] %v1903
                %v1905 = vld [vmem:[%s1859 + $0xb0] sm:$0xff]
                %1906 = vst [vmem:[%s1860 + $0x430] sm:$0xff] %v1905
                %v1907 = vld [vmem:[%s1859 + $0xb8] sm:$0xff]
                %1908 = vst [vmem:[%s1860 + $0x438] sm:$0xff] %v1907
                %v1909 = vld [vmem:[%s1859 + $0xc0] sm:$0xff]
                %1910 = vst [vmem:[%s1860 + $0x600] sm:$0xff] %v1909
                %v1911 = vld [vmem:[%s1859 + $0xc8] sm:$0xff]
                %1912 = vst [vmem:[%s1860 + $0x608] sm:$0xff] %v1911
                %v1913 = vld [vmem:[%s1859 + $0xd0] sm:$0xff]
                %1914 = vst [vmem:[%s1860 + $0x610] sm:$0xff] %v1913
                %v1915 = vld [vmem:[%s1859 + $0xd8] sm:$0xff]
                %1916 = vst [vmem:[%s1860 + $0x618] sm:$0xff] %v1915
                %v1917 = vld [vmem:[%s1859 + $0xe0] sm:$0xff]
                %1918 = vst [vmem:[%s1860 + $0x620] sm:$0xff] %v1917
                %v1919 = vld [vmem:[%s1859 + $0xe8] sm:$0xff]
                %1920 = vst [vmem:[%s1860 + $0x628] sm:$0xff] %v1919
                %v1921 = vld [vmem:[%s1859 + $0xf0] sm:$0xff]
                %1922 = vst [vmem:[%s1860 + $0x630] sm:$0xff] %v1921
                %v1923 = vld [vmem:[%s1859 + $0xf8] sm:$0xff]
                %1924 = vst [vmem:[%s1860 + $0x638] sm:$0xff] %v1923
              $region61: #{tpu_custom_call.1} parent=55 // loop_footer
                %s1858 = sadd.s32 1, %s1854
              $region62: #{tpu_custom_call.1} parent=55 // loop_footer_branch
                %1853 = sbr.rel target = $region58
              $region63: #{tpu_custom_call.1} parent=55 // loop_exit
                _
            $region56: #{tpu_custom_call.1} parent=47 // pred_fallthru
              _
          $region48: #{tpu_custom_call.1} parent=43 // pred_fallthru
            _
          %2001 = vnop
        $region44: #{tpu_custom_call.1} parent=39 // pred_fallthru
          _
      $region40: #{tpu_custom_call.1} parent=5 // pred_fallthru
        _
      %p2002 = scmp.le.s32.totalorder 2, %s11
      // Predicated region
      $region79: #{tpu_custom_call.1} parent=5 // pred_check
        %p2003 = pneg %p2002
      $region80: #{tpu_custom_call.1} parent=5 // pred_check_branch
        %2005 = sbr.rel (%p2003) target = $region82
      $region81: #{tpu_custom_call.1} parent=5 // pred_region
        %s2006 = ssub.s32 %s11, 2
        // Predicated region
        $region83: #{tpu_custom_call.1} parent=81 // pred_check
          %p2007 = pneg %p150
        $region84: #{tpu_custom_call.1} parent=81 // pred_check_branch
          %2009 = sbr.rel (%p2007) target = $region86
        $region85: #{tpu_custom_call.1} parent=81 // pred_region
          %s2010 = sand.u32 %s135, 1
          %s2011 = sand.u32 %s135, 1
          %s2012 = smul.addr %s2011, 256
          %s2013 = scalar_lea.vmem [#allocation2], %s2012
        $region86: #{tpu_custom_call.1} parent=81 // pred_fallthru
          _
      $region82: #{tpu_custom_call.1} parent=5 // pred_fallthru
        _
    $region6: #{tpu_custom_call.1} parent=1 // loop_footer
      %s15 = sadd.s32 1, %s11
    $region7: #{tpu_custom_call.1} parent=1 // loop_footer_branch
      %10 = sbr.rel target = $region3
    $region8: #{tpu_custom_call.1} parent=1 // loop_exit
      _

</llo_original>
